<compile_context>
chip_gen: v7x
topology: tpu7x:2x2x1
jax: 0.10.0
libtpu: 0.0.40
codegen_flags: <defaults>
</compile_context>

<pallas_src>
import functools

import jax
import jax.numpy as jnp
import numpy as np
from jax import lax
from jax.experimental import pallas as pl
from jax.experimental.pallas import tpu as pltpu


# ----------------------------------------------------------------------------
# Single fused kernel: expand + BN0 + SiLU + depthwise + BN1 + SiLU + SE + project + BN2
# ----------------------------------------------------------------------------
def _mbconv_fused_kernel(x_ref, we_ref, sh0_ref, wdw_ref, sh1_ref, pm_ref,
                         wse1_ref, wse2_ref, wp_ref, sh2_ref,
                         o_ref, xp_ref, *,
                         K, H, W, Hp, Wp, pad_lo, do_expand, do_se):
    cexp = wdw_ref.shape[-1]
    x = x_ref[0]                                              # (H*W, Cin)

    if do_expand:
        # expand 1x1 conv == channel matmul; BN0 scale pre-folded into we.
        xe = jnp.dot(x, we_ref[...], preferred_element_type=jnp.float32)
        xe = xe + sh0_ref[...]                                # BN0 shift
        xe = xe * jax.nn.sigmoid(xe)                          # SiLU
    else:
        xe = x.astype(jnp.float32)

    # Build the zero-padded activation inside VMEM (no HBM pad round trip):
    # scatter the H image rows into a flattened, zeroed (Hp+1)*Wp scratch.
    xp_ref[...] = jnp.zeros(xp_ref.shape, jnp.float32)
    for h in range(H):                                        # static, unrolled
        dst = (h + pad_lo) * Wp + pad_lo
        xp_ref[pl.ds(dst, W), :] = xe[h * W:(h + 1) * W, :]

    # Depthwise KxK conv (stride-1 extent) in flattened form: each tap is one
    # contiguous static slice of the scratch; wrap-around junk only hits cols >= W.
    m1 = (Hp - K + 1) * Wp
    acc = jnp.zeros((m1, cexp), jnp.float32)
    for kh in range(K):                                       # static taps
        for kw in range(K):
            off = kh * Wp + kw
            acc = acc + xp_ref[pl.ds(off, m1), :] * wdw_ref[kh, kw, :]

    y = acc + sh1_ref[...]                                    # BN1 (scale folded into wdw)
    y = y * jax.nn.sigmoid(y)                                 # SiLU

    if do_se:
        # SE squeeze: masked global average pool (mask selects valid/strided pixels
        # and is pre-scaled by 1/(Ho*Wo), so the masked sum is the mean).
        pooled = jnp.sum(y * pm_ref[...], axis=0, keepdims=True)        # (1, Cexp)
        h1 = jnp.dot(pooled, wse1_ref[...], preferred_element_type=jnp.float32)
        h1 = h1 * jax.nn.sigmoid(h1)                                    # SiLU
        g = jnp.dot(h1, wse2_ref[...], preferred_element_type=jnp.float32)
        y = y * jax.nn.sigmoid(g)                                       # excite gate

    # Project 1x1 conv + BN2 (scale folded into wp; shift added here).
    o = jnp.dot(y.astype(wp_ref.dtype), wp_ref[...],
                preferred_element_type=jnp.float32) + sh2_ref[...]
    o_ref[0] = o.astype(o_ref.dtype)


# ----------------------------------------------------------------------------
# Parameter setup / BN folding (plain-JAX glue)
# ----------------------------------------------------------------------------
def bn_fold(gamma, beta, mean, var, eps):
    scale = gamma / jnp.sqrt(var + eps)
    shift = beta - mean * scale
    return scale.astype(jnp.float32), shift.astype(jnp.float32)


def _bn_params(key, c):
    k1, k2, k3, k4 = jax.random.split(key, 4)
    gamma = 1.0 + 0.1 * jax.random.normal(k1, (c,), jnp.float32)
    beta = 0.1 * jax.random.normal(k2, (c,), jnp.float32)
    mean = 0.1 * jax.random.normal(k3, (c,), jnp.float32)
    var = 0.5 + jax.random.uniform(k4, (c,), jnp.float32)
    return (gamma, beta, mean, var)


def init_params(key, cfg):
    cin = cfg["in_channels"]
    cout = cfg["out_channels"]
    cexp = cin * cfg["expand_ratio"]
    k = jax.random.split(key, 10)
    p = {}
    if cfg["expand_ratio"] != 1:
        p["w_expand"] = 0.2 * jax.random.normal(k[0], (cin, cexp), jnp.float32)
        p["bn0"] = _bn_params(k[1], cexp)
    p["w_dw"] = 0.2 * jax.random.normal(
        k[2], (cfg["filter_size"], cfg["filter_size"], cexp), jnp.float32)
    p["bn1"] = _bn_params(k[3], cexp)
    if cfg["se_ratio"]:
        squeeze = int(cin * cfg["se_ratio"])
        p["w_se1"] = 0.2 * jax.random.normal(k[4], (cexp, squeeze), jnp.float32)
        p["w_se2"] = 0.2 * jax.random.normal(k[5], (squeeze, cexp), jnp.float32)
    p["w_p"] = 0.2 * jax.random.normal(k[6], (cexp, cout), jnp.float32)
    p["bn2"] = _bn_params(k[7], cout)
    return p


# ----------------------------------------------------------------------------
# MBConv forward (Pallas kernel) — accepts / returns NCHW like the nn.Module
# ----------------------------------------------------------------------------
def mbconv_forward(x_nchw, p, cfg):
    eps = cfg["bn_eps"]
    K, stride = cfg["filter_size"], cfg["stride"]
    x = jnp.transpose(x_nchw, (0, 2, 3, 1))                   # NCHW -> NHWC
    N, H, W, Cin = x.shape
    do_expand = cfg["expand_ratio"] != 1
    do_se = bool(cfg["se_ratio"])
    Cexp = Cin * cfg["expand_ratio"]

    # Conv2dSamePadding: ZeroPad2d((k//2 + (k - 2*(k//2)) - 1, k//2)) per spatial dim.
    pad_lo = K // 2 + (K - 2 * (K // 2)) - 1
    pad_hi = K // 2
    Hp, Wp = H + pad_lo + pad_hi, W + pad_lo + pad_hi
    Ho1, Wo1 = Hp - K + 1, Wp - K + 1                         # stride-1 output extent
    Ho = (Hp - K) // stride + 1
    Wo = (Wp - K) // stride + 1
    M1 = Ho1 * Wp                                             # flat rows (incl. junk cols)

    # Fold BN scales into the conv weights (kernel only adds the shift).
    if do_expand:
        sc0, sh0 = bn_fold(*p["bn0"], eps)
        we = (p["w_expand"] * sc0[None, :]).astype(x.dtype)
    else:
        we = jnp.eye(Cin, dtype=x.dtype)                      # unused (static flag skips it)
        sh0 = jnp.zeros((Cexp,), jnp.float32)
    sc1, sh1 = bn_fold(*p["bn1"], eps)
    wdw = (p["w_dw"] * sc1[None, None, :]).astype(jnp.float32)
    sc2, sh2 = bn_fold(*p["bn2"], eps)
    wp_ = (p["w_p"] * sc2[None, :]).astype(x.dtype)
    Cout = wp_.shape[1]

    if do_se:
        w_se1 = p["w_se1"].astype(jnp.float32)
        w_se2 = p["w_se2"].astype(jnp.float32)
    else:
        w_se1 = jnp.zeros((Cexp, 1), jnp.float32)             # dummies, skipped statically
        w_se2 = jnp.zeros((1, Cexp), jnp.float32)
    Sq = w_se1.shape[1]

    # Pool mask over the flat rows: selects valid (non-junk, strided) output pixels,
    # pre-scaled by 1/(Ho*Wo) so the in-kernel masked sum equals the spatial mean.
    rows = np.arange(M1)
    ih, iw = rows // Wp, rows % Wp
    valid = (ih % stride == 0) & (ih // stride < Ho) & (iw % stride == 0) & (iw // stride < Wo)
    pool_mask = jnp.asarray((valid.astype(np.float32) / float(Ho * Wo)).reshape(M1, 1))

    x_flat = x.reshape(N, H * W, Cin)
    kern = functools.partial(_mbconv_fused_kernel, K=K, H=H, W=W, Hp=Hp, Wp=Wp,
                             pad_lo=pad_lo, do_expand=do_expand, do_se=do_se)
    out = pl.pallas_call(
        kern,
        out_shape=jax.ShapeDtypeStruct((N, M1, Cout), x.dtype),
        grid=(N,),
        in_specs=[
            pl.BlockSpec((1, H * W, Cin), lambda n: (n, 0, 0)),
            pl.BlockSpec((Cin, Cexp), lambda n: (0, 0)),
            pl.BlockSpec((1, Cexp), lambda n: (0, 0)),
            pl.BlockSpec((K, K, Cexp), lambda n: (0, 0, 0)),
            pl.BlockSpec((1, Cexp), lambda n: (0, 0)),
            pl.BlockSpec((M1, 1), lambda n: (0, 0)),
            pl.BlockSpec((Cexp, Sq), lambda n: (0, 0)),
            pl.BlockSpec((Sq, Cexp), lambda n: (0, 0)),
            pl.BlockSpec((Cexp, Cout), lambda n: (0, 0)),
            pl.BlockSpec((1, Cout), lambda n: (0, 0)),
        ],
        out_specs=pl.BlockSpec((1, M1, Cout), lambda n: (n, 0, 0)),
        scratch_shapes=[pltpu.VMEM(((Hp + 1) * Wp, Cexp), jnp.float32)],
        compiler_params=pltpu.CompilerParams(dimension_semantics=("parallel",)),
    )(x_flat, we, sh0.reshape(1, Cexp), wdw, sh1.reshape(1, Cexp), pool_mask,
      w_se1, w_se2, wp_, sh2.reshape(1, Cout))

    if stride > 1:
        out_nhwc = out.reshape(N, Ho1, Wp, Cout)[
            :, 0:(Ho - 1) * stride + 1:stride, 0:(Wo - 1) * stride + 1:stride, :]
    else:
        out_nhwc = out.reshape(N, Ho1, Wp, Cout)[:, :, :Wo1, :]   # crop wrap-around cols
    return jnp.transpose(out_nhwc, (0, 3, 1, 2))              # NHWC -> NCHW


# ----------------------------------------------------------------------------
# Pure-JAX reference (lax.conv) for correctness cross-check
# ----------------------------------------------------------------------------
def mbconv_reference(x_nchw, p, cfg):
    eps = cfg["bn_eps"]
    x = jnp.transpose(x_nchw, (0, 2, 3, 1))
    if cfg["expand_ratio"] != 1:
        x = jnp.einsum("nhwc,cd->nhwd", x, p["w_expand"])
        s, b = bn_fold(*p["bn0"], eps)
        x = x * s + b
        x = x * jax.nn.sigmoid(x)
    K, stride = cfg["filter_size"], cfg["stride"]
    pad_lo = K // 2 + (K - 2 * (K // 2)) - 1
    pad_hi = K // 2
    x = lax.conv_general_dilated(
        x, p["w_dw"][:, :, None, :], (stride, stride),
        ((pad_lo, pad_hi), (pad_lo, pad_hi)),
        dimension_numbers=("NHWC", "HWIO", "NHWC"),
        feature_group_count=x.shape[-1])
    s, b = bn_fold(*p["bn1"], eps)
    x = x * s + b
    x = x * jax.nn.sigmoid(x)
    if cfg["se_ratio"]:
        pooled = jnp.mean(x, axis=(1, 2))
        h = pooled @ p["w_se1"]
        h = h * jax.nn.sigmoid(h)
        gate = jax.nn.sigmoid(h @ p["w_se2"])
        x = x * gate[:, None, None, :]
    x = jnp.einsum("nhwc,cd->nhwd", x, p["w_p"])
    s, b = bn_fold(*p["bn2"], eps)
    x = x * s + b
    return jnp.transpose(x, (0, 3, 1, 2))


if __name__ == "__main__":
    cfg = dict(
        in_channels=8,
        out_channels=16,
        filter_size=3,
        expand_ratio=4,       # expand_channels = 32
        stride=1,
        se_ratio=0.25,        # squeeze = int(8 * 0.25) = 2
        bn_eps=1e-3,
        bn_mom=0.01,          # unused in inference-mode BN
        padding=1,            # stored but unused by the PyTorch forward
    )
    key = jax.random.PRNGKey(0)
    k_param, k_x = jax.random.split(key)
    params = init_params(k_param, cfg)

    # PyTorch-convention NCHW input
    x = jax.random.normal(k_x, (2, cfg["in_channels"], 16, 16), jnp.float32)

    y = jax.block_until_ready(mbconv_forward(x, params, cfg))
    y_ref = jax.block_until_ready(mbconv_reference(x, params, cfg))

    assert y.shape == (2, cfg["out_channels"], 16, 16), y.shape
    np.testing.assert_allclose(np.asarray(y), np.asarray(y_ref), atol=1e-4, rtol=1e-4)
    print("KERNEL_OK")
</pallas_src>

<mosaic_0001>
module attributes {stable_mosaic.version = 11 : i64} {
  func.func @_mbconv_fused_kernel(%arg0: i32, %arg1: memref<1x256x8xf32, #tpu.memory_space<vmem>>, %arg2: memref<8x32xf32, #tpu.memory_space<vmem>>, %arg3: memref<1x32xf32, #tpu.memory_space<vmem>>, %arg4: memref<3x3x32xf32, #tpu.memory_space<vmem>>, %arg5: memref<1x32xf32, #tpu.memory_space<vmem>>, %arg6: memref<288x1xf32, #tpu.memory_space<vmem>>, %arg7: memref<32x2xf32, #tpu.memory_space<vmem>>, %arg8: memref<2x32xf32, #tpu.memory_space<vmem>>, %arg9: memref<32x16xf32, #tpu.memory_space<vmem>>, %arg10: memref<1x16xf32, #tpu.memory_space<vmem>>, %arg11: memref<1x288x16xf32, #tpu.memory_space<vmem>>, %arg12: memref<342x32xf32, #tpu.memory_space<vmem>>) attributes {dimension_semantics = [#tpu.dimension_semantics<parallel>], iteration_bounds = array<i64: 2>, scalar_prefetch = 0 : i64, scratch_operands = 1 : i64, tpu.core_type = #tpu.core_type<tc>, window_params = [{transform_indices = @transform_0, window_bounds = array<i64: 1, 256, 8>}, {pipeline_mode = #tpu.pipeline_mode<synchronous>, transform_indices = @transform_1, window_bounds = array<i64: 8, 32>}, {pipeline_mode = #tpu.pipeline_mode<synchronous>, transform_indices = @transform_2, window_bounds = array<i64: 1, 32>}, {pipeline_mode = #tpu.pipeline_mode<synchronous>, transform_indices = @transform_3, window_bounds = array<i64: 3, 3, 32>}, {pipeline_mode = #tpu.pipeline_mode<synchronous>, transform_indices = @transform_4, window_bounds = array<i64: 1, 32>}, {pipeline_mode = #tpu.pipeline_mode<synchronous>, transform_indices = @transform_5, window_bounds = array<i64: 288, 1>}, {pipeline_mode = #tpu.pipeline_mode<synchronous>, transform_indices = @transform_6, window_bounds = array<i64: 32, 2>}, {pipeline_mode = #tpu.pipeline_mode<synchronous>, transform_indices = @transform_7, window_bounds = array<i64: 2, 32>}, {pipeline_mode = #tpu.pipeline_mode<synchronous>, transform_indices = @transform_8, window_bounds = array<i64: 32, 16>}, {pipeline_mode = #tpu.pipeline_mode<synchronous>, transform_indices = @transform_9, window_bounds = array<i64: 1, 16>}, {transform_indices = @transform_10, window_bounds = array<i64: 1, 288, 16>}]} {
    %c0 = arith.constant 0 : index
    %c0_0 = arith.constant 0 : index
    %c0_1 = arith.constant 0 : index
    %0 = vector.load %arg1[%c0, %c0_0, %c0_1] : memref<1x256x8xf32, #tpu.memory_space<vmem>>, vector<1x256x8xf32>
    %1 = vector.shape_cast %0 : vector<1x256x8xf32> to vector<256x8xf32>
    %c0_2 = arith.constant 0 : index
    %c0_3 = arith.constant 0 : index
    %2 = vector.load %arg2[%c0_2, %c0_3] : memref<8x32xf32, #tpu.memory_space<vmem>>, vector<8x32xf32>
    %cst = arith.constant dense<0.000000e+00> : vector<256x32xf32>
    %3 = tpu.matmul %1, %2, %cst {dimension_numbers = #tpu.dot_dimension_numbers<[1], [0], [0], [1], [0, 0, 1, 1], [], []>} : vector<256x8xf32>, vector<8x32xf32>, vector<256x32xf32> -> vector<256x32xf32>
    %c0_4 = arith.constant 0 : index
    %c0_5 = arith.constant 0 : index
    %4 = vector.load %arg3[%c0_4, %c0_5] : memref<1x32xf32, #tpu.memory_space<vmem>>, vector<1x32xf32>
    %5 = vector.broadcast %4 : vector<1x32xf32> to vector<256x32xf32>
    %6 = arith.addf %3, %5 : vector<256x32xf32>
    %7 = arith.negf %6 : vector<256x32xf32>
    %8 = math.exp %7 : vector<256x32xf32>
    %cst_6 = arith.constant 1.000000e+00 : f32
    %9 = vector.broadcast %cst_6 : f32 to vector<256x32xf32>
    %10 = arith.addf %9, %8 : vector<256x32xf32>
    %11 = arith.divf %9, %10 : vector<256x32xf32>
    %12 = arith.mulf %6, %11 : vector<256x32xf32>
    %cst_7 = arith.constant 0.000000e+00 : f32
    %13 = vector.broadcast %cst_7 : f32 to vector<342x32xf32>
    %c0_8 = arith.constant 0 : index
    %c0_9 = arith.constant 0 : index
    %14 = vector.load %arg12[%c0_8, %c0_9] : memref<342x32xf32, #tpu.memory_space<vmem>>, vector<342x32xf32>
    tpu.vector_store %arg12[%c0_8, %c0_9], %13 {strides = array<i32>} : memref<342x32xf32, #tpu.memory_space<vmem>>, vector<342x32xf32>,
    %15 = vector.extract_strided_slice %12 {offsets = [0, 0], sizes = [16, 32], strides = [1, 1]} : vector<256x32xf32> to vector<16x32xf32>
    %c19 = arith.constant 19 : index
    %c0_10 = arith.constant 0 : index
    %16 = vector.load %arg12[%c19, %c0_10] : memref<342x32xf32, #tpu.memory_space<vmem>>, vector<16x32xf32>
    tpu.vector_store %arg12[%c19, %c0_10], %15 {strides = array<i32>} : memref<342x32xf32, #tpu.memory_space<vmem>>, vector<16x32xf32>,
    %17 = vector.extract_strided_slice %12 {offsets = [16, 0], sizes = [16, 32], strides = [1, 1]} : vector<256x32xf32> to vector<16x32xf32>
    %c37 = arith.constant 37 : index
    %c0_11 = arith.constant 0 : index
    %18 = vector.load %arg12[%c37, %c0_11] : memref<342x32xf32, #tpu.memory_space<vmem>>, vector<16x32xf32>
    tpu.vector_store %arg12[%c37, %c0_11], %17 {strides = array<i32>} : memref<342x32xf32, #tpu.memory_space<vmem>>, vector<16x32xf32>,
    %19 = vector.extract_strided_slice %12 {offsets = [32, 0], sizes = [16, 32], strides = [1, 1]} : vector<256x32xf32> to vector<16x32xf32>
    %c55 = arith.constant 55 : index
    %c0_12 = arith.constant 0 : index
    %20 = vector.load %arg12[%c55, %c0_12] : memref<342x32xf32, #tpu.memory_space<vmem>>, vector<16x32xf32>
    tpu.vector_store %arg12[%c55, %c0_12], %19 {strides = array<i32>} : memref<342x32xf32, #tpu.memory_space<vmem>>, vector<16x32xf32>,
    %21 = vector.extract_strided_slice %12 {offsets = [48, 0], sizes = [16, 32], strides = [1, 1]} : vector<256x32xf32> to vector<16x32xf32>
    %c73 = arith.constant 73 : index
    %c0_13 = arith.constant 0 : index
    %22 = vector.load %arg12[%c73, %c0_13] : memref<342x32xf32, #tpu.memory_space<vmem>>, vector<16x32xf32>
    tpu.vector_store %arg12[%c73, %c0_13], %21 {strides = array<i32>} : memref<342x32xf32, #tpu.memory_space<vmem>>, vector<16x32xf32>,
    %23 = vector.extract_strided_slice %12 {offsets = [64, 0], sizes = [16, 32], strides = [1, 1]} : vector<256x32xf32> to vector<16x32xf32>
    %c91 = arith.constant 91 : index
    %c0_14 = arith.constant 0 : index
    %24 = vector.load %arg12[%c91, %c0_14] : memref<342x32xf32, #tpu.memory_space<vmem>>, vector<16x32xf32>
    tpu.vector_store %arg12[%c91, %c0_14], %23 {strides = array<i32>} : memref<342x32xf32, #tpu.memory_space<vmem>>, vector<16x32xf32>,
    %25 = vector.extract_strided_slice %12 {offsets = [80, 0], sizes = [16, 32], strides = [1, 1]} : vector<256x32xf32> to vector<16x32xf32>
    %c109 = arith.constant 109 : index
    %c0_15 = arith.constant 0 : index
    %26 = vector.load %arg12[%c109, %c0_15] : memref<342x32xf32, #tpu.memory_space<vmem>>, vector<16x32xf32>
    tpu.vector_store %arg12[%c109, %c0_15], %25 {strides = array<i32>} : memref<342x32xf32, #tpu.memory_space<vmem>>, vector<16x32xf32>,
    %27 = vector.extract_strided_slice %12 {offsets = [96, 0], sizes = [16, 32], strides = [1, 1]} : vector<256x32xf32> to vector<16x32xf32>
    %c127 = arith.constant 127 : index
    %c0_16 = arith.constant 0 : index
    %28 = vector.load %arg12[%c127, %c0_16] : memref<342x32xf32, #tpu.memory_space<vmem>>, vector<16x32xf32>
    tpu.vector_store %arg12[%c127, %c0_16], %27 {strides = array<i32>} : memref<342x32xf32, #tpu.memory_space<vmem>>, vector<16x32xf32>,
    %29 = vector.extract_strided_slice %12 {offsets = [112, 0], sizes = [16, 32], strides = [1, 1]} : vector<256x32xf32> to vector<16x32xf32>
    %c145 = arith.constant 145 : index
    %c0_17 = arith.constant 0 : index
    %30 = vector.load %arg12[%c145, %c0_17] : memref<342x32xf32, #tpu.memory_space<vmem>>, vector<16x32xf32>
    tpu.vector_store %arg12[%c145, %c0_17], %29 {strides = array<i32>} : memref<342x32xf32, #tpu.memory_space<vmem>>, vector<16x32xf32>,
    %31 = vector.extract_strided_slice %12 {offsets = [128, 0], sizes = [16, 32], strides = [1, 1]} : vector<256x32xf32> to vector<16x32xf32>
    %c163 = arith.constant 163 : index
    %c0_18 = arith.constant 0 : index
    %32 = vector.load %arg12[%c163, %c0_18] : memref<342x32xf32, #tpu.memory_space<vmem>>, vector<16x32xf32>
    tpu.vector_store %arg12[%c163, %c0_18], %31 {strides = array<i32>} : memref<342x32xf32, #tpu.memory_space<vmem>>, vector<16x32xf32>,
    %33 = vector.extract_strided_slice %12 {offsets = [144, 0], sizes = [16, 32], strides = [1, 1]} : vector<256x32xf32> to vector<16x32xf32>
    %c181 = arith.constant 181 : index
    %c0_19 = arith.constant 0 : index
    %34 = vector.load %arg12[%c181, %c0_19] : memref<342x32xf32, #tpu.memory_space<vmem>>, vector<16x32xf32>
    tpu.vector_store %arg12[%c181, %c0_19], %33 {strides = array<i32>} : memref<342x32xf32, #tpu.memory_space<vmem>>, vector<16x32xf32>,
    %35 = vector.extract_strided_slice %12 {offsets = [160, 0], sizes = [16, 32], strides = [1, 1]} : vector<256x32xf32> to vector<16x32xf32>
    %c199 = arith.constant 199 : index
    %c0_20 = arith.constant 0 : index
    %36 = vector.load %arg12[%c199, %c0_20] : memref<342x32xf32, #tpu.memory_space<vmem>>, vector<16x32xf32>
    tpu.vector_store %arg12[%c199, %c0_20], %35 {strides = array<i32>} : memref<342x32xf32, #tpu.memory_space<vmem>>, vector<16x32xf32>,
    %37 = vector.extract_strided_slice %12 {offsets = [176, 0], sizes = [16, 32], strides = [1, 1]} : vector<256x32xf32> to vector<16x32xf32>
    %c217 = arith.constant 217 : index
    %c0_21 = arith.constant 0 : index
    %38 = vector.load %arg12[%c217, %c0_21] : memref<342x32xf32, #tpu.memory_space<vmem>>, vector<16x32xf32>
    tpu.vector_store %arg12[%c217, %c0_21], %37 {strides = array<i32>} : memref<342x32xf32, #tpu.memory_space<vmem>>, vector<16x32xf32>,
    %39 = vector.extract_strided_slice %12 {offsets = [192, 0], sizes = [16, 32], strides = [1, 1]} : vector<256x32xf32> to vector<16x32xf32>
    %c235 = arith.constant 235 : index
    %c0_22 = arith.constant 0 : index
    %40 = vector.load %arg12[%c235, %c0_22] : memref<342x32xf32, #tpu.memory_space<vmem>>, vector<16x32xf32>
    tpu.vector_store %arg12[%c235, %c0_22], %39 {strides = array<i32>} : memref<342x32xf32, #tpu.memory_space<vmem>>, vector<16x32xf32>,
    %41 = vector.extract_strided_slice %12 {offsets = [208, 0], sizes = [16, 32], strides = [1, 1]} : vector<256x32xf32> to vector<16x32xf32>
    %c253 = arith.constant 253 : index
    %c0_23 = arith.constant 0 : index
    %42 = vector.load %arg12[%c253, %c0_23] : memref<342x32xf32, #tpu.memory_space<vmem>>, vector<16x32xf32>
    tpu.vector_store %arg12[%c253, %c0_23], %41 {strides = array<i32>} : memref<342x32xf32, #tpu.memory_space<vmem>>, vector<16x32xf32>,
    %43 = vector.extract_strided_slice %12 {offsets = [224, 0], sizes = [16, 32], strides = [1, 1]} : vector<256x32xf32> to vector<16x32xf32>
    %c271 = arith.constant 271 : index
    %c0_24 = arith.constant 0 : index
    %44 = vector.load %arg12[%c271, %c0_24] : memref<342x32xf32, #tpu.memory_space<vmem>>, vector<16x32xf32>
    tpu.vector_store %arg12[%c271, %c0_24], %43 {strides = array<i32>} : memref<342x32xf32, #tpu.memory_space<vmem>>, vector<16x32xf32>,
    %45 = vector.extract_strided_slice %12 {offsets = [240, 0], sizes = [16, 32], strides = [1, 1]} : vector<256x32xf32> to vector<16x32xf32>
    %c289 = arith.constant 289 : index
    %c0_25 = arith.constant 0 : index
    %46 = vector.load %arg12[%c289, %c0_25] : memref<342x32xf32, #tpu.memory_space<vmem>>, vector<16x32xf32>
    tpu.vector_store %arg12[%c289, %c0_25], %45 {strides = array<i32>} : memref<342x32xf32, #tpu.memory_space<vmem>>, vector<16x32xf32>,
    %cst_26 = arith.constant 0.000000e+00 : f32
    %47 = vector.broadcast %cst_26 : f32 to vector<288x32xf32>
    %c0_27 = arith.constant 0 : index
    %c0_28 = arith.constant 0 : index
    %48 = vector.load %arg12[%c0_27, %c0_28] : memref<342x32xf32, #tpu.memory_space<vmem>>, vector<288x32xf32>
    %c0_29 = arith.constant 0 : index
    %c0_30 = arith.constant 0 : index
    %c0_31 = arith.constant 0 : index
    %49 = vector.load %arg4[%c0_29, %c0_30, %c0_31] : memref<3x3x32xf32, #tpu.memory_space<vmem>>, vector<1x1x32xf32>
    %50 = vector.shape_cast %49 : vector<1x1x32xf32> to vector<32xf32>
    %51 = vector.shape_cast %50 : vector<32xf32> to vector<1x32xf32>
    %52 = vector.broadcast %51 : vector<1x32xf32> to vector<288x32xf32>
    %53 = arith.mulf %48, %52 : vector<288x32xf32>
    %54 = arith.addf %47, %53 : vector<288x32xf32>
    %c1 = arith.constant 1 : index
    %c0_32 = arith.constant 0 : index
    %55 = vector.load %arg12[%c1, %c0_32] : memref<342x32xf32, #tpu.memory_space<vmem>>, vector<288x32xf32>
    %c0_33 = arith.constant 0 : index
    %c1_34 = arith.constant 1 : index
    %c0_35 = arith.constant 0 : index
    %56 = vector.load %arg4[%c0_33, %c1_34, %c0_35] : memref<3x3x32xf32, #tpu.memory_space<vmem>>, vector<1x1x32xf32>
    %57 = vector.shape_cast %56 : vector<1x1x32xf32> to vector<32xf32>
    %58 = vector.shape_cast %57 : vector<32xf32> to vector<1x32xf32>
    %59 = vector.broadcast %58 : vector<1x32xf32> to vector<288x32xf32>
    %60 = arith.mulf %55, %59 : vector<288x32xf32>
    %61 = arith.addf %54, %60 : vector<288x32xf32>
    %c2 = arith.constant 2 : index
    %c0_36 = arith.constant 0 : index
    %62 = vector.load %arg12[%c2, %c0_36] : memref<342x32xf32, #tpu.memory_space<vmem>>, vector<288x32xf32>
    %c0_37 = arith.constant 0 : index
    %c2_38 = arith.constant 2 : index
    %c0_39 = arith.constant 0 : index
    %63 = vector.load %arg4[%c0_37, %c2_38, %c0_39] : memref<3x3x32xf32, #tpu.memory_space<vmem>>, vector<1x1x32xf32>
    %64 = vector.shape_cast %63 : vector<1x1x32xf32> to vector<32xf32>
    %65 = vector.shape_cast %64 : vector<32xf32> to vector<1x32xf32>
    %66 = vector.broadcast %65 : vector<1x32xf32> to vector<288x32xf32>
    %67 = arith.mulf %62, %66 : vector<288x32xf32>
    %68 = arith.addf %61, %67 : vector<288x32xf32>
    %c18 = arith.constant 18 : index
    %c0_40 = arith.constant 0 : index
    %69 = vector.load %arg12[%c18, %c0_40] : memref<342x32xf32, #tpu.memory_space<vmem>>, vector<288x32xf32>
    %c1_41 = arith.constant 1 : index
    %c0_42 = arith.constant 0 : index
    %c0_43 = arith.constant 0 : index
    %70 = vector.load %arg4[%c1_41, %c0_42, %c0_43] : memref<3x3x32xf32, #tpu.memory_space<vmem>>, vector<1x1x32xf32>
    %71 = vector.shape_cast %70 : vector<1x1x32xf32> to vector<32xf32>
    %72 = vector.shape_cast %71 : vector<32xf32> to vector<1x32xf32>
    %73 = vector.broadcast %72 : vector<1x32xf32> to vector<288x32xf32>
    %74 = arith.mulf %69, %73 : vector<288x32xf32>
    %75 = arith.addf %68, %74 : vector<288x32xf32>
    %c19_44 = arith.constant 19 : index
    %c0_45 = arith.constant 0 : index
    %76 = vector.load %arg12[%c19_44, %c0_45] : memref<342x32xf32, #tpu.memory_space<vmem>>, vector<288x32xf32>
    %c1_46 = arith.constant 1 : index
    %c1_47 = arith.constant 1 : index
    %c0_48 = arith.constant 0 : index
    %77 = vector.load %arg4[%c1_46, %c1_47, %c0_48] : memref<3x3x32xf32, #tpu.memory_space<vmem>>, vector<1x1x32xf32>
    %78 = vector.shape_cast %77 : vector<1x1x32xf32> to vector<32xf32>
    %79 = vector.shape_cast %78 : vector<32xf32> to vector<1x32xf32>
    %80 = vector.broadcast %79 : vector<1x32xf32> to vector<288x32xf32>
    %81 = arith.mulf %76, %80 : vector<288x32xf32>
    %82 = arith.addf %75, %81 : vector<288x32xf32>
    %c20 = arith.constant 20 : index
    %c0_49 = arith.constant 0 : index
    %83 = vector.load %arg12[%c20, %c0_49] : memref<342x32xf32, #tpu.memory_space<vmem>>, vector<288x32xf32>
    %c1_50 = arith.constant 1 : index
    %c2_51 = arith.constant 2 : index
    %c0_52 = arith.constant 0 : index
    %84 = vector.load %arg4[%c1_50, %c2_51, %c0_52] : memref<3x3x32xf32, #tpu.memory_space<vmem>>, vector<1x1x32xf32>
    %85 = vector.shape_cast %84 : vector<1x1x32xf32> to vector<32xf32>
    %86 = vector.shape_cast %85 : vector<32xf32> to vector<1x32xf32>
    %87 = vector.broadcast %86 : vector<1x32xf32> to vector<288x32xf32>
    %88 = arith.mulf %83, %87 : vector<288x32xf32>
    %89 = arith.addf %82, %88 : vector<288x32xf32>
    %c36 = arith.constant 36 : index
    %c0_53 = arith.constant 0 : index
    %90 = vector.load %arg12[%c36, %c0_53] : memref<342x32xf32, #tpu.memory_space<vmem>>, vector<288x32xf32>
    %c2_54 = arith.constant 2 : index
    %c0_55 = arith.constant 0 : index
    %c0_56 = arith.constant 0 : index
    %91 = vector.load %arg4[%c2_54, %c0_55, %c0_56] : memref<3x3x32xf32, #tpu.memory_space<vmem>>, vector<1x1x32xf32>
    %92 = vector.shape_cast %91 : vector<1x1x32xf32> to vector<32xf32>
    %93 = vector.shape_cast %92 : vector<32xf32> to vector<1x32xf32>
    %94 = vector.broadcast %93 : vector<1x32xf32> to vector<288x32xf32>
    %95 = arith.mulf %90, %94 : vector<288x32xf32>
    %96 = arith.addf %89, %95 : vector<288x32xf32>
    %c37_57 = arith.constant 37 : index
    %c0_58 = arith.constant 0 : index
    %97 = vector.load %arg12[%c37_57, %c0_58] : memref<342x32xf32, #tpu.memory_space<vmem>>, vector<288x32xf32>
    %c2_59 = arith.constant 2 : index
    %c1_60 = arith.constant 1 : index
    %c0_61 = arith.constant 0 : index
    %98 = vector.load %arg4[%c2_59, %c1_60, %c0_61] : memref<3x3x32xf32, #tpu.memory_space<vmem>>, vector<1x1x32xf32>
    %99 = vector.shape_cast %98 : vector<1x1x32xf32> to vector<32xf32>
    %100 = vector.shape_cast %99 : vector<32xf32> to vector<1x32xf32>
    %101 = vector.broadcast %100 : vector<1x32xf32> to vector<288x32xf32>
    %102 = arith.mulf %97, %101 : vector<288x32xf32>
    %103 = arith.addf %96, %102 : vector<288x32xf32>
    %c38 = arith.constant 38 : index
    %c0_62 = arith.constant 0 : index
    %104 = vector.load %arg12[%c38, %c0_62] : memref<342x32xf32, #tpu.memory_space<vmem>>, vector<288x32xf32>
    %c2_63 = arith.constant 2 : index
    %c2_64 = arith.constant 2 : index
    %c0_65 = arith.constant 0 : index
    %105 = vector.load %arg4[%c2_63, %c2_64, %c0_65] : memref<3x3x32xf32, #tpu.memory_space<vmem>>, vector<1x1x32xf32>
    %106 = vector.shape_cast %105 : vector<1x1x32xf32> to vector<32xf32>
    %107 = vector.shape_cast %106 : vector<32xf32> to vector<1x32xf32>
    %108 = vector.broadcast %107 : vector<1x32xf32> to vector<288x32xf32>
    %109 = arith.mulf %104, %108 : vector<288x32xf32>
    %110 = arith.addf %103, %109 : vector<288x32xf32>
    %c0_66 = arith.constant 0 : index
    %c0_67 = arith.constant 0 : index
    %111 = vector.load %arg5[%c0_66, %c0_67] : memref<1x32xf32, #tpu.memory_space<vmem>>, vector<1x32xf32>
    %112 = vector.broadcast %111 : vector<1x32xf32> to vector<288x32xf32>
    %113 = arith.addf %110, %112 : vector<288x32xf32>
    %114 = arith.negf %113 : vector<288x32xf32>
    %115 = math.exp %114 : vector<288x32xf32>
    %cst_68 = arith.constant 1.000000e+00 : f32
    %116 = vector.broadcast %cst_68 : f32 to vector<288x32xf32>
    %117 = arith.addf %116, %115 : vector<288x32xf32>
    %118 = arith.divf %116, %117 : vector<288x32xf32>
    %119 = arith.mulf %113, %118 : vector<288x32xf32>
    %c0_69 = arith.constant 0 : index
    %c0_70 = arith.constant 0 : index
    %120 = vector.load %arg6[%c0_69, %c0_70] : memref<288x1xf32, #tpu.memory_space<vmem>>, vector<288x1xf32>
    %121 = vector.broadcast %120 : vector<288x1xf32> to vector<288x32xf32>
    %122 = arith.mulf %119, %121 : vector<288x32xf32>
    %cst_71 = arith.constant dense<0.000000e+00> : vector<32xf32>
    %123 = vector.multi_reduction <add>, %122, %cst_71 [0] : vector<288x32xf32> to vector<32xf32>
    %124 = vector.shape_cast %123 : vector<32xf32> to vector<1x32xf32>
    %c0_72 = arith.constant 0 : index
    %c0_73 = arith.constant 0 : index
    %125 = vector.load %arg7[%c0_72, %c0_73] : memref<32x2xf32, #tpu.memory_space<vmem>>, vector<32x2xf32>
    %cst_74 = arith.constant dense<0.000000e+00> : vector<1x2xf32>
    %126 = tpu.matmul %124, %125, %cst_74 {dimension_numbers = #tpu.dot_dimension_numbers<[1], [0], [0], [1], [0, 0, 1, 1], [], []>} : vector<1x32xf32>, vector<32x2xf32>, vector<1x2xf32> -> vector<1x2xf32>
    %127 = arith.negf %126 : vector<1x2xf32>
    %128 = math.exp %127 : vector<1x2xf32>
    %cst_75 = arith.constant 1.000000e+00 : f32
    %129 = vector.broadcast %cst_75 : f32 to vector<1x2xf32>
    %130 = arith.addf %129, %128 : vector<1x2xf32>
    %131 = arith.divf %129, %130 : vector<1x2xf32>
    %132 = arith.mulf %126, %131 : vector<1x2xf32>
    %c0_76 = arith.constant 0 : index
    %c0_77 = arith.constant 0 : index
    %133 = vector.load %arg8[%c0_76, %c0_77] : memref<2x32xf32, #tpu.memory_space<vmem>>, vector<2x32xf32>
    %cst_78 = arith.constant dense<0.000000e+00> : vector<1x32xf32>
    %134 = tpu.matmul %132, %133, %cst_78 {dimension_numbers = #tpu.dot_dimension_numbers<[1], [0], [0], [1], [0, 0, 1, 1], [], []>} : vector<1x2xf32>, vector<2x32xf32>, vector<1x32xf32> -> vector<1x32xf32>
    %135 = arith.negf %134 : vector<1x32xf32>
    %136 = math.exp %135 : vector<1x32xf32>
    %cst_79 = arith.constant 1.000000e+00 : f32
    %137 = vector.broadcast %cst_79 : f32 to vector<1x32xf32>
    %138 = arith.addf %137, %136 : vector<1x32xf32>
    %139 = arith.divf %137, %138 : vector<1x32xf32>
    %140 = vector.broadcast %139 : vector<1x32xf32> to vector<288x32xf32>
    %141 = arith.mulf %119, %140 : vector<288x32xf32>
    %c0_80 = arith.constant 0 : index
    %c0_81 = arith.constant 0 : index
    %142 = vector.load %arg9[%c0_80, %c0_81] : memref<32x16xf32, #tpu.memory_space<vmem>>, vector<32x16xf32>
    %cst_82 = arith.constant dense<0.000000e+00> : vector<288x16xf32>
    %143 = tpu.matmul %141, %142, %cst_82 {dimension_numbers = #tpu.dot_dimension_numbers<[1], [0], [0], [1], [0, 0, 1, 1], [], []>} : vector<288x32xf32>, vector<32x16xf32>, vector<288x16xf32> -> vector<288x16xf32>
    %c0_83 = arith.constant 0 : index
    %c0_84 = arith.constant 0 : index
    %144 = vector.load %arg10[%c0_83, %c0_84] : memref<1x16xf32, #tpu.memory_space<vmem>>, vector<1x16xf32>
    %145 = vector.broadcast %144 : vector<1x16xf32> to vector<288x16xf32>
    %146 = arith.addf %143, %145 : vector<288x16xf32>
    %c0_85 = arith.constant 0 : index
    %c0_86 = arith.constant 0 : index
    %c0_87 = arith.constant 0 : index
    %147 = vector.load %arg11[%c0_85, %c0_86, %c0_87] : memref<1x288x16xf32, #tpu.memory_space<vmem>>, vector<1x288x16xf32>
    %148 = vector.shape_cast %147 : vector<1x288x16xf32> to vector<288x16xf32>
    %149 = vector.shape_cast %146 : vector<288x16xf32> to vector<1x288x16xf32>
    tpu.vector_store %arg11[%c0_85, %c0_86, %c0_87], %149 {strides = array<i32>} : memref<1x288x16xf32, #tpu.memory_space<vmem>>, vector<1x288x16xf32>,
    return
  }
  func.func @transform_0(%arg0: i32) -> (i32, i32, i32) {
    %c0_i32 = arith.constant 0 : i32
    %c0_i32_0 = arith.constant 0 : i32
    %c0_i32_1 = arith.constant 0 : i32
    return %arg0, %c0_i32, %c0_i32_0 : i32, i32, i32
  }
  func.func @transform_1(%arg0: i32) -> (i32, i32) {
    %c0_i32 = arith.constant 0 : i32
    %c0_i32_0 = arith.constant 0 : i32
    %c0_i32_1 = arith.constant 0 : i32
    return %c0_i32, %c0_i32_0 : i32, i32
  }
  func.func @transform_2(%arg0: i32) -> (i32, i32) {
    %c0_i32 = arith.constant 0 : i32
    %c0_i32_0 = arith.constant 0 : i32
    %c0_i32_1 = arith.constant 0 : i32
    return %c0_i32, %c0_i32_0 : i32, i32
  }
  func.func @transform_3(%arg0: i32) -> (i32, i32, i32) {
    %c0_i32 = arith.constant 0 : i32
    %c0_i32_0 = arith.constant 0 : i32
    %c0_i32_1 = arith.constant 0 : i32
    %c0_i32_2 = arith.constant 0 : i32
    return %c0_i32, %c0_i32_0, %c0_i32_1 : i32, i32, i32
  }
  func.func @transform_4(%arg0: i32) -> (i32, i32) {
    %c0_i32 = arith.constant 0 : i32
    %c0_i32_0 = arith.constant 0 : i32
    %c0_i32_1 = arith.constant 0 : i32
    return %c0_i32, %c0_i32_0 : i32, i32
  }
  func.func @transform_5(%arg0: i32) -> (i32, i32) {
    %c0_i32 = arith.constant 0 : i32
    %c0_i32_0 = arith.constant 0 : i32
    %c0_i32_1 = arith.constant 0 : i32
    return %c0_i32, %c0_i32_0 : i32, i32
  }
  func.func @transform_6(%arg0: i32) -> (i32, i32) {
    %c0_i32 = arith.constant 0 : i32
    %c0_i32_0 = arith.constant 0 : i32
    %c0_i32_1 = arith.constant 0 : i32
    return %c0_i32, %c0_i32_0 : i32, i32
  }
  func.func @transform_7(%arg0: i32) -> (i32, i32) {
    %c0_i32 = arith.constant 0 : i32
    %c0_i32_0 = arith.constant 0 : i32
    %c0_i32_1 = arith.constant 0 : i32
    return %c0_i32, %c0_i32_0 : i32, i32
  }
  func.func @transform_8(%arg0: i32) -> (i32, i32) {
    %c0_i32 = arith.constant 0 : i32
    %c0_i32_0 = arith.constant 0 : i32
    %c0_i32_1 = arith.constant 0 : i32
    return %c0_i32, %c0_i32_0 : i32, i32
  }
  func.func @transform_9(%arg0: i32) -> (i32, i32) {
    %c0_i32 = arith.constant 0 : i32
    %c0_i32_0 = arith.constant 0 : i32
    %c0_i32_1 = arith.constant 0 : i32
    return %c0_i32, %c0_i32_0 : i32, i32
  }
  func.func @transform_10(%arg0: i32) -> (i32, i32, i32) {
    %c0_i32 = arith.constant 0 : i32
    %c0_i32_0 = arith.constant 0 : i32
    %c0_i32_1 = arith.constant 0 : i32
    return %arg0, %c0_i32, %c0_i32_0 : i32, i32, i32
  }
}

</mosaic_0001>

<llo_original>
// kernel: tpu_custom_call.1
$region0: #{tpu_custom_call.1}
  #allocation0 [shape = 'u32[]', space=smem, size = 0x4, offset = 0x4, fixed_abs, tag = 'smem constant byte address 0x4 - core index']
  #allocation1 [shape = 'u32[144,128]{1,0:T(1,128)}', space=vmem, size = 0x12000, scoped, tag = 'internal scratch']
  #allocation2 [shape = 'f32[342,32]{1,0:T(8,128)}', space=vmem, size = 0x2b000, scoped, tag = 'scratch operand']
  %s0 = inlined_call_operand.vmem [shape: f32[2,256,8], index: 0, kind: input, shape index: {}]
  %s1 = inlined_call_operand.vmem [shape: f32[8,32], index: 1, kind: input, shape index: {}]
  %s2 = inlined_call_operand.vmem [shape: f32[1,32], index: 2, kind: input, shape index: {}]
  %s3 = inlined_call_operand.vmem [shape: f32[3,3,32], index: 3, kind: input, shape index: {}]
  %s4 = inlined_call_operand.vmem [shape: f32[1,32], index: 4, kind: input, shape index: {}]
  %s5 = inlined_call_operand.vmem [shape: f32[288,1], index: 5, kind: input, shape index: {}]
  %s6 = inlined_call_operand.vmem [shape: f32[32,2], index: 6, kind: input, shape index: {}]
  %s7 = inlined_call_operand.vmem [shape: f32[2,32], index: 7, kind: input, shape index: {}]
  %s8 = inlined_call_operand.vmem [shape: f32[32,16], index: 8, kind: input, shape index: {}]
  %s9 = inlined_call_operand.vmem [shape: f32[1,16], index: 9, kind: input, shape index: {}]
  %s10 = inlined_call_operand.vmem [shape: f32[2,288,16], index: 10, kind: output, shape index: {}]
  %s11 = sld [smem:[#allocation0]]
  $region73: #{tpu_custom_call.1} parent=0
    _
  %s13 = ssub.s32 1, %s11
  %s14 = scalar_select 0, %s13, %s11
  loop: start=0, step=1, limit=4
  $region2: #{tpu_custom_call.1} parent=0 // loop_pre_header
    _
  $region3: #{tpu_custom_call.1} parent=0 // loop_header
    %s16 = sphi 0, %s20
    %p17 = scmp.ge.s32.totalorder %s16, 4
    %s26 = sphi 0, %s28
    %s29 = sphi 0, %s26
    %s30 = sphi 0, %s29
    %s46 = sphi 0, %s30
    %s50 = sphi 0, %s50
    %s52 = sphi 0, %s50
    %s53 = sphi 0, %s52
    %s67 = sphi 0, %s53
    %s71 = sphi 0, %s71
    %s73 = sphi 0, %s71
    %s74 = sphi 0, %s73
    %s88 = sphi 0, %s74
    %s92 = sphi 0, %s92
    %s94 = sphi 0, %s92
    %s95 = sphi 0, %s94
    %s109 = sphi 0, %s95
    %s113 = sphi 0, %s113
    %s115 = sphi 0, %s113
    %s116 = sphi 0, %s115
    %s130 = sphi 0, %s116
    %s134 = sphi 0, %s134
    %s136 = sphi 0, %s134
    %s137 = sphi 0, %s136
    %s151 = sphi 0, %s137
    %s155 = sphi 0, %s155
    %s157 = sphi 0, %s155
    %s158 = sphi 0, %s157
    %s172 = sphi 0, %s158
    %s176 = sphi 0, %s176
    %s178 = sphi 0, %s176
    %s179 = sphi 0, %s178
    %s193 = sphi 0, %s179
    %s197 = sphi 0, %s197
    %s199 = sphi 0, %s197
    %s200 = sphi 0, %s199
    %s214 = sphi 0, %s200
    %s218 = sphi 0, %s218
    %s220 = sphi 0, %s218
    %s221 = sphi 0, %s220
    %s235 = sphi 0, %s221
    %s241 = sphi 0, %s243
    %s244 = sphi 0, %s241
    %s245 = sphi 0, %s244
    %s261 = sphi 0, %s245
  $region4: #{tpu_custom_call.1} parent=0 // loop_header_branch
    %19 = sbr.rel (%p17) target = $region8
  $region5: #{tpu_custom_call.1} parent=0 // loop_body
    %s21 = ssub.s32 %s16, 1
    %s22 = ssub.s32 %s16, 2
    %s23 = sadd.s32 %s16, 1
    %s24 = ssub.s32 %s16, %s23
    %p25 = scmp.eq.s32.totalorder %s24, 0
    %s27 = sadd.s32 %s26, 1
    %s28 = scalar_select %p25, %s26, %s27
    %p31 = pneg %p25
    %p32 = scmp.eq.s32.totalorder %s16, 1
    %p33 = por %p31, %p32
    %p34 = scmp.ne.s32.totalorder %s26, %s29
    %p35 = scmp.eq.s32.totalorder %s16, 0
    %p36 = por %p34, %p35
    %p37 = scmp.ne.s32.totalorder %s26, %s29
    %p38 = scmp.eq.s32.totalorder %s21, 1
    %p39 = por %p37, %p38
    %p40 = scmp.ne.s32.totalorder %s29, %s30
    %p41 = scmp.eq.s32.totalorder %s21, 0
    %p42 = por %p40, %p41
    %p43 = scmp.ne.s32.totalorder %s29, %s30
    %p44 = scmp.eq.s32.totalorder %s22, 1
    %p45 = por %p43, %p44
    %p47 = scmp.ne.s32.totalorder %s30, %s46
    %p48 = scmp.eq.s32.totalorder %s22, 0
    %p49 = por %p47, %p48
    %s51 = sadd.s32 %s50, 1
    %p54 = scmp.eq.s32.totalorder %s16, 1
    %p55 = scmp.ne.s32.totalorder %s50, %s52
    %p56 = scmp.eq.s32.totalorder %s16, 0
    %p57 = por %p55, %p56
    %p58 = scmp.ne.s32.totalorder %s50, %s52
    %p59 = scmp.eq.s32.totalorder %s21, 1
    %p60 = por %p58, %p59
    %p61 = scmp.ne.s32.totalorder %s52, %s53
    %p62 = scmp.eq.s32.totalorder %s21, 0
    %p63 = por %p61, %p62
    %p64 = scmp.ne.s32.totalorder %s52, %s53
    %p65 = scmp.eq.s32.totalorder %s22, 1
    %p66 = por %p64, %p65
    %p68 = scmp.ne.s32.totalorder %s53, %s67
    %p69 = scmp.eq.s32.totalorder %s22, 0
    %p70 = por %p68, %p69
    %s72 = sadd.s32 %s71, 1
    %p75 = scmp.eq.s32.totalorder %s16, 1
    %p76 = scmp.ne.s32.totalorder %s71, %s73
    %p77 = scmp.eq.s32.totalorder %s16, 0
    %p78 = por %p76, %p77
    %p79 = scmp.ne.s32.totalorder %s71, %s73
    %p80 = scmp.eq.s32.totalorder %s21, 1
    %p81 = por %p79, %p80
    %p82 = scmp.ne.s32.totalorder %s73, %s74
    %p83 = scmp.eq.s32.totalorder %s21, 0
    %p84 = por %p82, %p83
    %p85 = scmp.ne.s32.totalorder %s73, %s74
    %p86 = scmp.eq.s32.totalorder %s22, 1
    %p87 = por %p85, %p86
    %p89 = scmp.ne.s32.totalorder %s74, %s88
    %p90 = scmp.eq.s32.totalorder %s22, 0
    %p91 = por %p89, %p90
    %s93 = sadd.s32 %s92, 1
    %p96 = scmp.eq.s32.totalorder %s16, 1
    %p97 = scmp.ne.s32.totalorder %s92, %s94
    %p98 = scmp.eq.s32.totalorder %s16, 0
    %p99 = por %p97, %p98
    %p100 = scmp.ne.s32.totalorder %s92, %s94
    %p101 = scmp.eq.s32.totalorder %s21, 1
    %p102 = por %p100, %p101
    %p103 = scmp.ne.s32.totalorder %s94, %s95
    %p104 = scmp.eq.s32.totalorder %s21, 0
    %p105 = por %p103, %p104
    %p106 = scmp.ne.s32.totalorder %s94, %s95
    %p107 = scmp.eq.s32.totalorder %s22, 1
    %p108 = por %p106, %p107
    %p110 = scmp.ne.s32.totalorder %s95, %s109
    %p111 = scmp.eq.s32.totalorder %s22, 0
    %p112 = por %p110, %p111
    %s114 = sadd.s32 %s113, 1
    %p117 = scmp.eq.s32.totalorder %s16, 1
    %p118 = scmp.ne.s32.totalorder %s113, %s115
    %p119 = scmp.eq.s32.totalorder %s16, 0
    %p120 = por %p118, %p119
    %p121 = scmp.ne.s32.totalorder %s113, %s115
    %p122 = scmp.eq.s32.totalorder %s21, 1
    %p123 = por %p121, %p122
    %p124 = scmp.ne.s32.totalorder %s115, %s116
    %p125 = scmp.eq.s32.totalorder %s21, 0
    %p126 = por %p124, %p125
    %p127 = scmp.ne.s32.totalorder %s115, %s116
    %p128 = scmp.eq.s32.totalorder %s22, 1
    %p129 = por %p127, %p128
    %p131 = scmp.ne.s32.totalorder %s116, %s130
    %p132 = scmp.eq.s32.totalorder %s22, 0
    %p133 = por %p131, %p132
    %s135 = sadd.s32 %s134, 1
    %p138 = scmp.eq.s32.totalorder %s16, 1
    %p139 = scmp.ne.s32.totalorder %s134, %s136
    %p140 = scmp.eq.s32.totalorder %s16, 0
    %p141 = por %p139, %p140
    %p142 = scmp.ne.s32.totalorder %s134, %s136
    %p143 = scmp.eq.s32.totalorder %s21, 1
    %p144 = por %p142, %p143
    %p145 = scmp.ne.s32.totalorder %s136, %s137
    %p146 = scmp.eq.s32.totalorder %s21, 0
    %p147 = por %p145, %p146
    %p148 = scmp.ne.s32.totalorder %s136, %s137
    %p149 = scmp.eq.s32.totalorder %s22, 1
    %p150 = por %p148, %p149
    %p152 = scmp.ne.s32.totalorder %s137, %s151
    %p153 = scmp.eq.s32.totalorder %s22, 0
    %p154 = por %p152, %p153
    %s156 = sadd.s32 %s155, 1
    %p159 = scmp.eq.s32.totalorder %s16, 1
    %p160 = scmp.ne.s32.totalorder %s155, %s157
    %p161 = scmp.eq.s32.totalorder %s16, 0
    %p162 = por %p160, %p161
    %p163 = scmp.ne.s32.totalorder %s155, %s157
    %p164 = scmp.eq.s32.totalorder %s21, 1
    %p165 = por %p163, %p164
    %p166 = scmp.ne.s32.totalorder %s157, %s158
    %p167 = scmp.eq.s32.totalorder %s21, 0
    %p168 = por %p166, %p167
    %p169 = scmp.ne.s32.totalorder %s157, %s158
    %p170 = scmp.eq.s32.totalorder %s22, 1
    %p171 = por %p169, %p170
    %p173 = scmp.ne.s32.totalorder %s158, %s172
    %p174 = scmp.eq.s32.totalorder %s22, 0
    %p175 = por %p173, %p174
    %s177 = sadd.s32 %s176, 1
    %p180 = scmp.eq.s32.totalorder %s16, 1
    %p181 = scmp.ne.s32.totalorder %s176, %s178
    %p182 = scmp.eq.s32.totalorder %s16, 0
    %p183 = por %p181, %p182
    %p184 = scmp.ne.s32.totalorder %s176, %s178
    %p185 = scmp.eq.s32.totalorder %s21, 1
    %p186 = por %p184, %p185
    %p187 = scmp.ne.s32.totalorder %s178, %s179
    %p188 = scmp.eq.s32.totalorder %s21, 0
    %p189 = por %p187, %p188
    %p190 = scmp.ne.s32.totalorder %s178, %s179
    %p191 = scmp.eq.s32.totalorder %s22, 1
    %p192 = por %p190, %p191
    %p194 = scmp.ne.s32.totalorder %s179, %s193
    %p195 = scmp.eq.s32.totalorder %s22, 0
    %p196 = por %p194, %p195
    %s198 = sadd.s32 %s197, 1
    %p201 = scmp.eq.s32.totalorder %s16, 1
    %p202 = scmp.ne.s32.totalorder %s197, %s199
    %p203 = scmp.eq.s32.totalorder %s16, 0
    %p204 = por %p202, %p203
    %p205 = scmp.ne.s32.totalorder %s197, %s199
    %p206 = scmp.eq.s32.totalorder %s21, 1
    %p207 = por %p205, %p206
    %p208 = scmp.ne.s32.totalorder %s199, %s200
    %p209 = scmp.eq.s32.totalorder %s21, 0
    %p210 = por %p208, %p209
    %p211 = scmp.ne.s32.totalorder %s199, %s200
    %p212 = scmp.eq.s32.totalorder %s22, 1
    %p213 = por %p211, %p212
    %p215 = scmp.ne.s32.totalorder %s200, %s214
    %p216 = scmp.eq.s32.totalorder %s22, 0
    %p217 = por %p215, %p216
    %s219 = sadd.s32 %s218, 1
    %p222 = scmp.eq.s32.totalorder %s16, 1
    %p223 = scmp.ne.s32.totalorder %s218, %s220
    %p224 = scmp.eq.s32.totalorder %s16, 0
    %p225 = por %p223, %p224
    %p226 = scmp.ne.s32.totalorder %s218, %s220
    %p227 = scmp.eq.s32.totalorder %s21, 1
    %p228 = por %p226, %p227
    %p229 = scmp.ne.s32.totalorder %s220, %s221
    %p230 = scmp.eq.s32.totalorder %s21, 0
    %p231 = por %p229, %p230
    %p232 = scmp.ne.s32.totalorder %s220, %s221
    %p233 = scmp.eq.s32.totalorder %s22, 1
    %p234 = por %p232, %p233
    %p236 = scmp.ne.s32.totalorder %s221, %s235
    %p237 = scmp.eq.s32.totalorder %s22, 0
    %p238 = por %p236, %p237
    %s239 = ssub.s32 %s16, %s23
    %p240 = scmp.eq.s32.totalorder %s239, 0
    %s242 = sadd.s32 %s241, 1
    %s243 = scalar_select %p240, %s241, %s242
    %p246 = pneg %p240
    %p247 = scmp.eq.s32.totalorder %s16, 1
    %p248 = por %p246, %p247
    %p249 = scmp.ne.s32.totalorder %s241, %s244
    %p250 = scmp.eq.s32.totalorder %s16, 0
    %p251 = por %p249, %p250
    %p252 = scmp.ne.s32.totalorder %s241, %s244
    %p253 = scmp.eq.s32.totalorder %s21, 1
    %p254 = por %p252, %p253
    %p255 = scmp.ne.s32.totalorder %s244, %s245
    %p256 = scmp.eq.s32.totalorder %s21, 0
    %p257 = por %p255, %p256
    %p258 = scmp.ne.s32.totalorder %s244, %s245
    %p259 = scmp.eq.s32.totalorder %s22, 1
    %p260 = por %p258, %p259
    %p262 = scmp.ne.s32.totalorder %s245, %s261
    %p263 = scmp.eq.s32.totalorder %s22, 0
    %p264 = por %p262, %p263
    %p265 = scmp.le.s32.totalorder 1, %s16
    %p266 = scmp.lt.s32.totalorder %s16, 3
    %p267 = pnand %p265, %p266
    %p268 = pneg %p267
    // Predicated region
    $region9: #{tpu_custom_call.1} parent=5 // pred_check
      _
    $region10: #{tpu_custom_call.1} parent=5 // pred_check_branch
      %270 = sbr.rel (%p267) target = $region12
    $region11: #{tpu_custom_call.1} parent=5 // pred_region
      %s271 = ssub.s32 %s16, 1
      // Predicated region
      $region13: #{tpu_custom_call.1} parent=11 // pred_check
        %p272 = pneg %p63
      $region14: #{tpu_custom_call.1} parent=11 // pred_check_branch
        %274 = sbr.rel (%p272) target = $region16
      $region15: #{tpu_custom_call.1} parent=11 // pred_region
        _
      $region16: #{tpu_custom_call.1} parent=11 // pred_fallthru
        _
      // Predicated region
      $region17: #{tpu_custom_call.1} parent=11 // pred_check
        %p275 = pneg %p84
      $region18: #{tpu_custom_call.1} parent=11 // pred_check_branch
        %277 = sbr.rel (%p275) target = $region20
      $region19: #{tpu_custom_call.1} parent=11 // pred_region
        _
      $region20: #{tpu_custom_call.1} parent=11 // pred_fallthru
        _
      // Predicated region
      $region21: #{tpu_custom_call.1} parent=11 // pred_check
        %p278 = pneg %p105
      $region22: #{tpu_custom_call.1} parent=11 // pred_check_branch
        %280 = sbr.rel (%p278) target = $region24
      $region23: #{tpu_custom_call.1} parent=11 // pred_region
        _
      $region24: #{tpu_custom_call.1} parent=11 // pred_fallthru
        _
      // Predicated region
      $region25: #{tpu_custom_call.1} parent=11 // pred_check
        %p281 = pneg %p126
      $region26: #{tpu_custom_call.1} parent=11 // pred_check_branch
        %283 = sbr.rel (%p281) target = $region28
      $region27: #{tpu_custom_call.1} parent=11 // pred_region
        _
      $region28: #{tpu_custom_call.1} parent=11 // pred_fallthru
        _
      // Predicated region
      $region29: #{tpu_custom_call.1} parent=11 // pred_check
        %p284 = pneg %p147
      $region30: #{tpu_custom_call.1} parent=11 // pred_check_branch
        %286 = sbr.rel (%p284) target = $region32
      $region31: #{tpu_custom_call.1} parent=11 // pred_region
        _
      $region32: #{tpu_custom_call.1} parent=11 // pred_fallthru
        _
      // Predicated region
      $region33: #{tpu_custom_call.1} parent=11 // pred_check
        %p287 = pneg %p168
      $region34: #{tpu_custom_call.1} parent=11 // pred_check_branch
        %289 = sbr.rel (%p287) target = $region36
      $region35: #{tpu_custom_call.1} parent=11 // pred_region
        _
      $region36: #{tpu_custom_call.1} parent=11 // pred_fallthru
        _
      // Predicated region
      $region37: #{tpu_custom_call.1} parent=11 // pred_check
        %p290 = pneg %p189
      $region38: #{tpu_custom_call.1} parent=11 // pred_check_branch
        %292 = sbr.rel (%p290) target = $region40
      $region39: #{tpu_custom_call.1} parent=11 // pred_region
        _
      $region40: #{tpu_custom_call.1} parent=11 // pred_fallthru
        _
      // Predicated region
      $region41: #{tpu_custom_call.1} parent=11 // pred_check
        %p293 = pneg %p210
      $region42: #{tpu_custom_call.1} parent=11 // pred_check_branch
        %295 = sbr.rel (%p293) target = $region44
      $region43: #{tpu_custom_call.1} parent=11 // pred_region
        _
      $region44: #{tpu_custom_call.1} parent=11 // pred_fallthru
        _
      // Predicated region
      $region45: #{tpu_custom_call.1} parent=11 // pred_check
        %p296 = pneg %p231
      $region46: #{tpu_custom_call.1} parent=11 // pred_check_branch
        %298 = sbr.rel (%p296) target = $region48
      $region47: #{tpu_custom_call.1} parent=11 // pred_region
        _
      $region48: #{tpu_custom_call.1} parent=11 // pred_fallthru
        _
    $region12: #{tpu_custom_call.1} parent=5 // pred_fallthru
      _
    %p299 = scmp.lt.s32.totalorder %s16, 2
    // Predicated region
    $region49: #{tpu_custom_call.1} parent=5 // pred_check
      %p300 = pneg %p299
    $region50: #{tpu_custom_call.1} parent=5 // pred_check_branch
      %302 = sbr.rel (%p300) target = $region52
    $region51: #{tpu_custom_call.1} parent=5 // pred_region
      // Predicated region
      $region53: #{tpu_custom_call.1} parent=51 // pred_check
        %p303 = pneg %p36
      $region54: #{tpu_custom_call.1} parent=51 // pred_check_branch
        %305 = sbr.rel (%p303) target = $region56
      $region55: #{tpu_custom_call.1} parent=51 // pred_region
        %p306 = scmp.lt.s32.totalorder %s16, 1
        %s307 = scalar_select %p306, %s16, 1
        %s308 = smul.addr %s307, 32
        %s309 = smul.addr %s308, 8
        %s310 = scalar_lea.vmem %s0, %s309
      $region56: #{tpu_custom_call.1} parent=51 // pred_fallthru
        _
    $region52: #{tpu_custom_call.1} parent=5 // pred_fallthru
      _
    %p311 = scmp.le.s32.totalorder 1, %s16
    %p312 = scmp.lt.s32.totalorder %s16, 3
    %p313 = pnand %p311, %p312
    %p314 = pneg %p313
    // Predicated region
    $region57: #{tpu_custom_call.1} parent=5 // pred_check
      _
    $region58: #{tpu_custom_call.1} parent=5 // pred_check_branch
      %316 = sbr.rel (%p313) target = $region60
    $region59: #{tpu_custom_call.1} parent=5 // pred_region
      %s317 = ssub.s32 %s16, 1
      %p318 = scmp.lt.s32.totalorder %s21, 1
      %s319 = scalar_select %p318, %s21, 1
      %s320 = smul.addr %s319, 32
      %s321 = smul.addr %s320, 8
      %s322 = scalar_lea.vmem %s0, %s321
      %p323 = pneg %p42
      %p324 = pneg %p39
      %p325 = pneg %p63
      %p326 = pneg %p60
      %p327 = pneg %p84
      %p328 = pneg %p81
      %p329 = pneg %p105
      %p330 = pneg %p102
      %p331 = pneg %p126
      %p332 = pneg %p123
      %p333 = pneg %p147
      %p334 = pneg %p144
      %p335 = pneg %p168
      %p336 = pneg %p165
      %p337 = pneg %p189
      %p338 = pneg %p186
      %p339 = pneg %p210
      %p340 = pneg %p207
      %p341 = pneg %p231
      %p342 = pneg %p228
      %p343 = pneg %p257
      %p344 = pneg %p254
      %p345 = scmp.lt.s32.totalorder %s21, 1
      %s346 = scalar_select %p345, %s21, 1
      %s347 = smul.addr %s346, 36
      %s348 = smul.addr %s347, 8
      %s349 = scalar_lea.vmem %s10, %s348
      %p350 = scmp.lt.s32.totalorder %s21, 1
      %s351 = scalar_select %p350, %s21, 1
      %s352 = smul.addr %s351, 32
      %s353 = smul.addr %s352, 8
      %s354 = scalar_lea.vmem %s0, %s353
      %p355 = scmp.lt.s32.totalorder %s21, 1
      %s356 = scalar_select %p355, %s21, 1
      %s357 = smul.addr %s356, 36
      %s358 = smul.addr %s357, 8
      %s359 = scalar_lea.vmem %s10, %s358
      %v360 = vld [vmem:[%s354] sm:$0xff]
      %v361 = vld [vmem:[%s354 + $0x8] sm:$0xff]
      %v362 = vld [vmem:[%s354 + $0x10] sm:$0xff]
      %v363 = vld [vmem:[%s354 + $0x18] sm:$0xff]
      %v364 = vld [vmem:[%s354 + $0x20] sm:$0xff]
      %v365 = vld [vmem:[%s354 + $0x28] sm:$0xff]
      %v366 = vld [vmem:[%s354 + $0x30] sm:$0xff]
      %v367 = vld [vmem:[%s354 + $0x38] sm:$0xff]
      %v368 = vld [vmem:[%s354 + $0x40] sm:$0xff]
      %v369 = vld [vmem:[%s354 + $0x48] sm:$0xff]
      %v370 = vld [vmem:[%s354 + $0x50] sm:$0xff]
      %v371 = vld [vmem:[%s354 + $0x58] sm:$0xff]
      %v372 = vld [vmem:[%s354 + $0x60] sm:$0xff]
      %v373 = vld [vmem:[%s354 + $0x68] sm:$0xff]
      %v374 = vld [vmem:[%s354 + $0x70] sm:$0xff]
      %v375 = vld [vmem:[%s354 + $0x78] sm:$0xff]
      %v376 = vld [vmem:[%s354 + $0x80] sm:$0xff]
      %v377 = vld [vmem:[%s354 + $0x88] sm:$0xff]
      %v378 = vld [vmem:[%s354 + $0x90] sm:$0xff]
      %v379 = vld [vmem:[%s354 + $0x98] sm:$0xff]
      %v380 = vld [vmem:[%s354 + $0xa0] sm:$0xff]
      %v381 = vld [vmem:[%s354 + $0xa8] sm:$0xff]
      %v382 = vld [vmem:[%s354 + $0xb0] sm:$0xff]
      %v383 = vld [vmem:[%s354 + $0xb8] sm:$0xff]
      %v384 = vld [vmem:[%s354 + $0xc0] sm:$0xff]
      %v385 = vld [vmem:[%s354 + $0xc8] sm:$0xff]
      %v386 = vld [vmem:[%s354 + $0xd0] sm:$0xff]
      %v387 = vld [vmem:[%s354 + $0xd8] sm:$0xff]
      %v388 = vld [vmem:[%s354 + $0xe0] sm:$0xff]
      %v389 = vld [vmem:[%s354 + $0xe8] sm:$0xff]
      %v390 = vld [vmem:[%s354 + $0xf0] sm:$0xff]
      %v391 = vld [vmem:[%s354 + $0xf8] sm:$0xff]
      %v392 = vld [vmem:[%s1] sm:$0xff]
      %v393 = vld [vmem:[%s2] sm:$0x1]
      %v395 = vlaneseq
      %v396 = vshrl.u32 %v395, 7
      %v397 = vsub.s32 0, %v396
      %v398 = vrot.slane %v393, %v397
      %vm400 = vcmask 64512
      %v402 = vsel %vm400, %v360, 0
      %v405 = vsel %vm400, %v361, 0
      %v408 = vsel %vm400, %v362, 0
      %v411 = vsel %vm400, %v363, 0
      %v414 = vsel %vm400, %v364, 0
      %v417 = vsel %vm400, %v365, 0
      %v420 = vsel %vm400, %v366, 0
      %v423 = vsel %vm400, %v367, 0
      %v426 = vsel %vm400, %v368, 0
      %v429 = vsel %vm400, %v369, 0
      %v432 = vsel %vm400, %v370, 0
      %v435 = vsel %vm400, %v371, 0
      %v438 = vsel %vm400, %v372, 0
      %v441 = vsel %vm400, %v373, 0
      %v444 = vsel %vm400, %v374, 0
      %v447 = vsel %vm400, %v375, 0
      %v450 = vsel %vm400, %v376, 0
      %v453 = vsel %vm400, %v377, 0
      %v456 = vsel %vm400, %v378, 0
      %v459 = vsel %vm400, %v379, 0
      %v462 = vsel %vm400, %v380, 0
      %v465 = vsel %vm400, %v381, 0
      %v468 = vsel %vm400, %v382, 0
      %v471 = vsel %vm400, %v383, 0
      %v474 = vsel %vm400, %v384, 0
      %v477 = vsel %vm400, %v385, 0
      %v480 = vsel %vm400, %v386, 0
      %v483 = vsel %vm400, %v387, 0
      %v486 = vsel %vm400, %v388, 0
      %v489 = vsel %vm400, %v389, 0
      %v492 = vsel %vm400, %v390, 0
      %v495 = vsel %vm400, %v391, 0
      %497 = vmatprep.subr.mxu0 0.0
      %498 = vmatpush1.msra.mxu0 %v392
      %499 = vmatprep.subr.mxu0 0.0
      %500 = vmatpush1.msra.mxu0 0.0
      %501 = vmatprep.subr.mxu0 0.0
      %502 = vmatpush1.msra.mxu0 0.0
      %503 = vmatprep.subr.mxu0 0.0
      %504 = vmatpush1.msra.mxu0 0.0
      %505 = vmatprep.subr.mxu0 0.0
      %506 = vmatpush1.msra.mxu0 0.0
      %507 = vmatprep.subr.mxu0 0.0
      %508 = vmatpush1.msra.mxu0 0.0
      %509 = vmatprep.subr.mxu0 0.0
      %510 = vmatpush1.msra.mxu0 0.0
      %511 = vmatprep.subr.mxu0 0.0
      %512 = vmatpush1.msra.mxu0 0.0
      %513 = vmatprep.subr.mxu0 0.0
      %514 = vmatpush1.msra.mxu0 0.0
      %515 = vmatprep.subr.mxu0 0.0
      %516 = vmatpush1.msra.mxu0 0.0
      %517 = vmatprep.subr.mxu0 0.0
      %518 = vmatpush1.msra.mxu0 0.0
      %519 = vmatprep.subr.mxu0 0.0
      %520 = vmatpush1.msra.mxu0 0.0
      %521 = vmatprep.subr.mxu0 0.0
      %522 = vmatpush1.msra.mxu0 0.0
      %523 = vmatprep.subr.mxu0 0.0
      %524 = vmatpush1.msra.mxu0 0.0
      %525 = vmatprep.subr.mxu0 0.0
      %526 = vmatpush1.msra.mxu0 0.0
      %527 = vmatprep.subr.mxu0 0.0
      %528 = vmatpush1.msra.mxu0 0.0
      %529 = vmatprep.subr.mxu0 0.0
      %530 = vmatpush1.msra.mxu0 0.0
      %531 = vmatprep.subr.mxu0 0.0
      %532 = vmatpush1.msra.mxu0 0.0
      %533 = vmatprep.subr.mxu0 0.0
      %534 = vmatpush1.msra.mxu0 0.0
      %535 = vmatprep.subr.mxu0 0.0
      %536 = vmatpush1.msra.mxu0 0.0
      %537 = vmatprep.subr.mxu0 0.0
      %538 = vmatpush1.msra.mxu0 0.0
      %539 = vmatprep.subr.mxu0 0.0
      %540 = vmatpush1.msra.mxu0 0.0
      %541 = vmatprep.subr.mxu0 0.0
      %542 = vmatpush1.msra.mxu0 0.0
      %543 = vmatprep.subr.mxu0 0.0
      %544 = vmatpush1.msra.mxu0 0.0
      %545 = vmatprep.subr.mxu0 0.0
      %546 = vmatpush1.msra.mxu0 0.0
      %547 = vmatprep.subr.mxu0 0.0
      %548 = vmatpush1.msra.mxu0 0.0
      %549 = vmatprep.subr.mxu0 0.0
      %550 = vmatpush1.msra.mxu0 0.0
      %551 = vmatprep.subr.mxu0 0.0
      %552 = vmatpush1.msra.mxu0 0.0
      %553 = vmatprep.subr.mxu0 0.0
      %554 = vmatpush1.msra.mxu0 0.0
      %555 = vmatprep.subr.mxu0 0.0
      %556 = vmatpush1.msra.mxu0 0.0
      %557 = vmatprep.subr.mxu0 0.0
      %558 = vmatpush1.msra.mxu0 0.0
      %559 = vmatprep.subr.mxu0 0.0
      %560 = vmatpush1.msra.mxu0 0.0
      %561 = vmatprep.mubr.f32.mxu0 0.0
      %562 = vmatmul.mubr.f32.gmra.mrb[0].mxu0 %v402
      %v563 = vpop.f32.mrb[0].mxu0
      %v564 = vadd.f32 %v398, %v563
      %v565 = vpop.f32.mrb[0].mxu0
      %566 = vmatprep.mubr.f32.mxu0 0.0
      %567 = vmatmul.mubr.f32.gmra.mrb[0].mxu0 %v405
      %v568 = vpop.f32.mrb[0].mxu0
      %v569 = vadd.f32 %v398, %v568
      %v570 = vpop.f32.mrb[0].mxu0
      %571 = vmatprep.mubr.f32.mxu0 0.0
      %572 = vmatmul.mubr.f32.gmra.mrb[0].mxu0 %v408
      %v573 = vpop.f32.mrb[0].mxu0
      %v574 = vadd.f32 %v398, %v573
      %v575 = vpop.f32.mrb[0].mxu0
      %576 = vmatprep.mubr.f32.mxu0 0.0
      %577 = vmatmul.mubr.f32.gmra.mrb[0].mxu0 %v411
      %v578 = vpop.f32.mrb[0].mxu0
      %v579 = vadd.f32 %v398, %v578
      %v580 = vpop.f32.mrb[0].mxu0
      %581 = vmatprep.mubr.f32.mxu0 0.0
      %582 = vmatmul.mubr.f32.gmra.mrb[0].mxu0 %v414
      %v583 = vpop.f32.mrb[0].mxu0
      %v584 = vadd.f32 %v398, %v583
      %v585 = vpop.f32.mrb[0].mxu0
      %586 = vmatprep.mubr.f32.mxu0 0.0
      %587 = vmatmul.mubr.f32.gmra.mrb[0].mxu0 %v417
      %v588 = vpop.f32.mrb[0].mxu0
      %v589 = vadd.f32 %v398, %v588
      %v590 = vpop.f32.mrb[0].mxu0
      %591 = vmatprep.mubr.f32.mxu0 0.0
      %592 = vmatmul.mubr.f32.gmra.mrb[0].mxu0 %v420
      %v593 = vpop.f32.mrb[0].mxu0
      %v594 = vadd.f32 %v398, %v593
      %v595 = vpop.f32.mrb[0].mxu0
      %596 = vmatprep.mubr.f32.mxu0 0.0
      %597 = vmatmul.mubr.f32.gmra.mrb[0].mxu0 %v423
      %v598 = vpop.f32.mrb[0].mxu0
      %v599 = vadd.f32 %v398, %v598
      %v600 = vpop.f32.mrb[0].mxu0
      %601 = vmatprep.mubr.f32.mxu0 0.0
      %602 = vmatmul.mubr.f32.gmra.mrb[0].mxu0 %v426
      %v603 = vpop.f32.mrb[0].mxu0
      %v604 = vadd.f32 %v398, %v603
      %v605 = vpop.f32.mrb[0].mxu0
      %606 = vmatprep.mubr.f32.mxu0 0.0
      %607 = vmatmul.mubr.f32.gmra.mrb[0].mxu0 %v429
      %v608 = vpop.f32.mrb[0].mxu0
      %v609 = vadd.f32 %v398, %v608
      %v610 = vpop.f32.mrb[0].mxu0
      %611 = vmatprep.mubr.f32.mxu0 0.0
      %612 = vmatmul.mubr.f32.gmra.mrb[0].mxu0 %v432
      %v613 = vpop.f32.mrb[0].mxu0
      %v614 = vadd.f32 %v398, %v613
      %v615 = vpop.f32.mrb[0].mxu0
      %616 = vmatprep.mubr.f32.mxu0 0.0
      %617 = vmatmul.mubr.f32.gmra.mrb[0].mxu0 %v435
      %v618 = vpop.f32.mrb[0].mxu0
      %v619 = vadd.f32 %v398, %v618
      %v620 = vpop.f32.mrb[0].mxu0
      %621 = vmatprep.mubr.f32.mxu0 0.0
      %622 = vmatmul.mubr.f32.gmra.mrb[0].mxu0 %v438
      %v623 = vpop.f32.mrb[0].mxu0
      %v624 = vadd.f32 %v398, %v623
      %v625 = vpop.f32.mrb[0].mxu0
      %626 = vmatprep.mubr.f32.mxu0 0.0
      %627 = vmatmul.mubr.f32.gmra.mrb[0].mxu0 %v441
      %v628 = vpop.f32.mrb[0].mxu0
      %v629 = vadd.f32 %v398, %v628
      %v630 = vpop.f32.mrb[0].mxu0
      %631 = vmatprep.mubr.f32.mxu0 0.0
      %632 = vmatmul.mubr.f32.gmra.mrb[0].mxu0 %v444
      %v633 = vpop.f32.mrb[0].mxu0
      %v634 = vadd.f32 %v398, %v633
      %v635 = vpop.f32.mrb[0].mxu0
      %636 = vmatprep.mubr.f32.mxu0 0.0
      %637 = vmatmul.mubr.f32.gmra.mrb[0].mxu0 %v447
      %v638 = vpop.f32.mrb[0].mxu0
      %v639 = vadd.f32 %v398, %v638
      %v640 = vpop.f32.mrb[0].mxu0
      %641 = vmatprep.mubr.f32.mxu0 0.0
      %642 = vmatmul.mubr.f32.gmra.mrb[0].mxu0 %v450
      %v643 = vpop.f32.mrb[0].mxu0
      %v644 = vadd.f32 %v398, %v643
      %v645 = vpop.f32.mrb[0].mxu0
      %646 = vmatprep.mubr.f32.mxu0 0.0
      %647 = vmatmul.mubr.f32.gmra.mrb[0].mxu0 %v453
      %v648 = vpop.f32.mrb[0].mxu0
      %v649 = vadd.f32 %v398, %v648
      %v650 = vpop.f32.mrb[0].mxu0
      %651 = vmatprep.mubr.f32.mxu0 0.0
      %652 = vmatmul.mubr.f32.gmra.mrb[0].mxu0 %v456
      %v653 = vpop.f32.mrb[0].mxu0
      %v654 = vadd.f32 %v398, %v653
      %v655 = vpop.f32.mrb[0].mxu0
      %656 = vmatprep.mubr.f32.mxu0 0.0
      %657 = vmatmul.mubr.f32.gmra.mrb[0].mxu0 %v459
      %v658 = vpop.f32.mrb[0].mxu0
      %v659 = vadd.f32 %v398, %v658
      %v660 = vpop.f32.mrb[0].mxu0
      %661 = vmatprep.mubr.f32.mxu0 0.0
      %662 = vmatmul.mubr.f32.gmra.mrb[0].mxu0 %v462
      %v663 = vpop.f32.mrb[0].mxu0
      %v664 = vadd.f32 %v398, %v663
      %v665 = vpop.f32.mrb[0].mxu0
      %666 = vmatprep.mubr.f32.mxu0 0.0
      %667 = vmatmul.mubr.f32.gmra.mrb[0].mxu0 %v465
      %v668 = vpop.f32.mrb[0].mxu0
      %v669 = vadd.f32 %v398, %v668
      %v670 = vpop.f32.mrb[0].mxu0
      %671 = vmatprep.mubr.f32.mxu0 0.0
      %672 = vmatmul.mubr.f32.gmra.mrb[0].mxu0 %v468
      %v673 = vpop.f32.mrb[0].mxu0
      %v674 = vadd.f32 %v398, %v673
      %v675 = vpop.f32.mrb[0].mxu0
      %676 = vmatprep.mubr.f32.mxu0 0.0
      %677 = vmatmul.mubr.f32.gmra.mrb[0].mxu0 %v471
      %v678 = vpop.f32.mrb[0].mxu0
      %v679 = vadd.f32 %v398, %v678
      %v680 = vpop.f32.mrb[0].mxu0
      %681 = vmatprep.mubr.f32.mxu0 0.0
      %682 = vmatmul.mubr.f32.gmra.mrb[0].mxu0 %v474
      %v683 = vpop.f32.mrb[0].mxu0
      %v684 = vadd.f32 %v398, %v683
      %v685 = vpop.f32.mrb[0].mxu0
      %686 = vmatprep.mubr.f32.mxu0 0.0
      %687 = vmatmul.mubr.f32.gmra.mrb[0].mxu0 %v477
      %v688 = vpop.f32.mrb[0].mxu0
      %v689 = vadd.f32 %v398, %v688
      %v690 = vpop.f32.mrb[0].mxu0
      %691 = vmatprep.mubr.f32.mxu0 0.0
      %692 = vmatmul.mubr.f32.gmra.mrb[0].mxu0 %v480
      %v693 = vpop.f32.mrb[0].mxu0
      %v694 = vadd.f32 %v398, %v693
      %v695 = vpop.f32.mrb[0].mxu0
      %696 = vmatprep.mubr.f32.mxu0 0.0
      %697 = vmatmul.mubr.f32.gmra.mrb[0].mxu0 %v483
      %v698 = vpop.f32.mrb[0].mxu0
      %v699 = vadd.f32 %v398, %v698
      %v700 = vpop.f32.mrb[0].mxu0
      %701 = vmatprep.mubr.f32.mxu0 0.0
      %702 = vmatmul.mubr.f32.gmra.mrb[0].mxu0 %v486
      %v703 = vpop.f32.mrb[0].mxu0
      %v704 = vadd.f32 %v398, %v703
      %v705 = vpop.f32.mrb[0].mxu0
      %706 = vmatprep.mubr.f32.mxu0 0.0
      %707 = vmatmul.mubr.f32.gmra.mrb[0].mxu0 %v489
      %v708 = vpop.f32.mrb[0].mxu0
      %v709 = vadd.f32 %v398, %v708
      %v710 = vpop.f32.mrb[0].mxu0
      %711 = vmatprep.mubr.f32.mxu0 0.0
      %712 = vmatmul.mubr.f32.gmra.mrb[0].mxu0 %v492
      %v713 = vpop.f32.mrb[0].mxu0
      %v714 = vadd.f32 %v398, %v713
      %v715 = vpop.f32.mrb[0].mxu0
      %716 = vmatprep.mubr.f32.mxu0 0.0
      %717 = vmatmul.mubr.f32.gmra.mrb[0].mxu0 %v495
      %v718 = vpop.f32.mrb[0].mxu0
      %v719 = vadd.f32 %v398, %v718
      %v720 = vpop.f32.mrb[0].mxu0
      %721 = vdwg.mxu0
      %v722 = vxor.u32 %v564, 2147483648
      %v723 = vxor.u32 %v569, 2147483648
      %v724 = vxor.u32 %v574, 2147483648
      %v725 = vxor.u32 %v579, 2147483648
      %v726 = vxor.u32 %v584, 2147483648
      %v727 = vxor.u32 %v589, 2147483648
      %v728 = vxor.u32 %v594, 2147483648
      %v729 = vxor.u32 %v599, 2147483648
      %v730 = vxor.u32 %v604, 2147483648
      %v731 = vxor.u32 %v609, 2147483648
      %v732 = vxor.u32 %v614, 2147483648
      %v733 = vxor.u32 %v619, 2147483648
      %v734 = vxor.u32 %v624, 2147483648
      %v735 = vxor.u32 %v629, 2147483648
      %v736 = vxor.u32 %v634, 2147483648
      %v737 = vxor.u32 %v639, 2147483648
      %v738 = vxor.u32 %v644, 2147483648
      %v739 = vxor.u32 %v649, 2147483648
      %v740 = vxor.u32 %v654, 2147483648
      %v741 = vxor.u32 %v659, 2147483648
      %v742 = vxor.u32 %v664, 2147483648
      %v743 = vxor.u32 %v669, 2147483648
      %v744 = vxor.u32 %v674, 2147483648
      %v745 = vxor.u32 %v679, 2147483648
      %v746 = vxor.u32 %v684, 2147483648
      %v747 = vxor.u32 %v689, 2147483648
      %v748 = vxor.u32 %v694, 2147483648
      %v749 = vxor.u32 %v699, 2147483648
      %v750 = vxor.u32 %v704, 2147483648
      %v751 = vxor.u32 %v709, 2147483648
      %v752 = vxor.u32 %v714, 2147483648
      %v753 = vxor.u32 %v719, 2147483648
      %v754 = vmul.f32 %v722, 1.442695
      %v755 = vpow.pop %v754
      %v756 = vmul.f32 %v723, 1.442695
      %v757 = vpow.pop %v756
      %v758 = vmul.f32 %v724, 1.442695
      %v759 = vpow.pop %v758
      %v760 = vmul.f32 %v725, 1.442695
      %v761 = vpow.pop %v760
      %v762 = vmul.f32 %v726, 1.442695
      %v763 = vpow.pop %v762
      %v764 = vmul.f32 %v727, 1.442695
      %v765 = vpow.pop %v764
      %v766 = vmul.f32 %v728, 1.442695
      %v767 = vpow.pop %v766
      %v768 = vmul.f32 %v729, 1.442695
      %v769 = vpow.pop %v768
      %v770 = vmul.f32 %v730, 1.442695
      %v771 = vpow.pop %v770
      %v772 = vmul.f32 %v731, 1.442695
      %v773 = vpow.pop %v772
      %v774 = vmul.f32 %v732, 1.442695
      %v775 = vpow.pop %v774
      %v776 = vmul.f32 %v733, 1.442695
      %v777 = vpow.pop %v776
      %v778 = vmul.f32 %v734, 1.442695
      %v779 = vpow.pop %v778
      %v780 = vmul.f32 %v735, 1.442695
      %v781 = vpow.pop %v780
      %v782 = vmul.f32 %v736, 1.442695
      %v783 = vpow.pop %v782
      %v784 = vmul.f32 %v737, 1.442695
      %v785 = vpow.pop %v784
      %v786 = vmul.f32 %v738, 1.442695
      %v787 = vpow.pop %v786
      %v788 = vmul.f32 %v739, 1.442695
      %v789 = vpow.pop %v788
      %v790 = vmul.f32 %v740, 1.442695
      %v791 = vpow.pop %v790
      %v792 = vmul.f32 %v741, 1.442695
      %v793 = vpow.pop %v792
      %v794 = vmul.f32 %v742, 1.442695
      %v795 = vpow.pop %v794
      %v796 = vmul.f32 %v743, 1.442695
      %v797 = vpow.pop %v796
      %v798 = vmul.f32 %v744, 1.442695
      %v799 = vpow.pop %v798
      %v800 = vmul.f32 %v745, 1.442695
      %v801 = vpow.pop %v800
      %v802 = vmul.f32 %v746, 1.442695
      %v803 = vpow.pop %v802
      %v804 = vmul.f32 %v747, 1.442695
      %v805 = vpow.pop %v804
      %v806 = vmul.f32 %v748, 1.442695
      %v807 = vpow.pop %v806
      %v808 = vmul.f32 %v749, 1.442695
      %v809 = vpow.pop %v808
      %v810 = vmul.f32 %v750, 1.442695
      %v811 = vpow.pop %v810
      %v812 = vmul.f32 %v751, 1.442695
      %v813 = vpow.pop %v812
      %v814 = vmul.f32 %v752, 1.442695
      %v815 = vpow.pop %v814
      %v816 = vmul.f32 %v753, 1.442695
      %v817 = vpow.pop %v816
      %v818 = vadd.f32 %v755, 1.0
      %v819 = vadd.f32 %v757, 1.0
      %v820 = vadd.f32 %v759, 1.0
      %v821 = vadd.f32 %v761, 1.0
      %v822 = vadd.f32 %v763, 1.0
      %v823 = vadd.f32 %v765, 1.0
      %v824 = vadd.f32 %v767, 1.0
      %v825 = vadd.f32 %v769, 1.0
      %v826 = vadd.f32 %v771, 1.0
      %v827 = vadd.f32 %v773, 1.0
      %v828 = vadd.f32 %v775, 1.0
      %v829 = vadd.f32 %v777, 1.0
      %v830 = vadd.f32 %v779, 1.0
      %v831 = vadd.f32 %v781, 1.0
      %v832 = vadd.f32 %v783, 1.0
      %v833 = vadd.f32 %v785, 1.0
      %v834 = vadd.f32 %v787, 1.0
      %v835 = vadd.f32 %v789, 1.0
      %v836 = vadd.f32 %v791, 1.0
      %v837 = vadd.f32 %v793, 1.0
      %v838 = vadd.f32 %v795, 1.0
      %v839 = vadd.f32 %v797, 1.0
      %v840 = vadd.f32 %v799, 1.0
      %v841 = vadd.f32 %v801, 1.0
      %v842 = vadd.f32 %v803, 1.0
      %v843 = vadd.f32 %v805, 1.0
      %v844 = vadd.f32 %v807, 1.0
      %v845 = vadd.f32 %v809, 1.0
      %v846 = vadd.f32 %v811, 1.0
      %v847 = vadd.f32 %v813, 1.0
      %v848 = vadd.f32 %v815, 1.0
      %v849 = vadd.f32 %v817, 1.0
      %v850 = vrcp.pop %v818
      %v851 = vmul.f32 1.0, %v850
      %v852 = vrcp.pop %v819
      %v853 = vmul.f32 1.0, %v852
      %v854 = vrcp.pop %v820
      %v855 = vmul.f32 1.0, %v854
      %v856 = vrcp.pop %v821
      %v857 = vmul.f32 1.0, %v856
      %v858 = vrcp.pop %v822
      %v859 = vmul.f32 1.0, %v858
      %v860 = vrcp.pop %v823
      %v861 = vmul.f32 1.0, %v860
      %v862 = vrcp.pop %v824
      %v863 = vmul.f32 1.0, %v862
      %v864 = vrcp.pop %v825
      %v865 = vmul.f32 1.0, %v864
      %v866 = vrcp.pop %v826
      %v867 = vmul.f32 1.0, %v866
      %v868 = vrcp.pop %v827
      %v869 = vmul.f32 1.0, %v868
      %v870 = vrcp.pop %v828
      %v871 = vmul.f32 1.0, %v870
      %v872 = vrcp.pop %v829
      %v873 = vmul.f32 1.0, %v872
      %v874 = vrcp.pop %v830
      %v875 = vmul.f32 1.0, %v874
      %v876 = vrcp.pop %v831
      %v877 = vmul.f32 1.0, %v876
      %v878 = vrcp.pop %v832
      %v879 = vmul.f32 1.0, %v878
      %v880 = vrcp.pop %v833
      %v881 = vmul.f32 1.0, %v880
      %v882 = vrcp.pop %v834
      %v883 = vmul.f32 1.0, %v882
      %v884 = vrcp.pop %v835
      %v885 = vmul.f32 1.0, %v884
      %v886 = vrcp.pop %v836
      %v887 = vmul.f32 1.0, %v886
      %v888 = vrcp.pop %v837
      %v889 = vmul.f32 1.0, %v888
      %v890 = vrcp.pop %v838
      %v891 = vmul.f32 1.0, %v890
      %v892 = vrcp.pop %v839
      %v893 = vmul.f32 1.0, %v892
      %v894 = vrcp.pop %v840
      %v895 = vmul.f32 1.0, %v894
      %v896 = vrcp.pop %v841
      %v897 = vmul.f32 1.0, %v896
      %v898 = vrcp.pop %v842
      %v899 = vmul.f32 1.0, %v898
      %v900 = vrcp.pop %v843
      %v901 = vmul.f32 1.0, %v900
      %v902 = vrcp.pop %v844
      %v903 = vmul.f32 1.0, %v902
      %v904 = vrcp.pop %v845
      %v905 = vmul.f32 1.0, %v904
      %v906 = vrcp.pop %v846
      %v907 = vmul.f32 1.0, %v906
      %v908 = vrcp.pop %v847
      %v909 = vmul.f32 1.0, %v908
      %v910 = vrcp.pop %v848
      %v911 = vmul.f32 1.0, %v910
      %v912 = vrcp.pop %v849
      %v913 = vmul.f32 1.0, %v912
      %v914 = vmul.f32 %v564, %v851
      %v915 = vmul.f32 %v569, %v853
      %v916 = vmul.f32 %v574, %v855
      %v917 = vmul.f32 %v579, %v857
      %v918 = vmul.f32 %v584, %v859
      %v919 = vmul.f32 %v589, %v861
      %v920 = vmul.f32 %v594, %v863
      %v921 = vmul.f32 %v599, %v865
      %v922 = vmul.f32 %v604, %v867
      %v923 = vmul.f32 %v609, %v869
      %v924 = vmul.f32 %v614, %v871
      %v925 = vmul.f32 %v619, %v873
      %v926 = vmul.f32 %v624, %v875
      %v927 = vmul.f32 %v629, %v877
      %v928 = vmul.f32 %v634, %v879
      %v929 = vmul.f32 %v639, %v881
      %v930 = vmul.f32 %v644, %v883
      %v931 = vmul.f32 %v649, %v885
      %v932 = vmul.f32 %v654, %v887
      %v933 = vmul.f32 %v659, %v889
      %v934 = vmul.f32 %v664, %v891
      %v935 = vmul.f32 %v669, %v893
      %v936 = vmul.f32 %v674, %v895
      %v937 = vmul.f32 %v679, %v897
      %v938 = vmul.f32 %v684, %v899
      %v939 = vmul.f32 %v689, %v901
      %v940 = vmul.f32 %v694, %v903
      %v941 = vmul.f32 %v699, %v905
      %v942 = vmul.f32 %v704, %v907
      %v943 = vmul.f32 %v709, %v909
      %v944 = vmul.f32 %v714, %v911
      %v945 = vmul.f32 %v719, %v913
      %vm946 = vcmask 261120
      %947 = vst.msk [vmem:[#allocation2] sm:$0xff] %vm946, 0.0
      %948 = vst.msk [vmem:[#allocation2 + $0x8] sm:$0xff] %vm946, 0.0
      %949 = vst.msk [vmem:[#allocation2 + $0x10] sm:$0xff] %vm946, 0.0
      %950 = vst.msk [vmem:[#allocation2 + $0x18] sm:$0xff] %vm946, 0.0
      %951 = vst.msk [vmem:[#allocation2 + $0x20] sm:$0xff] %vm946, 0.0
      %952 = vst.msk [vmem:[#allocation2 + $0x28] sm:$0xff] %vm946, 0.0
      %953 = vst.msk [vmem:[#allocation2 + $0x30] sm:$0xff] %vm946, 0.0
      %954 = vst.msk [vmem:[#allocation2 + $0x38] sm:$0xff] %vm946, 0.0
      %955 = vst.msk [vmem:[#allocation2 + $0x40] sm:$0xff] %vm946, 0.0
      %956 = vst.msk [vmem:[#allocation2 + $0x48] sm:$0xff] %vm946, 0.0
      %957 = vst.msk [vmem:[#allocation2 + $0x50] sm:$0xff] %vm946, 0.0
      %958 = vst.msk [vmem:[#allocation2 + $0x58] sm:$0xff] %vm946, 0.0
      %959 = vst.msk [vmem:[#allocation2 + $0x60] sm:$0xff] %vm946, 0.0
      %960 = vst.msk [vmem:[#allocation2 + $0x68] sm:$0xff] %vm946, 0.0
      %961 = vst.msk [vmem:[#allocation2 + $0x70] sm:$0xff] %vm946, 0.0
      %962 = vst.msk [vmem:[#allocation2 + $0x78] sm:$0xff] %vm946, 0.0
      %963 = vst.msk [vmem:[#allocation2 + $0x80] sm:$0xff] %vm946, 0.0
      %964 = vst.msk [vmem:[#allocation2 + $0x88] sm:$0xff] %vm946, 0.0
      %965 = vst.msk [vmem:[#allocation2 + $0x90] sm:$0xff] %vm946, 0.0
      %966 = vst.msk [vmem:[#allocation2 + $0x98] sm:$0xff] %vm946, 0.0
      %967 = vst.msk [vmem:[#allocation2 + $0xa0] sm:$0xff] %vm946, 0.0
      %968 = vst.msk [vmem:[#allocation2 + $0xa8] sm:$0xff] %vm946, 0.0
      %969 = vst.msk [vmem:[#allocation2 + $0xb0] sm:$0xff] %vm946, 0.0
      %970 = vst.msk [vmem:[#allocation2 + $0xb8] sm:$0xff] %vm946, 0.0
      %971 = vst.msk [vmem:[#allocation2 + $0xc0] sm:$0xff] %vm946, 0.0
      %972 = vst.msk [vmem:[#allocation2 + $0xc8] sm:$0xff] %vm946, 0.0
      %973 = vst.msk [vmem:[#allocation2 + $0xd0] sm:$0xff] %vm946, 0.0
      %974 = vst.msk [vmem:[#allocation2 + $0xd8] sm:$0xff] %vm946, 0.0
      %975 = vst.msk [vmem:[#allocation2 + $0xe0] sm:$0xff] %vm946, 0.0
      %976 = vst.msk [vmem:[#allocation2 + $0xe8] sm:$0xff] %vm946, 0.0
      %977 = vst.msk [vmem:[#allocation2 + $0xf0] sm:$0xff] %vm946, 0.0
      %978 = vst.msk [vmem:[#allocation2 + $0xf8] sm:$0xff] %vm946, 0.0
      %979 = vst.msk [vmem:[#allocation2 + $0x100] sm:$0xff] %vm946, 0.0
      %980 = vst.msk [vmem:[#allocation2 + $0x108] sm:$0xff] %vm946, 0.0
      %981 = vst.msk [vmem:[#allocation2 + $0x110] sm:$0xff] %vm946, 0.0
      %982 = vst.msk [vmem:[#allocation2 + $0x118] sm:$0xff] %vm946, 0.0
      %983 = vst.msk [vmem:[#allocation2 + $0x120] sm:$0xff] %vm946, 0.0
      %984 = vst.msk [vmem:[#allocation2 + $0x128] sm:$0xff] %vm946, 0.0
      %985 = vst.msk [vmem:[#allocation2 + $0x130] sm:$0xff] %vm946, 0.0
      %986 = vst.msk [vmem:[#allocation2 + $0x138] sm:$0xff] %vm946, 0.0
      %987 = vst.msk [vmem:[#allocation2 + $0x140] sm:$0xff] %vm946, 0.0
      %988 = vst.msk [vmem:[#allocation2 + $0x148] sm:$0xff] %vm946, 0.0
      %vm989 = vcmask 259072
      %990 = vst.msk [vmem:[#allocation2 + $0x150] sm:$0x3f] %vm989, 0.0
      %991 = vst.msk [vmem:[#allocation2 + $0x13] sm:$0xff] %vm946, %v914
      %992 = vst.msk [vmem:[#allocation2 + $0x1b] sm:$0xff] %vm946, %v915
      %993 = vst.msk [vmem:[#allocation2 + $0x25] sm:$0xff] %vm946, %v916
      %994 = vst.msk [vmem:[#allocation2 + $0x2d] sm:$0xff] %vm946, %v917
      %995 = vst.msk [vmem:[#allocation2 + $0x37] sm:$0xff] %vm946, %v918
      %996 = vst.msk [vmem:[#allocation2 + $0x3f] sm:$0xff] %vm946, %v919
      %997 = vst.msk [vmem:[#allocation2 + $0x49] sm:$0xff] %vm946, %v920
      %998 = vst.msk [vmem:[#allocation2 + $0x51] sm:$0xff] %vm946, %v921
      %999 = vst.msk [vmem:[#allocation2 + $0x5b] sm:$0xff] %vm946, %v922
      %1000 = vst.msk [vmem:[#allocation2 + $0x63] sm:$0xff] %vm946, %v923
      %1001 = vst.msk [vmem:[#allocation2 + $0x6d] sm:$0xff] %vm946, %v924
      %1002 = vst.msk [vmem:[#allocation2 + $0x75] sm:$0xff] %vm946, %v925
      %1003 = vst.msk [vmem:[#allocation2 + $0x7f] sm:$0xff] %vm946, %v926
      %1004 = vst.msk [vmem:[#allocation2 + $0x87] sm:$0xff] %vm946, %v927
      %1005 = vst.msk [vmem:[#allocation2 + $0x91] sm:$0xff] %vm946, %v928
      %1006 = vst.msk [vmem:[#allocation2 + $0x99] sm:$0xff] %vm946, %v929
      %1007 = vst.msk [vmem:[#allocation2 + $0xa3] sm:$0xff] %vm946, %v930
      %1008 = vst.msk [vmem:[#allocation2 + $0xab] sm:$0xff] %vm946, %v931
      %1009 = vst.msk [vmem:[#allocation2 + $0xb5] sm:$0xff] %vm946, %v932
      %1010 = vst.msk [vmem:[#allocation2 + $0xbd] sm:$0xff] %vm946, %v933
      %1011 = vst.msk [vmem:[#allocation2 + $0xc7] sm:$0xff] %vm946, %v934
      %1012 = vst.msk [vmem:[#allocation2 + $0xcf] sm:$0xff] %vm946, %v935
      %1013 = vst.msk [vmem:[#allocation2 + $0xd9] sm:$0xff] %vm946, %v936
      %1014 = vst.msk [vmem:[#allocation2 + $0xe1] sm:$0xff] %vm946, %v937
      %1015 = vst.msk [vmem:[#allocation2 + $0xeb] sm:$0xff] %vm946, %v938
      %1016 = vst.msk [vmem:[#allocation2 + $0xf3] sm:$0xff] %vm946, %v939
      %1017 = vst.msk [vmem:[#allocation2 + $0xfd] sm:$0xff] %vm946, %v940
      %1018 = vst.msk [vmem:[#allocation2 + $0x105] sm:$0xff] %vm946, %v941
      %1019 = vst.msk [vmem:[#allocation2 + $0x10f] sm:$0xff] %vm946, %v942
      %1020 = vst.msk [vmem:[#allocation2 + $0x117] sm:$0xff] %vm946, %v943
      %1021 = vst.msk [vmem:[#allocation2 + $0x121] sm:$0xff] %vm946, %v944
      %1022 = vst.msk [vmem:[#allocation2 + $0x129] sm:$0xff] %vm946, %v945
      %v1023 = vld [vmem:[#allocation2] sm:$0xff]
      %v1024 = vld [vmem:[#allocation2 + $0x8] sm:$0xff]
      %v1025 = vld [vmem:[#allocation2 + $0x10] sm:$0xff]
      %v1026 = vld [vmem:[#allocation2 + $0x18] sm:$0xff]
      %v1027 = vld [vmem:[#allocation2 + $0x20] sm:$0xff]
      %v1028 = vld [vmem:[#allocation2 + $0x28] sm:$0xff]
      %v1029 = vld [vmem:[#allocation2 + $0x30] sm:$0xff]
      %v1030 = vld [vmem:[#allocation2 + $0x38] sm:$0xff]
      %v1031 = vld [vmem:[#allocation2 + $0x40] sm:$0xff]
      %v1032 = vld [vmem:[#allocation2 + $0x48] sm:$0xff]
      %v1033 = vld [vmem:[#allocation2 + $0x50] sm:$0xff]
      %v1034 = vld [vmem:[#allocation2 + $0x58] sm:$0xff]
      %v1035 = vld [vmem:[#allocation2 + $0x60] sm:$0xff]
      %v1036 = vld [vmem:[#allocation2 + $0x68] sm:$0xff]
      %v1037 = vld [vmem:[#allocation2 + $0x70] sm:$0xff]
      %v1038 = vld [vmem:[#allocation2 + $0x78] sm:$0xff]
      %v1039 = vld [vmem:[#allocation2 + $0x80] sm:$0xff]
      %v1040 = vld [vmem:[#allocation2 + $0x88] sm:$0xff]
      %v1041 = vld [vmem:[#allocation2 + $0x90] sm:$0xff]
      %v1042 = vld [vmem:[#allocation2 + $0x98] sm:$0xff]
      %v1043 = vld [vmem:[#allocation2 + $0xa0] sm:$0xff]
      %v1044 = vld [vmem:[#allocation2 + $0xa8] sm:$0xff]
      %v1045 = vld [vmem:[#allocation2 + $0xb0] sm:$0xff]
      %v1046 = vld [vmem:[#allocation2 + $0xb8] sm:$0xff]
      %v1047 = vld [vmem:[#allocation2 + $0xc0] sm:$0xff]
      %v1048 = vld [vmem:[#allocation2 + $0xc8] sm:$0xff]
      %v1049 = vld [vmem:[#allocation2 + $0xd0] sm:$0xff]
      %v1050 = vld [vmem:[#allocation2 + $0xd8] sm:$0xff]
      %v1051 = vld [vmem:[#allocation2 + $0xe0] sm:$0xff]
      %v1052 = vld [vmem:[#allocation2 + $0xe8] sm:$0xff]
      %v1053 = vld [vmem:[#allocation2 + $0xf0] sm:$0xff]
      %v1054 = vld [vmem:[#allocation2 + $0xf8] sm:$0xff]
      %v1055 = vld [vmem:[#allocation2 + $0x100] sm:$0xff]
      %v1056 = vld [vmem:[#allocation2 + $0x108] sm:$0xff]
      %v1057 = vld [vmem:[#allocation2 + $0x110] sm:$0xff]
      %v1058 = vld [vmem:[#allocation2 + $0x118] sm:$0xff]
      %v1059 = vld [vmem:[%s3] sm:$0x1]
      %v1060 = vlaneseq
      %v1061 = vshrl.u32 %v1060, 7
      %v1062 = vsub.s32 0, %v1061
      %v1063 = vrot.slane %v1059, %v1062
      %v1064 = vmul.f32 %v1023, %v1063
      %v1065 = vmul.f32 %v1024, %v1063
      %v1066 = vmul.f32 %v1025, %v1063
      %v1067 = vmul.f32 %v1026, %v1063
      %v1068 = vmul.f32 %v1027, %v1063
      %v1069 = vmul.f32 %v1028, %v1063
      %v1070 = vmul.f32 %v1029, %v1063
      %v1071 = vmul.f32 %v1030, %v1063
      %v1072 = vmul.f32 %v1031, %v1063
      %v1073 = vmul.f32 %v1032, %v1063
      %v1074 = vmul.f32 %v1033, %v1063
      %v1075 = vmul.f32 %v1034, %v1063
      %v1076 = vmul.f32 %v1035, %v1063
      %v1077 = vmul.f32 %v1036, %v1063
      %v1078 = vmul.f32 %v1037, %v1063
      %v1079 = vmul.f32 %v1038, %v1063
      %v1080 = vmul.f32 %v1039, %v1063
      %v1081 = vmul.f32 %v1040, %v1063
      %v1082 = vmul.f32 %v1041, %v1063
      %v1083 = vmul.f32 %v1042, %v1063
      %v1084 = vmul.f32 %v1043, %v1063
      %v1085 = vmul.f32 %v1044, %v1063
      %v1086 = vmul.f32 %v1045, %v1063
      %v1087 = vmul.f32 %v1046, %v1063
      %v1088 = vmul.f32 %v1047, %v1063
      %v1089 = vmul.f32 %v1048, %v1063
      %v1090 = vmul.f32 %v1049, %v1063
      %v1091 = vmul.f32 %v1050, %v1063
      %v1092 = vmul.f32 %v1051, %v1063
      %v1093 = vmul.f32 %v1052, %v1063
      %v1094 = vmul.f32 %v1053, %v1063
      %v1095 = vmul.f32 %v1054, %v1063
      %v1096 = vmul.f32 %v1055, %v1063
      %v1097 = vmul.f32 %v1056, %v1063
      %v1098 = vmul.f32 %v1057, %v1063
      %v1099 = vmul.f32 %v1058, %v1063
      %v1100 = vadd.f32 %v1064, 0.0
      %v1101 = vadd.f32 %v1065, 0.0
      %v1102 = vadd.f32 %v1066, 0.0
      %v1103 = vadd.f32 %v1067, 0.0
      %v1104 = vadd.f32 %v1068, 0.0
      %v1105 = vadd.f32 %v1069, 0.0
      %v1106 = vadd.f32 %v1070, 0.0
      %v1107 = vadd.f32 %v1071, 0.0
      %v1108 = vadd.f32 %v1072, 0.0
      %v1109 = vadd.f32 %v1073, 0.0
      %v1110 = vadd.f32 %v1074, 0.0
      %v1111 = vadd.f32 %v1075, 0.0
      %v1112 = vadd.f32 %v1076, 0.0
      %v1113 = vadd.f32 %v1077, 0.0
      %v1114 = vadd.f32 %v1078, 0.0
      %v1115 = vadd.f32 %v1079, 0.0
      %v1116 = vadd.f32 %v1080, 0.0
      %v1117 = vadd.f32 %v1081, 0.0
      %v1118 = vadd.f32 %v1082, 0.0
      %v1119 = vadd.f32 %v1083, 0.0
      %v1120 = vadd.f32 %v1084, 0.0
      %v1121 = vadd.f32 %v1085, 0.0
      %v1122 = vadd.f32 %v1086, 0.0
      %v1123 = vadd.f32 %v1087, 0.0
      %v1124 = vadd.f32 %v1088, 0.0
      %v1125 = vadd.f32 %v1089, 0.0
      %v1126 = vadd.f32 %v1090, 0.0
      %v1127 = vadd.f32 %v1091, 0.0
      %v1128 = vadd.f32 %v1092, 0.0
      %v1129 = vadd.f32 %v1093, 0.0
      %v1130 = vadd.f32 %v1094, 0.0
      %v1131 = vadd.f32 %v1095, 0.0
      %v1132 = vadd.f32 %v1096, 0.0
      %v1133 = vadd.f32 %v1097, 0.0
      %v1134 = vadd.f32 %v1098, 0.0
      %v1135 = vadd.f32 %v1099, 0.0
      %v1136 = vld [vmem:[#allocation2 + $0x1] sm:$0xff]
      %v1137 = vld [vmem:[#allocation2 + $0x9] sm:$0xff]
      %v1138 = vld [vmem:[#allocation2 + $0x11] sm:$0xff]
      %v1139 = vld [vmem:[#allocation2 + $0x19] sm:$0xff]
      %v1140 = vld [vmem:[#allocation2 + $0x21] sm:$0xff]
      %v1141 = vld [vmem:[#allocation2 + $0x29] sm:$0xff]
      %v1142 = vld [vmem:[#allocation2 + $0x31] sm:$0xff]
      %v1143 = vld [vmem:[#allocation2 + $0x39] sm:$0xff]
      %v1144 = vld [vmem:[#allocation2 + $0x41] sm:$0xff]
      %v1145 = vld [vmem:[#allocation2 + $0x49] sm:$0xff]
      %v1146 = vld [vmem:[#allocation2 + $0x51] sm:$0xff]
      %v1147 = vld [vmem:[#allocation2 + $0x59] sm:$0xff]
      %v1148 = vld [vmem:[#allocation2 + $0x61] sm:$0xff]
      %v1149 = vld [vmem:[#allocation2 + $0x69] sm:$0xff]
      %v1150 = vld [vmem:[#allocation2 + $0x71] sm:$0xff]
      %v1151 = vld [vmem:[#allocation2 + $0x79] sm:$0xff]
      %v1152 = vld [vmem:[#allocation2 + $0x81] sm:$0xff]
      %v1153 = vld [vmem:[#allocation2 + $0x89] sm:$0xff]
      %v1154 = vld [vmem:[#allocation2 + $0x91] sm:$0xff]
      %v1155 = vld [vmem:[#allocation2 + $0x99] sm:$0xff]
      %v1156 = vld [vmem:[#allocation2 + $0xa1] sm:$0xff]
      %v1157 = vld [vmem:[#allocation2 + $0xa9] sm:$0xff]
      %v1158 = vld [vmem:[#allocation2 + $0xb1] sm:$0xff]
      %v1159 = vld [vmem:[#allocation2 + $0xb9] sm:$0xff]
      %v1160 = vld [vmem:[#allocation2 + $0xc1] sm:$0xff]
      %v1161 = vld [vmem:[#allocation2 + $0xc9] sm:$0xff]
      %v1162 = vld [vmem:[#allocation2 + $0xd1] sm:$0xff]
      %v1163 = vld [vmem:[#allocation2 + $0xd9] sm:$0xff]
      %v1164 = vld [vmem:[#allocation2 + $0xe1] sm:$0xff]
      %v1165 = vld [vmem:[#allocation2 + $0xe9] sm:$0xff]
      %v1166 = vld [vmem:[#allocation2 + $0xf1] sm:$0xff]
      %v1167 = vld [vmem:[#allocation2 + $0xf9] sm:$0xff]
      %v1168 = vld [vmem:[#allocation2 + $0x101] sm:$0xff]
      %v1169 = vld [vmem:[#allocation2 + $0x109] sm:$0xff]
      %v1170 = vld [vmem:[#allocation2 + $0x111] sm:$0xff]
      %v1171 = vld [vmem:[#allocation2 + $0x119] sm:$0xff]
      %v1172 = vld [vmem:[%s3 + $0x1] sm:$0x1]
      %v1173 = vlaneseq
      %v1174 = vshrl.u32 %v1173, 7
      %v1175 = vsub.s32 0, %v1174
      %v1176 = vrot.slane %v1172, %v1175
      %v1177 = vmul.f32 %v1136, %v1176
      %v1178 = vmul.f32 %v1137, %v1176
      %v1179 = vmul.f32 %v1138, %v1176
      %v1180 = vmul.f32 %v1139, %v1176
      %v1181 = vmul.f32 %v1140, %v1176
      %v1182 = vmul.f32 %v1141, %v1176
      %v1183 = vmul.f32 %v1142, %v1176
      %v1184 = vmul.f32 %v1143, %v1176
      %v1185 = vmul.f32 %v1144, %v1176
      %v1186 = vmul.f32 %v1145, %v1176
      %v1187 = vmul.f32 %v1146, %v1176
      %v1188 = vmul.f32 %v1147, %v1176
      %v1189 = vmul.f32 %v1148, %v1176
      %v1190 = vmul.f32 %v1149, %v1176
      %v1191 = vmul.f32 %v1150, %v1176
      %v1192 = vmul.f32 %v1151, %v1176
      %v1193 = vmul.f32 %v1152, %v1176
      %v1194 = vmul.f32 %v1153, %v1176
      %v1195 = vmul.f32 %v1154, %v1176
      %v1196 = vmul.f32 %v1155, %v1176
      %v1197 = vmul.f32 %v1156, %v1176
      %v1198 = vmul.f32 %v1157, %v1176
      %v1199 = vmul.f32 %v1158, %v1176
      %v1200 = vmul.f32 %v1159, %v1176
      %v1201 = vmul.f32 %v1160, %v1176
      %v1202 = vmul.f32 %v1161, %v1176
      %v1203 = vmul.f32 %v1162, %v1176
      %v1204 = vmul.f32 %v1163, %v1176
      %v1205 = vmul.f32 %v1164, %v1176
      %v1206 = vmul.f32 %v1165, %v1176
      %v1207 = vmul.f32 %v1166, %v1176
      %v1208 = vmul.f32 %v1167, %v1176
      %v1209 = vmul.f32 %v1168, %v1176
      %v1210 = vmul.f32 %v1169, %v1176
      %v1211 = vmul.f32 %v1170, %v1176
      %v1212 = vmul.f32 %v1171, %v1176
      %v1213 = vadd.f32 %v1100, %v1177
      %v1214 = vadd.f32 %v1101, %v1178
      %v1215 = vadd.f32 %v1102, %v1179
      %v1216 = vadd.f32 %v1103, %v1180
      %v1217 = vadd.f32 %v1104, %v1181
      %v1218 = vadd.f32 %v1105, %v1182
      %v1219 = vadd.f32 %v1106, %v1183
      %v1220 = vadd.f32 %v1107, %v1184
      %v1221 = vadd.f32 %v1108, %v1185
      %v1222 = vadd.f32 %v1109, %v1186
      %v1223 = vadd.f32 %v1110, %v1187
      %v1224 = vadd.f32 %v1111, %v1188
      %v1225 = vadd.f32 %v1112, %v1189
      %v1226 = vadd.f32 %v1113, %v1190
      %v1227 = vadd.f32 %v1114, %v1191
      %v1228 = vadd.f32 %v1115, %v1192
      %v1229 = vadd.f32 %v1116, %v1193
      %v1230 = vadd.f32 %v1117, %v1194
      %v1231 = vadd.f32 %v1118, %v1195
      %v1232 = vadd.f32 %v1119, %v1196
      %v1233 = vadd.f32 %v1120, %v1197
      %v1234 = vadd.f32 %v1121, %v1198
      %v1235 = vadd.f32 %v1122, %v1199
      %v1236 = vadd.f32 %v1123, %v1200
      %v1237 = vadd.f32 %v1124, %v1201
      %v1238 = vadd.f32 %v1125, %v1202
      %v1239 = vadd.f32 %v1126, %v1203
      %v1240 = vadd.f32 %v1127, %v1204
      %v1241 = vadd.f32 %v1128, %v1205
      %v1242 = vadd.f32 %v1129, %v1206
      %v1243 = vadd.f32 %v1130, %v1207
      %v1244 = vadd.f32 %v1131, %v1208
      %v1245 = vadd.f32 %v1132, %v1209
      %v1246 = vadd.f32 %v1133, %v1210
      %v1247 = vadd.f32 %v1134, %v1211
      %v1248 = vadd.f32 %v1135, %v1212
      %v1249 = vld [vmem:[#allocation2 + $0x2] sm:$0xff]
      %v1250 = vld [vmem:[#allocation2 + $0xa] sm:$0xff]
      %v1251 = vld [vmem:[#allocation2 + $0x12] sm:$0xff]
      %v1252 = vld [vmem:[#allocation2 + $0x1a] sm:$0xff]
      %v1253 = vld [vmem:[#allocation2 + $0x22] sm:$0xff]
      %v1254 = vld [vmem:[#allocation2 + $0x2a] sm:$0xff]
      %v1255 = vld [vmem:[#allocation2 + $0x32] sm:$0xff]
      %v1256 = vld [vmem:[#allocation2 + $0x3a] sm:$0xff]
      %v1257 = vld [vmem:[#allocation2 + $0x42] sm:$0xff]
      %v1258 = vld [vmem:[#allocation2 + $0x4a] sm:$0xff]
      %v1259 = vld [vmem:[#allocation2 + $0x52] sm:$0xff]
      %v1260 = vld [vmem:[#allocation2 + $0x5a] sm:$0xff]
      %v1261 = vld [vmem:[#allocation2 + $0x62] sm:$0xff]
      %v1262 = vld [vmem:[#allocation2 + $0x6a] sm:$0xff]
      %v1263 = vld [vmem:[#allocation2 + $0x72] sm:$0xff]
      %v1264 = vld [vmem:[#allocation2 + $0x7a] sm:$0xff]
      %v1265 = vld [vmem:[#allocation2 + $0x82] sm:$0xff]
      %v1266 = vld [vmem:[#allocation2 + $0x8a] sm:$0xff]
      %v1267 = vld [vmem:[#allocation2 + $0x92] sm:$0xff]
      %v1268 = vld [vmem:[#allocation2 + $0x9a] sm:$0xff]
      %v1269 = vld [vmem:[#allocation2 + $0xa2] sm:$0xff]
      %v1270 = vld [vmem:[#allocation2 + $0xaa] sm:$0xff]
      %v1271 = vld [vmem:[#allocation2 + $0xb2] sm:$0xff]
      %v1272 = vld [vmem:[#allocation2 + $0xba] sm:$0xff]
      %v1273 = vld [vmem:[#allocation2 + $0xc2] sm:$0xff]
      %v1274 = vld [vmem:[#allocation2 + $0xca] sm:$0xff]
      %v1275 = vld [vmem:[#allocation2 + $0xd2] sm:$0xff]
      %v1276 = vld [vmem:[#allocation2 + $0xda] sm:$0xff]
      %v1277 = vld [vmem:[#allocation2 + $0xe2] sm:$0xff]
      %v1278 = vld [vmem:[#allocation2 + $0xea] sm:$0xff]
      %v1279 = vld [vmem:[#allocation2 + $0xf2] sm:$0xff]
      %v1280 = vld [vmem:[#allocation2 + $0xfa] sm:$0xff]
      %v1281 = vld [vmem:[#allocation2 + $0x102] sm:$0xff]
      %v1282 = vld [vmem:[#allocation2 + $0x10a] sm:$0xff]
      %v1283 = vld [vmem:[#allocation2 + $0x112] sm:$0xff]
      %v1284 = vld [vmem:[#allocation2 + $0x11a] sm:$0xff]
      %v1285 = vld [vmem:[%s3 + $0x2] sm:$0x1]
      %v1286 = vlaneseq
      %v1287 = vshrl.u32 %v1286, 7
      %v1288 = vsub.s32 0, %v1287
      %v1289 = vrot.slane %v1285, %v1288
      %v1290 = vmul.f32 %v1249, %v1289
      %v1291 = vmul.f32 %v1250, %v1289
      %v1292 = vmul.f32 %v1251, %v1289
      %v1293 = vmul.f32 %v1252, %v1289
      %v1294 = vmul.f32 %v1253, %v1289
      %v1295 = vmul.f32 %v1254, %v1289
      %v1296 = vmul.f32 %v1255, %v1289
      %v1297 = vmul.f32 %v1256, %v1289
      %v1298 = vmul.f32 %v1257, %v1289
      %v1299 = vmul.f32 %v1258, %v1289
      %v1300 = vmul.f32 %v1259, %v1289
      %v1301 = vmul.f32 %v1260, %v1289
      %v1302 = vmul.f32 %v1261, %v1289
      %v1303 = vmul.f32 %v1262, %v1289
      %v1304 = vmul.f32 %v1263, %v1289
      %v1305 = vmul.f32 %v1264, %v1289
      %v1306 = vmul.f32 %v1265, %v1289
      %v1307 = vmul.f32 %v1266, %v1289
      %v1308 = vmul.f32 %v1267, %v1289
      %v1309 = vmul.f32 %v1268, %v1289
      %v1310 = vmul.f32 %v1269, %v1289
      %v1311 = vmul.f32 %v1270, %v1289
      %v1312 = vmul.f32 %v1271, %v1289
      %v1313 = vmul.f32 %v1272, %v1289
      %v1314 = vmul.f32 %v1273, %v1289
      %v1315 = vmul.f32 %v1274, %v1289
      %v1316 = vmul.f32 %v1275, %v1289
      %v1317 = vmul.f32 %v1276, %v1289
      %v1318 = vmul.f32 %v1277, %v1289
      %v1319 = vmul.f32 %v1278, %v1289
      %v1320 = vmul.f32 %v1279, %v1289
      %v1321 = vmul.f32 %v1280, %v1289
      %v1322 = vmul.f32 %v1281, %v1289
      %v1323 = vmul.f32 %v1282, %v1289
      %v1324 = vmul.f32 %v1283, %v1289
      %v1325 = vmul.f32 %v1284, %v1289
      %v1326 = vadd.f32 %v1213, %v1290
      %v1327 = vadd.f32 %v1214, %v1291
      %v1328 = vadd.f32 %v1215, %v1292
      %v1329 = vadd.f32 %v1216, %v1293
      %v1330 = vadd.f32 %v1217, %v1294
      %v1331 = vadd.f32 %v1218, %v1295
      %v1332 = vadd.f32 %v1219, %v1296
      %v1333 = vadd.f32 %v1220, %v1297
      %v1334 = vadd.f32 %v1221, %v1298
      %v1335 = vadd.f32 %v1222, %v1299
      %v1336 = vadd.f32 %v1223, %v1300
      %v1337 = vadd.f32 %v1224, %v1301
      %v1338 = vadd.f32 %v1225, %v1302
      %v1339 = vadd.f32 %v1226, %v1303
      %v1340 = vadd.f32 %v1227, %v1304
      %v1341 = vadd.f32 %v1228, %v1305
      %v1342 = vadd.f32 %v1229, %v1306
      %v1343 = vadd.f32 %v1230, %v1307
      %v1344 = vadd.f32 %v1231, %v1308
      %v1345 = vadd.f32 %v1232, %v1309
      %v1346 = vadd.f32 %v1233, %v1310
      %v1347 = vadd.f32 %v1234, %v1311
      %v1348 = vadd.f32 %v1235, %v1312
      %v1349 = vadd.f32 %v1236, %v1313
      %v1350 = vadd.f32 %v1237, %v1314
      %v1351 = vadd.f32 %v1238, %v1315
      %v1352 = vadd.f32 %v1239, %v1316
      %v1353 = vadd.f32 %v1240, %v1317
      %v1354 = vadd.f32 %v1241, %v1318
      %v1355 = vadd.f32 %v1242, %v1319
      %v1356 = vadd.f32 %v1243, %v1320
      %v1357 = vadd.f32 %v1244, %v1321
      %v1358 = vadd.f32 %v1245, %v1322
      %v1359 = vadd.f32 %v1246, %v1323
      %v1360 = vadd.f32 %v1247, %v1324
      %v1361 = vadd.f32 %v1248, %v1325
      %v1362 = vld [vmem:[#allocation2 + $0x122] sm:$0xff]
      %v1363 = vld [vmem:[#allocation2 + $0x12a] sm:$0xff]
      %s1364 = scalar_lea.vmem %s3, 4
      %v1365 = vld [vmem:[%s1364] sm:$0x1]
      %v1366 = vlaneseq
      %v1367 = vshrl.u32 %v1366, 7
      %v1368 = vsub.s32 0, %v1367
      %v1369 = vrot.slane %v1365, %v1368
      %v1370 = vmul.f32 %v1251, %v1369
      %v1371 = vmul.f32 %v1252, %v1369
      %v1372 = vmul.f32 %v1253, %v1369
      %v1373 = vmul.f32 %v1254, %v1369
      %v1374 = vmul.f32 %v1255, %v1369
      %v1375 = vmul.f32 %v1256, %v1369
      %v1376 = vmul.f32 %v1257, %v1369
      %v1377 = vmul.f32 %v1258, %v1369
      %v1378 = vmul.f32 %v1259, %v1369
      %v1379 = vmul.f32 %v1260, %v1369
      %v1380 = vmul.f32 %v1261, %v1369
      %v1381 = vmul.f32 %v1262, %v1369
      %v1382 = vmul.f32 %v1263, %v1369
      %v1383 = vmul.f32 %v1264, %v1369
      %v1384 = vmul.f32 %v1265, %v1369
      %v1385 = vmul.f32 %v1266, %v1369
      %v1386 = vmul.f32 %v1267, %v1369
      %v1387 = vmul.f32 %v1268, %v1369
      %v1388 = vmul.f32 %v1269, %v1369
      %v1389 = vmul.f32 %v1270, %v1369
      %v1390 = vmul.f32 %v1271, %v1369
      %v1391 = vmul.f32 %v1272, %v1369
      %v1392 = vmul.f32 %v1273, %v1369
      %v1393 = vmul.f32 %v1274, %v1369
      %v1394 = vmul.f32 %v1275, %v1369
      %v1395 = vmul.f32 %v1276, %v1369
      %v1396 = vmul.f32 %v1277, %v1369
      %v1397 = vmul.f32 %v1278, %v1369
      %v1398 = vmul.f32 %v1279, %v1369
      %v1399 = vmul.f32 %v1280, %v1369
      %v1400 = vmul.f32 %v1281, %v1369
      %v1401 = vmul.f32 %v1282, %v1369
      %v1402 = vmul.f32 %v1283, %v1369
      %v1403 = vmul.f32 %v1284, %v1369
      %v1404 = vmul.f32 %v1362, %v1369
      %v1405 = vmul.f32 %v1363, %v1369
      %v1406 = vadd.f32 %v1326, %v1370
      %v1407 = vadd.f32 %v1327, %v1371
      %v1408 = vadd.f32 %v1328, %v1372
      %v1409 = vadd.f32 %v1329, %v1373
      %v1410 = vadd.f32 %v1330, %v1374
      %v1411 = vadd.f32 %v1331, %v1375
      %v1412 = vadd.f32 %v1332, %v1376
      %v1413 = vadd.f32 %v1333, %v1377
      %v1414 = vadd.f32 %v1334, %v1378
      %v1415 = vadd.f32 %v1335, %v1379
      %v1416 = vadd.f32 %v1336, %v1380
      %v1417 = vadd.f32 %v1337, %v1381
      %v1418 = vadd.f32 %v1338, %v1382
      %v1419 = vadd.f32 %v1339, %v1383
      %v1420 = vadd.f32 %v1340, %v1384
      %v1421 = vadd.f32 %v1341, %v1385
      %v1422 = vadd.f32 %v1342, %v1386
      %v1423 = vadd.f32 %v1343, %v1387
      %v1424 = vadd.f32 %v1344, %v1388
      %v1425 = vadd.f32 %v1345, %v1389
      %v1426 = vadd.f32 %v1346, %v1390
      %v1427 = vadd.f32 %v1347, %v1391
      %v1428 = vadd.f32 %v1348, %v1392
      %v1429 = vadd.f32 %v1349, %v1393
      %v1430 = vadd.f32 %v1350, %v1394
      %v1431 = vadd.f32 %v1351, %v1395
      %v1432 = vadd.f32 %v1352, %v1396
      %v1433 = vadd.f32 %v1353, %v1397
      %v1434 = vadd.f32 %v1354, %v1398
      %v1435 = vadd.f32 %v1355, %v1399
      %v1436 = vadd.f32 %v1356, %v1400
      %v1437 = vadd.f32 %v1357, %v1401
      %v1438 = vadd.f32 %v1358, %v1402
      %v1439 = vadd.f32 %v1359, %v1403
      %v1440 = vadd.f32 %v1360, %v1404
      %v1441 = vadd.f32 %v1361, %v1405
      %v1442 = vld [vmem:[#allocation2 + $0x13] sm:$0xff]
      %v1443 = vld [vmem:[#allocation2 + $0x1b] sm:$0xff]
      %v1444 = vld [vmem:[#allocation2 + $0x23] sm:$0xff]
      %v1445 = vld [vmem:[#allocation2 + $0x2b] sm:$0xff]
      %v1446 = vld [vmem:[#allocation2 + $0x33] sm:$0xff]
      %v1447 = vld [vmem:[#allocation2 + $0x3b] sm:$0xff]
      %v1448 = vld [vmem:[#allocation2 + $0x43] sm:$0xff]
      %v1449 = vld [vmem:[#allocation2 + $0x4b] sm:$0xff]
      %v1450 = vld [vmem:[#allocation2 + $0x53] sm:$0xff]
      %v1451 = vld [vmem:[#allocation2 + $0x5b] sm:$0xff]
      %v1452 = vld [vmem:[#allocation2 + $0x63] sm:$0xff]
      %v1453 = vld [vmem:[#allocation2 + $0x6b] sm:$0xff]
      %v1454 = vld [vmem:[#allocation2 + $0x73] sm:$0xff]
      %v1455 = vld [vmem:[#allocation2 + $0x7b] sm:$0xff]
      %v1456 = vld [vmem:[#allocation2 + $0x83] sm:$0xff]
      %v1457 = vld [vmem:[#allocation2 + $0x8b] sm:$0xff]
      %v1458 = vld [vmem:[#allocation2 + $0x93] sm:$0xff]
      %v1459 = vld [vmem:[#allocation2 + $0x9b] sm:$0xff]
      %v1460 = vld [vmem:[#allocation2 + $0xa3] sm:$0xff]
      %v1461 = vld [vmem:[#allocation2 + $0xab] sm:$0xff]
      %v1462 = vld [vmem:[#allocation2 + $0xb3] sm:$0xff]
      %v1463 = vld [vmem:[#allocation2 + $0xbb] sm:$0xff]
      %v1464 = vld [vmem:[#allocation2 + $0xc3] sm:$0xff]
      %v1465 = vld [vmem:[#allocation2 + $0xcb] sm:$0xff]
      %v1466 = vld [vmem:[#allocation2 + $0xd3] sm:$0xff]
      %v1467 = vld [vmem:[#allocation2 + $0xdb] sm:$0xff]
      %v1468 = vld [vmem:[#allocation2 + $0xe3] sm:$0xff]
      %v1469 = vld [vmem:[#allocation2 + $0xeb] sm:$0xff]
      %v1470 = vld [vmem:[#allocation2 + $0xf3] sm:$0xff]
      %v1471 = vld [vmem:[#allocation2 + $0xfb] sm:$0xff]
      %v1472 = vld [vmem:[#allocation2 + $0x103] sm:$0xff]
      %v1473 = vld [vmem:[#allocation2 + $0x10b] sm:$0xff]
      %v1474 = vld [vmem:[#allocation2 + $0x113] sm:$0xff]
      %v1475 = vld [vmem:[#allocation2 + $0x11b] sm:$0xff]
      %v1476 = vld [vmem:[#allocation2 + $0x123] sm:$0xff]
      %v1477 = vld [vmem:[#allocation2 + $0x12b] sm:$0xff]
      %v1478 = vld [vmem:[%s1364 + $0x1] sm:$0x1]
      %v1479 = vlaneseq
      %v1480 = vshrl.u32 %v1479, 7
      %v1481 = vsub.s32 0, %v1480
      %v1482 = vrot.slane %v1478, %v1481
      %v1483 = vmul.f32 %v1442, %v1482
      %v1484 = vmul.f32 %v1443, %v1482
      %v1485 = vmul.f32 %v1444, %v1482
      %v1486 = vmul.f32 %v1445, %v1482
      %v1487 = vmul.f32 %v1446, %v1482
      %v1488 = vmul.f32 %v1447, %v1482
      %v1489 = vmul.f32 %v1448, %v1482
      %v1490 = vmul.f32 %v1449, %v1482
      %v1491 = vmul.f32 %v1450, %v1482
      %v1492 = vmul.f32 %v1451, %v1482
      %v1493 = vmul.f32 %v1452, %v1482
      %v1494 = vmul.f32 %v1453, %v1482
      %v1495 = vmul.f32 %v1454, %v1482
      %v1496 = vmul.f32 %v1455, %v1482
      %v1497 = vmul.f32 %v1456, %v1482
      %v1498 = vmul.f32 %v1457, %v1482
      %v1499 = vmul.f32 %v1458, %v1482
      %v1500 = vmul.f32 %v1459, %v1482
      %v1501 = vmul.f32 %v1460, %v1482
      %v1502 = vmul.f32 %v1461, %v1482
      %v1503 = vmul.f32 %v1462, %v1482
      %v1504 = vmul.f32 %v1463, %v1482
      %v1505 = vmul.f32 %v1464, %v1482
      %v1506 = vmul.f32 %v1465, %v1482
      %v1507 = vmul.f32 %v1466, %v1482
      %v1508 = vmul.f32 %v1467, %v1482
      %v1509 = vmul.f32 %v1468, %v1482
      %v1510 = vmul.f32 %v1469, %v1482
      %v1511 = vmul.f32 %v1470, %v1482
      %v1512 = vmul.f32 %v1471, %v1482
      %v1513 = vmul.f32 %v1472, %v1482
      %v1514 = vmul.f32 %v1473, %v1482
      %v1515 = vmul.f32 %v1474, %v1482
      %v1516 = vmul.f32 %v1475, %v1482
      %v1517 = vmul.f32 %v1476, %v1482
      %v1518 = vmul.f32 %v1477, %v1482
      %v1519 = vadd.f32 %v1406, %v1483
      %v1520 = vadd.f32 %v1407, %v1484
      %v1521 = vadd.f32 %v1408, %v1485
      %v1522 = vadd.f32 %v1409, %v1486
      %v1523 = vadd.f32 %v1410, %v1487
      %v1524 = vadd.f32 %v1411, %v1488
      %v1525 = vadd.f32 %v1412, %v1489
      %v1526 = vadd.f32 %v1413, %v1490
      %v1527 = vadd.f32 %v1414, %v1491
      %v1528 = vadd.f32 %v1415, %v1492
      %v1529 = vadd.f32 %v1416, %v1493
      %v1530 = vadd.f32 %v1417, %v1494
      %v1531 = vadd.f32 %v1418, %v1495
      %v1532 = vadd.f32 %v1419, %v1496
      %v1533 = vadd.f32 %v1420, %v1497
      %v1534 = vadd.f32 %v1421, %v1498
      %v1535 = vadd.f32 %v1422, %v1499
      %v1536 = vadd.f32 %v1423, %v1500
      %v1537 = vadd.f32 %v1424, %v1501
      %v1538 = vadd.f32 %v1425, %v1502
      %v1539 = vadd.f32 %v1426, %v1503
      %v1540 = vadd.f32 %v1427, %v1504
      %v1541 = vadd.f32 %v1428, %v1505
      %v1542 = vadd.f32 %v1429, %v1506
      %v1543 = vadd.f32 %v1430, %v1507
      %v1544 = vadd.f32 %v1431, %v1508
      %v1545 = vadd.f32 %v1432, %v1509
      %v1546 = vadd.f32 %v1433, %v1510
      %v1547 = vadd.f32 %v1434, %v1511
      %v1548 = vadd.f32 %v1435, %v1512
      %v1549 = vadd.f32 %v1436, %v1513
      %v1550 = vadd.f32 %v1437, %v1514
      %v1551 = vadd.f32 %v1438, %v1515
      %v1552 = vadd.f32 %v1439, %v1516
      %v1553 = vadd.f32 %v1440, %v1517
      %v1554 = vadd.f32 %v1441, %v1518
      %v1555 = vld [vmem:[#allocation2 + $0x14] sm:$0xff]
      %v1556 = vld [vmem:[#allocation2 + $0x1c] sm:$0xff]
      %v1557 = vld [vmem:[#allocation2 + $0x24] sm:$0xff]
      %v1558 = vld [vmem:[#allocation2 + $0x2c] sm:$0xff]
      %v1559 = vld [vmem:[#allocation2 + $0x34] sm:$0xff]
      %v1560 = vld [vmem:[#allocation2 + $0x3c] sm:$0xff]
      %v1561 = vld [vmem:[#allocation2 + $0x44] sm:$0xff]
      %v1562 = vld [vmem:[#allocation2 + $0x4c] sm:$0xff]
      %v1563 = vld [vmem:[#allocation2 + $0x54] sm:$0xff]
      %v1564 = vld [vmem:[#allocation2 + $0x5c] sm:$0xff]
      %v1565 = vld [vmem:[#allocation2 + $0x64] sm:$0xff]
      %v1566 = vld [vmem:[#allocation2 + $0x6c] sm:$0xff]
      %v1567 = vld [vmem:[#allocation2 + $0x74] sm:$0xff]
      %v1568 = vld [vmem:[#allocation2 + $0x7c] sm:$0xff]
      %v1569 = vld [vmem:[#allocation2 + $0x84] sm:$0xff]
      %v1570 = vld [vmem:[#allocation2 + $0x8c] sm:$0xff]
      %v1571 = vld [vmem:[#allocation2 + $0x94] sm:$0xff]
      %v1572 = vld [vmem:[#allocation2 + $0x9c] sm:$0xff]
      %v1573 = vld [vmem:[#allocation2 + $0xa4] sm:$0xff]
      %v1574 = vld [vmem:[#allocation2 + $0xac] sm:$0xff]
      %v1575 = vld [vmem:[#allocation2 + $0xb4] sm:$0xff]
      %v1576 = vld [vmem:[#allocation2 + $0xbc] sm:$0xff]
      %v1577 = vld [vmem:[#allocation2 + $0xc4] sm:$0xff]
      %v1578 = vld [vmem:[#allocation2 + $0xcc] sm:$0xff]
      %v1579 = vld [vmem:[#allocation2 + $0xd4] sm:$0xff]
      %v1580 = vld [vmem:[#allocation2 + $0xdc] sm:$0xff]
      %v1581 = vld [vmem:[#allocation2 + $0xe4] sm:$0xff]
      %v1582 = vld [vmem:[#allocation2 + $0xec] sm:$0xff]
      %v1583 = vld [vmem:[#allocation2 + $0xf4] sm:$0xff]
      %v1584 = vld [vmem:[#allocation2 + $0xfc] sm:$0xff]
      %v1585 = vld [vmem:[#allocation2 + $0x104] sm:$0xff]
      %v1586 = vld [vmem:[#allocation2 + $0x10c] sm:$0xff]
      %v1587 = vld [vmem:[#allocation2 + $0x114] sm:$0xff]
      %v1588 = vld [vmem:[#allocation2 + $0x11c] sm:$0xff]
      %v1589 = vld [vmem:[#allocation2 + $0x124] sm:$0xff]
      %v1590 = vld [vmem:[#allocation2 + $0x12c] sm:$0xff]
      %v1591 = vld [vmem:[%s1364 + $0x2] sm:$0x1]
      %v1592 = vlaneseq
      %v1593 = vshrl.u32 %v1592, 7
      %v1594 = vsub.s32 0, %v1593
      %v1595 = vrot.slane %v1591, %v1594
      %v1596 = vmul.f32 %v1555, %v1595
      %v1597 = vmul.f32 %v1556, %v1595
      %v1598 = vmul.f32 %v1557, %v1595
      %v1599 = vmul.f32 %v1558, %v1595
      %v1600 = vmul.f32 %v1559, %v1595
      %v1601 = vmul.f32 %v1560, %v1595
      %v1602 = vmul.f32 %v1561, %v1595
      %v1603 = vmul.f32 %v1562, %v1595
      %v1604 = vmul.f32 %v1563, %v1595
      %v1605 = vmul.f32 %v1564, %v1595
      %v1606 = vmul.f32 %v1565, %v1595
      %v1607 = vmul.f32 %v1566, %v1595
      %v1608 = vmul.f32 %v1567, %v1595
      %v1609 = vmul.f32 %v1568, %v1595
      %v1610 = vmul.f32 %v1569, %v1595
      %v1611 = vmul.f32 %v1570, %v1595
      %v1612 = vmul.f32 %v1571, %v1595
      %v1613 = vmul.f32 %v1572, %v1595
      %v1614 = vmul.f32 %v1573, %v1595
      %v1615 = vmul.f32 %v1574, %v1595
      %v1616 = vmul.f32 %v1575, %v1595
      %v1617 = vmul.f32 %v1576, %v1595
      %v1618 = vmul.f32 %v1577, %v1595
      %v1619 = vmul.f32 %v1578, %v1595
      %v1620 = vmul.f32 %v1579, %v1595
      %v1621 = vmul.f32 %v1580, %v1595
      %v1622 = vmul.f32 %v1581, %v1595
      %v1623 = vmul.f32 %v1582, %v1595
      %v1624 = vmul.f32 %v1583, %v1595
      %v1625 = vmul.f32 %v1584, %v1595
      %v1626 = vmul.f32 %v1585, %v1595
      %v1627 = vmul.f32 %v1586, %v1595
      %v1628 = vmul.f32 %v1587, %v1595
      %v1629 = vmul.f32 %v1588, %v1595
      %v1630 = vmul.f32 %v1589, %v1595
      %v1631 = vmul.f32 %v1590, %v1595
      %v1632 = vadd.f32 %v1519, %v1596
      %v1633 = vadd.f32 %v1520, %v1597
      %v1634 = vadd.f32 %v1521, %v1598
      %v1635 = vadd.f32 %v1522, %v1599
      %v1636 = vadd.f32 %v1523, %v1600
      %v1637 = vadd.f32 %v1524, %v1601
      %v1638 = vadd.f32 %v1525, %v1602
      %v1639 = vadd.f32 %v1526, %v1603
      %v1640 = vadd.f32 %v1527, %v1604
      %v1641 = vadd.f32 %v1528, %v1605
      %v1642 = vadd.f32 %v1529, %v1606
      %v1643 = vadd.f32 %v1530, %v1607
      %v1644 = vadd.f32 %v1531, %v1608
      %v1645 = vadd.f32 %v1532, %v1609
      %v1646 = vadd.f32 %v1533, %v1610
      %v1647 = vadd.f32 %v1534, %v1611
      %v1648 = vadd.f32 %v1535, %v1612
      %v1649 = vadd.f32 %v1536, %v1613
      %v1650 = vadd.f32 %v1537, %v1614
      %v1651 = vadd.f32 %v1538, %v1615
      %v1652 = vadd.f32 %v1539, %v1616
      %v1653 = vadd.f32 %v1540, %v1617
      %v1654 = vadd.f32 %v1541, %v1618
      %v1655 = vadd.f32 %v1542, %v1619
      %v1656 = vadd.f32 %v1543, %v1620
      %v1657 = vadd.f32 %v1544, %v1621
      %v1658 = vadd.f32 %v1545, %v1622
      %v1659 = vadd.f32 %v1546, %v1623
      %v1660 = vadd.f32 %v1547, %v1624
      %v1661 = vadd.f32 %v1548, %v1625
      %v1662 = vadd.f32 %v1549, %v1626
      %v1663 = vadd.f32 %v1550, %v1627
      %v1664 = vadd.f32 %v1551, %v1628
      %v1665 = vadd.f32 %v1552, %v1629
      %v1666 = vadd.f32 %v1553, %v1630
      %v1667 = vadd.f32 %v1554, %v1631
      %v1668 = vld [vmem:[#allocation2 + $0x134] sm:$0xff]
      %v1669 = vld [vmem:[#allocation2 + $0x13c] sm:$0xff]
      %s1670 = scalar_lea.vmem %s3, 8
      %v1671 = vld [vmem:[%s1670] sm:$0x1]
      %v1672 = vlaneseq
      %v1673 = vshrl.u32 %v1672, 7
      %v1674 = vsub.s32 0, %v1673
      %v1675 = vrot.slane %v1671, %v1674
      %v1676 = vmul.f32 %v1557, %v1675
      %v1677 = vmul.f32 %v1558, %v1675
      %v1678 = vmul.f32 %v1559, %v1675
      %v1679 = vmul.f32 %v1560, %v1675
      %v1680 = vmul.f32 %v1561, %v1675
      %v1681 = vmul.f32 %v1562, %v1675
      %v1682 = vmul.f32 %v1563, %v1675
      %v1683 = vmul.f32 %v1564, %v1675
      %v1684 = vmul.f32 %v1565, %v1675
      %v1685 = vmul.f32 %v1566, %v1675
      %v1686 = vmul.f32 %v1567, %v1675
      %v1687 = vmul.f32 %v1568, %v1675
      %v1688 = vmul.f32 %v1569, %v1675
      %v1689 = vmul.f32 %v1570, %v1675
      %v1690 = vmul.f32 %v1571, %v1675
      %v1691 = vmul.f32 %v1572, %v1675
      %v1692 = vmul.f32 %v1573, %v1675
      %v1693 = vmul.f32 %v1574, %v1675
      %v1694 = vmul.f32 %v1575, %v1675
      %v1695 = vmul.f32 %v1576, %v1675
      %v1696 = vmul.f32 %v1577, %v1675
      %v1697 = vmul.f32 %v1578, %v1675
      %v1698 = vmul.f32 %v1579, %v1675
      %v1699 = vmul.f32 %v1580, %v1675
      %v1700 = vmul.f32 %v1581, %v1675
      %v1701 = vmul.f32 %v1582, %v1675
      %v1702 = vmul.f32 %v1583, %v1675
      %v1703 = vmul.f32 %v1584, %v1675
      %v1704 = vmul.f32 %v1585, %v1675
      %v1705 = vmul.f32 %v1586, %v1675
      %v1706 = vmul.f32 %v1587, %v1675
      %v1707 = vmul.f32 %v1588, %v1675
      %v1708 = vmul.f32 %v1589, %v1675
      %v1709 = vmul.f32 %v1590, %v1675
      %v1710 = vmul.f32 %v1668, %v1675
      %v1711 = vmul.f32 %v1669, %v1675
      %v1712 = vadd.f32 %v1632, %v1676
      %v1713 = vadd.f32 %v1633, %v1677
      %v1714 = vadd.f32 %v1634, %v1678
      %v1715 = vadd.f32 %v1635, %v1679
      %v1716 = vadd.f32 %v1636, %v1680
      %v1717 = vadd.f32 %v1637, %v1681
      %v1718 = vadd.f32 %v1638, %v1682
      %v1719 = vadd.f32 %v1639, %v1683
      %v1720 = vadd.f32 %v1640, %v1684
      %v1721 = vadd.f32 %v1641, %v1685
      %v1722 = vadd.f32 %v1642, %v1686
      %v1723 = vadd.f32 %v1643, %v1687
      %v1724 = vadd.f32 %v1644, %v1688
      %v1725 = vadd.f32 %v1645, %v1689
      %v1726 = vadd.f32 %v1646, %v1690
      %v1727 = vadd.f32 %v1647, %v1691
      %v1728 = vadd.f32 %v1648, %v1692
      %v1729 = vadd.f32 %v1649, %v1693
      %v1730 = vadd.f32 %v1650, %v1694
      %v1731 = vadd.f32 %v1651, %v1695
      %v1732 = vadd.f32 %v1652, %v1696
      %v1733 = vadd.f32 %v1653, %v1697
      %v1734 = vadd.f32 %v1654, %v1698
      %v1735 = vadd.f32 %v1655, %v1699
      %v1736 = vadd.f32 %v1656, %v1700
      %v1737 = vadd.f32 %v1657, %v1701
      %v1738 = vadd.f32 %v1658, %v1702
      %v1739 = vadd.f32 %v1659, %v1703
      %v1740 = vadd.f32 %v1660, %v1704
      %v1741 = vadd.f32 %v1661, %v1705
      %v1742 = vadd.f32 %v1662, %v1706
      %v1743 = vadd.f32 %v1663, %v1707
      %v1744 = vadd.f32 %v1664, %v1708
      %v1745 = vadd.f32 %v1665, %v1709
      %v1746 = vadd.f32 %v1666, %v1710
      %v1747 = vadd.f32 %v1667, %v1711
      %v1748 = vld [vmem:[#allocation2 + $0x25] sm:$0xff]
      %v1749 = vld [vmem:[#allocation2 + $0x2d] sm:$0xff]
      %v1750 = vld [vmem:[#allocation2 + $0x35] sm:$0xff]
      %v1751 = vld [vmem:[#allocation2 + $0x3d] sm:$0xff]
      %v1752 = vld [vmem:[#allocation2 + $0x45] sm:$0xff]
      %v1753 = vld [vmem:[#allocation2 + $0x4d] sm:$0xff]
      %v1754 = vld [vmem:[#allocation2 + $0x55] sm:$0xff]
      %v1755 = vld [vmem:[#allocation2 + $0x5d] sm:$0xff]
      %v1756 = vld [vmem:[#allocation2 + $0x65] sm:$0xff]
      %v1757 = vld [vmem:[#allocation2 + $0x6d] sm:$0xff]
      %v1758 = vld [vmem:[#allocation2 + $0x75] sm:$0xff]
      %v1759 = vld [vmem:[#allocation2 + $0x7d] sm:$0xff]
      %v1760 = vld [vmem:[#allocation2 + $0x85] sm:$0xff]
      %v1761 = vld [vmem:[#allocation2 + $0x8d] sm:$0xff]
      %v1762 = vld [vmem:[#allocation2 + $0x95] sm:$0xff]
      %v1763 = vld [vmem:[#allocation2 + $0x9d] sm:$0xff]
      %v1764 = vld [vmem:[#allocation2 + $0xa5] sm:$0xff]
      %v1765 = vld [vmem:[#allocation2 + $0xad] sm:$0xff]
      %v1766 = vld [vmem:[#allocation2 + $0xb5] sm:$0xff]
      %v1767 = vld [vmem:[#allocation2 + $0xbd] sm:$0xff]
      %v1768 = vld [vmem:[#allocation2 + $0xc5] sm:$0xff]
      %v1769 = vld [vmem:[#allocation2 + $0xcd] sm:$0xff]
      %v1770 = vld [vmem:[#allocation2 + $0xd5] sm:$0xff]
      %v1771 = vld [vmem:[#allocation2 + $0xdd] sm:$0xff]
      %v1772 = vld [vmem:[#allocation2 + $0xe5] sm:$0xff]
      %v1773 = vld [vmem:[#allocation2 + $0xed] sm:$0xff]
      %v1774 = vld [vmem:[#allocation2 + $0xf5] sm:$0xff]
      %v1775 = vld [vmem:[#allocation2 + $0xfd] sm:$0xff]
      %v1776 = vld [vmem:[#allocation2 + $0x105] sm:$0xff]
      %v1777 = vld [vmem:[#allocation2 + $0x10d] sm:$0xff]
      %v1778 = vld [vmem:[#allocation2 + $0x115] sm:$0xff]
      %v1779 = vld [vmem:[#allocation2 + $0x11d] sm:$0xff]
      %v1780 = vld [vmem:[#allocation2 + $0x125] sm:$0xff]
      %v1781 = vld [vmem:[#allocation2 + $0x12d] sm:$0xff]
      %v1782 = vld [vmem:[#allocation2 + $0x135] sm:$0xff]
      %v1783 = vld [vmem:[#allocation2 + $0x13d] sm:$0xff]
      %v1784 = vld [vmem:[%s1670 + $0x1] sm:$0x1]
      %v1785 = vlaneseq
      %v1786 = vshrl.u32 %v1785, 7
      %v1787 = vsub.s32 0, %v1786
      %v1788 = vrot.slane %v1784, %v1787
      %v1789 = vmul.f32 %v1748, %v1788
      %v1790 = vmul.f32 %v1749, %v1788
      %v1791 = vmul.f32 %v1750, %v1788
      %v1792 = vmul.f32 %v1751, %v1788
      %v1793 = vmul.f32 %v1752, %v1788
      %v1794 = vmul.f32 %v1753, %v1788
      %v1795 = vmul.f32 %v1754, %v1788
      %v1796 = vmul.f32 %v1755, %v1788
      %v1797 = vmul.f32 %v1756, %v1788
      %v1798 = vmul.f32 %v1757, %v1788
      %v1799 = vmul.f32 %v1758, %v1788
      %v1800 = vmul.f32 %v1759, %v1788
      %v1801 = vmul.f32 %v1760, %v1788
      %v1802 = vmul.f32 %v1761, %v1788
      %v1803 = vmul.f32 %v1762, %v1788
      %v1804 = vmul.f32 %v1763, %v1788
      %v1805 = vmul.f32 %v1764, %v1788
      %v1806 = vmul.f32 %v1765, %v1788
      %v1807 = vmul.f32 %v1766, %v1788
      %v1808 = vmul.f32 %v1767, %v1788
      %v1809 = vmul.f32 %v1768, %v1788
      %v1810 = vmul.f32 %v1769, %v1788
      %v1811 = vmul.f32 %v1770, %v1788
      %v1812 = vmul.f32 %v1771, %v1788
      %v1813 = vmul.f32 %v1772, %v1788
      %v1814 = vmul.f32 %v1773, %v1788
      %v1815 = vmul.f32 %v1774, %v1788
      %v1816 = vmul.f32 %v1775, %v1788
      %v1817 = vmul.f32 %v1776, %v1788
      %v1818 = vmul.f32 %v1777, %v1788
      %v1819 = vmul.f32 %v1778, %v1788
      %v1820 = vmul.f32 %v1779, %v1788
      %v1821 = vmul.f32 %v1780, %v1788
      %v1822 = vmul.f32 %v1781, %v1788
      %v1823 = vmul.f32 %v1782, %v1788
      %v1824 = vmul.f32 %v1783, %v1788
      %v1825 = vadd.f32 %v1712, %v1789
      %v1826 = vadd.f32 %v1713, %v1790
      %v1827 = vadd.f32 %v1714, %v1791
      %v1828 = vadd.f32 %v1715, %v1792
      %v1829 = vadd.f32 %v1716, %v1793
      %v1830 = vadd.f32 %v1717, %v1794
      %v1831 = vadd.f32 %v1718, %v1795
      %v1832 = vadd.f32 %v1719, %v1796
      %v1833 = vadd.f32 %v1720, %v1797
      %v1834 = vadd.f32 %v1721, %v1798
      %v1835 = vadd.f32 %v1722, %v1799
      %v1836 = vadd.f32 %v1723, %v1800
      %v1837 = vadd.f32 %v1724, %v1801
      %v1838 = vadd.f32 %v1725, %v1802
      %v1839 = vadd.f32 %v1726, %v1803
      %v1840 = vadd.f32 %v1727, %v1804
      %v1841 = vadd.f32 %v1728, %v1805
      %v1842 = vadd.f32 %v1729, %v1806
      %v1843 = vadd.f32 %v1730, %v1807
      %v1844 = vadd.f32 %v1731, %v1808
      %v1845 = vadd.f32 %v1732, %v1809
      %v1846 = vadd.f32 %v1733, %v1810
      %v1847 = vadd.f32 %v1734, %v1811
      %v1848 = vadd.f32 %v1735, %v1812
      %v1849 = vadd.f32 %v1736, %v1813
      %v1850 = vadd.f32 %v1737, %v1814
      %v1851 = vadd.f32 %v1738, %v1815
      %v1852 = vadd.f32 %v1739, %v1816
      %v1853 = vadd.f32 %v1740, %v1817
      %v1854 = vadd.f32 %v1741, %v1818
      %v1855 = vadd.f32 %v1742, %v1819
      %v1856 = vadd.f32 %v1743, %v1820
      %v1857 = vadd.f32 %v1744, %v1821
      %v1858 = vadd.f32 %v1745, %v1822
      %v1859 = vadd.f32 %v1746, %v1823
      %v1860 = vadd.f32 %v1747, %v1824
      %v1861 = vld [vmem:[#allocation2 + $0x26] sm:$0xff]
      %v1862 = vld [vmem:[#allocation2 + $0x2e] sm:$0xff]
      %v1863 = vld [vmem:[#allocation2 + $0x36] sm:$0xff]
      %v1864 = vld [vmem:[#allocation2 + $0x3e] sm:$0xff]
      %v1865 = vld [vmem:[#allocation2 + $0x46] sm:$0xff]
      %v1866 = vld [vmem:[#allocation2 + $0x4e] sm:$0xff]
      %v1867 = vld [vmem:[#allocation2 + $0x56] sm:$0xff]
      %v1868 = vld [vmem:[#allocation2 + $0x5e] sm:$0xff]
      %v1869 = vld [vmem:[#allocation2 + $0x66] sm:$0xff]
      %v1870 = vld [vmem:[#allocation2 + $0x6e] sm:$0xff]
      %v1871 = vld [vmem:[#allocation2 + $0x76] sm:$0xff]
      %v1872 = vld [vmem:[#allocation2 + $0x7e] sm:$0xff]
      %v1873 = vld [vmem:[#allocation2 + $0x86] sm:$0xff]
      %v1874 = vld [vmem:[#allocation2 + $0x8e] sm:$0xff]
      %v1875 = vld [vmem:[#allocation2 + $0x96] sm:$0xff]
      %v1876 = vld [vmem:[#allocation2 + $0x9e] sm:$0xff]
      %v1877 = vld [vmem:[#allocation2 + $0xa6] sm:$0xff]
      %v1878 = vld [vmem:[#allocation2 + $0xae] sm:$0xff]
      %v1879 = vld [vmem:[#allocation2 + $0xb6] sm:$0xff]
      %v1880 = vld [vmem:[#allocation2 + $0xbe] sm:$0xff]
      %v1881 = vld [vmem:[#allocation2 + $0xc6] sm:$0xff]
      %v1882 = vld [vmem:[#allocation2 + $0xce] sm:$0xff]
      %v1883 = vld [vmem:[#allocation2 + $0xd6] sm:$0xff]
      %v1884 = vld [vmem:[#allocation2 + $0xde] sm:$0xff]
      %v1885 = vld [vmem:[#allocation2 + $0xe6] sm:$0xff]
      %v1886 = vld [vmem:[#allocation2 + $0xee] sm:$0xff]
      %v1887 = vld [vmem:[#allocation2 + $0xf6] sm:$0xff]
      %v1888 = vld [vmem:[#allocation2 + $0xfe] sm:$0xff]
      %v1889 = vld [vmem:[#allocation2 + $0x106] sm:$0xff]
      %v1890 = vld [vmem:[#allocation2 + $0x10e] sm:$0xff]
      %v1891 = vld [vmem:[#allocation2 + $0x116] sm:$0xff]
      %v1892 = vld [vmem:[#allocation2 + $0x11e] sm:$0xff]
      %v1893 = vld [vmem:[#allocation2 + $0x126] sm:$0xff]
      %v1894 = vld [vmem:[#allocation2 + $0x12e] sm:$0xff]
      %v1895 = vld [vmem:[#allocation2 + $0x136] sm:$0xff]
      %v1896 = vld [vmem:[#allocation2 + $0x13e] sm:$0xff]
      %v1897 = vld [vmem:[%s1670 + $0x2] sm:$0x1]
      %v1898 = vlaneseq
      %v1899 = vshrl.u32 %v1898, 7
      %v1900 = vsub.s32 0, %v1899
      %v1901 = vrot.slane %v1897, %v1900
      %v1902 = vmul.f32 %v1861, %v1901
      %v1903 = vmul.f32 %v1862, %v1901
      %v1904 = vmul.f32 %v1863, %v1901
      %v1905 = vmul.f32 %v1864, %v1901
      %v1906 = vmul.f32 %v1865, %v1901
      %v1907 = vmul.f32 %v1866, %v1901
      %v1908 = vmul.f32 %v1867, %v1901
      %v1909 = vmul.f32 %v1868, %v1901
      %v1910 = vmul.f32 %v1869, %v1901
      %v1911 = vmul.f32 %v1870, %v1901
      %v1912 = vmul.f32 %v1871, %v1901
      %v1913 = vmul.f32 %v1872, %v1901
      %v1914 = vmul.f32 %v1873, %v1901
      %v1915 = vmul.f32 %v1874, %v1901
      %v1916 = vmul.f32 %v1875, %v1901
      %v1917 = vmul.f32 %v1876, %v1901
      %v1918 = vmul.f32 %v1877, %v1901
      %v1919 = vmul.f32 %v1878, %v1901
      %v1920 = vmul.f32 %v1879, %v1901
      %v1921 = vmul.f32 %v1880, %v1901
      %v1922 = vmul.f32 %v1881, %v1901
      %v1923 = vmul.f32 %v1882, %v1901
      %v1924 = vmul.f32 %v1883, %v1901
      %v1925 = vmul.f32 %v1884, %v1901
      %v1926 = vmul.f32 %v1885, %v1901
      %v1927 = vmul.f32 %v1886, %v1901
      %v1928 = vmul.f32 %v1887, %v1901
      %v1929 = vmul.f32 %v1888, %v1901
      %v1930 = vmul.f32 %v1889, %v1901
      %v1931 = vmul.f32 %v1890, %v1901
      %v1932 = vmul.f32 %v1891, %v1901
      %v1933 = vmul.f32 %v1892, %v1901
      %v1934 = vmul.f32 %v1893, %v1901
      %v1935 = vmul.f32 %v1894, %v1901
      %v1936 = vmul.f32 %v1895, %v1901
      %v1937 = vmul.f32 %v1896, %v1901
      %v1938 = vadd.f32 %v1825, %v1902
      %v1939 = vadd.f32 %v1826, %v1903
      %v1940 = vadd.f32 %v1827, %v1904
      %v1941 = vadd.f32 %v1828, %v1905
      %v1942 = vadd.f32 %v1829, %v1906
      %v1943 = vadd.f32 %v1830, %v1907
      %v1944 = vadd.f32 %v1831, %v1908
      %v1945 = vadd.f32 %v1832, %v1909
      %v1946 = vadd.f32 %v1833, %v1910
      %v1947 = vadd.f32 %v1834, %v1911
      %v1948 = vadd.f32 %v1835, %v1912
      %v1949 = vadd.f32 %v1836, %v1913
      %v1950 = vadd.f32 %v1837, %v1914
      %v1951 = vadd.f32 %v1838, %v1915
      %v1952 = vadd.f32 %v1839, %v1916
      %v1953 = vadd.f32 %v1840, %v1917
      %v1954 = vadd.f32 %v1841, %v1918
      %v1955 = vadd.f32 %v1842, %v1919
      %v1956 = vadd.f32 %v1843, %v1920
      %v1957 = vadd.f32 %v1844, %v1921
      %v1958 = vadd.f32 %v1845, %v1922
      %v1959 = vadd.f32 %v1846, %v1923
      %v1960 = vadd.f32 %v1847, %v1924
      %v1961 = vadd.f32 %v1848, %v1925
      %v1962 = vadd.f32 %v1849, %v1926
      %v1963 = vadd.f32 %v1850, %v1927
      %v1964 = vadd.f32 %v1851, %v1928
      %v1965 = vadd.f32 %v1852, %v1929
      %v1966 = vadd.f32 %v1853, %v1930
      %v1967 = vadd.f32 %v1854, %v1931
      %v1968 = vadd.f32 %v1855, %v1932
      %v1969 = vadd.f32 %v1856, %v1933
      %v1970 = vadd.f32 %v1857, %v1934
      %v1971 = vadd.f32 %v1858, %v1935
      %v1972 = vadd.f32 %v1859, %v1936
      %v1973 = vadd.f32 %v1860, %v1937
      %v1974 = vld [vmem:[%s4] sm:$0x1]
      %v1976 = vlaneseq
      %v1977 = vshrl.u32 %v1976, 7
      %v1978 = vsub.s32 0, %v1977
      %v1979 = vrot.slane %v1974, %v1978
      %v1981 = vadd.f32 %v1938, %v1979
      %v1982 = vadd.f32 %v1939, %v1979
      %v1983 = vadd.f32 %v1940, %v1979
      %v1984 = vadd.f32 %v1941, %v1979
      %v1985 = vadd.f32 %v1942, %v1979
      %v1986 = vadd.f32 %v1943, %v1979
      %v1987 = vadd.f32 %v1944, %v1979
      %v1988 = vadd.f32 %v1945, %v1979
      %v1989 = vadd.f32 %v1946, %v1979
      %v1990 = vadd.f32 %v1947, %v1979
      %v1991 = vadd.f32 %v1948, %v1979
      %v1992 = vadd.f32 %v1949, %v1979
      %v1993 = vadd.f32 %v1950, %v1979
      %v1994 = vadd.f32 %v1951, %v1979
      %v1995 = vadd.f32 %v1952, %v1979
      %v1996 = vadd.f32 %v1953, %v1979
      %v1997 = vadd.f32 %v1954, %v1979
      %v1998 = vadd.f32 %v1955, %v1979
      %v1999 = vadd.f32 %v1956, %v1979
      %v2000 = vadd.f32 %v1957, %v1979
      %v2001 = vadd.f32 %v1958, %v1979
      %v2002 = vadd.f32 %v1959, %v1979
      %v2003 = vadd.f32 %v1960, %v1979
      %v2004 = vadd.f32 %v1961, %v1979
      %v2005 = vadd.f32 %v1962, %v1979
      %v2006 = vadd.f32 %v1963, %v1979
      %v2007 = vadd.f32 %v1964, %v1979
      %v2008 = vadd.f32 %v1965, %v1979
      %v2009 = vadd.f32 %v1966, %v1979
      %v2010 = vadd.f32 %v1967, %v1979
      %v2011 = vadd.f32 %v1968, %v1979
      %v2012 = vadd.f32 %v1969, %v1979
      %v2013 = vadd.f32 %v1970, %v1979
      %v2014 = vadd.f32 %v1971, %v1979
      %v2015 = vadd.f32 %v1972, %v1979
      %v2016 = vadd.f32 %v1973, %v1979
      %v2017 = vxor.u32 %v1981, 2147483648
      %v2018 = vxor.u32 %v1982, 2147483648
      %v2019 = vxor.u32 %v1983, 2147483648
      %v2020 = vxor.u32 %v1984, 2147483648
      %v2021 = vxor.u32 %v1985, 2147483648
      %v2022 = vxor.u32 %v1986, 2147483648
      %v2023 = vxor.u32 %v1987, 2147483648
      %v2024 = vxor.u32 %v1988, 2147483648
      %v2025 = vxor.u32 %v1989, 2147483648
      %v2026 = vxor.u32 %v1990, 2147483648
      %v2027 = vxor.u32 %v1991, 2147483648
      %v2028 = vxor.u32 %v1992, 2147483648
      %v2029 = vxor.u32 %v1993, 2147483648
      %v2030 = vxor.u32 %v1994, 2147483648
      %v2031 = vxor.u32 %v1995, 2147483648
      %v2032 = vxor.u32 %v1996, 2147483648
      %v2033 = vxor.u32 %v1997, 2147483648
      %v2034 = vxor.u32 %v1998, 2147483648
      %v2035 = vxor.u32 %v1999, 2147483648
      %v2036 = vxor.u32 %v2000, 2147483648
      %v2037 = vxor.u32 %v2001, 2147483648
      %v2038 = vxor.u32 %v2002, 2147483648
      %v2039 = vxor.u32 %v2003, 2147483648
      %v2040 = vxor.u32 %v2004, 2147483648
      %v2041 = vxor.u32 %v2005, 2147483648
      %v2042 = vxor.u32 %v2006, 2147483648
      %v2043 = vxor.u32 %v2007, 2147483648
      %v2044 = vxor.u32 %v2008, 2147483648
      %v2045 = vxor.u32 %v2009, 2147483648
      %v2046 = vxor.u32 %v2010, 2147483648
      %v2047 = vxor.u32 %v2011, 2147483648
      %v2048 = vxor.u32 %v2012, 2147483648
      %v2049 = vxor.u32 %v2013, 2147483648
      %v2050 = vxor.u32 %v2014, 2147483648
      %v2051 = vxor.u32 %v2015, 2147483648
      %v2052 = vxor.u32 %v2016, 2147483648
      %v2053 = vmul.f32 %v2017, 1.442695
      %v2054 = vpow.pop %v2053
      %v2055 = vmul.f32 %v2018, 1.442695
      %v2056 = vpow.pop %v2055
      %v2057 = vmul.f32 %v2019, 1.442695
      %v2058 = vpow.pop %v2057
      %v2059 = vmul.f32 %v2020, 1.442695
      %v2060 = vpow.pop %v2059
      %v2061 = vmul.f32 %v2021, 1.442695
      %v2062 = vpow.pop %v2061
      %v2063 = vmul.f32 %v2022, 1.442695
      %v2064 = vpow.pop %v2063
      %v2065 = vmul.f32 %v2023, 1.442695
      %v2066 = vpow.pop %v2065
      %v2067 = vmul.f32 %v2024, 1.442695
      %v2068 = vpow.pop %v2067
      %v2069 = vmul.f32 %v2025, 1.442695
      %v2070 = vpow.pop %v2069
      %v2071 = vmul.f32 %v2026, 1.442695
      %v2072 = vpow.pop %v2071
      %v2073 = vmul.f32 %v2027, 1.442695
      %v2074 = vpow.pop %v2073
      %v2075 = vmul.f32 %v2028, 1.442695
      %v2076 = vpow.pop %v2075
      %v2077 = vmul.f32 %v2029, 1.442695
      %v2078 = vpow.pop %v2077
      %v2079 = vmul.f32 %v2030, 1.442695
      %v2080 = vpow.pop %v2079
      %v2081 = vmul.f32 %v2031, 1.442695
      %v2082 = vpow.pop %v2081
      %v2083 = vmul.f32 %v2032, 1.442695
      %v2084 = vpow.pop %v2083
      %v2085 = vmul.f32 %v2033, 1.442695
      %v2086 = vpow.pop %v2085
      %v2087 = vmul.f32 %v2034, 1.442695
      %v2088 = vpow.pop %v2087
      %v2089 = vmul.f32 %v2035, 1.442695
      %v2090 = vpow.pop %v2089
      %v2091 = vmul.f32 %v2036, 1.442695
      %v2092 = vpow.pop %v2091
      %v2093 = vmul.f32 %v2037, 1.442695
      %v2094 = vpow.pop %v2093
      %v2095 = vmul.f32 %v2038, 1.442695
      %v2096 = vpow.pop %v2095
      %v2097 = vmul.f32 %v2039, 1.442695
      %v2098 = vpow.pop %v2097
      %v2099 = vmul.f32 %v2040, 1.442695
      %v2100 = vpow.pop %v2099
      %v2101 = vmul.f32 %v2041, 1.442695
      %v2102 = vpow.pop %v2101
      %v2103 = vmul.f32 %v2042, 1.442695
      %v2104 = vpow.pop %v2103
      %v2105 = vmul.f32 %v2043, 1.442695
      %v2106 = vpow.pop %v2105
      %v2107 = vmul.f32 %v2044, 1.442695
      %v2108 = vpow.pop %v2107
      %v2109 = vmul.f32 %v2045, 1.442695
      %v2110 = vpow.pop %v2109
      %v2111 = vmul.f32 %v2046, 1.442695
      %v2112 = vpow.pop %v2111
      %v2113 = vmul.f32 %v2047, 1.442695
      %v2114 = vpow.pop %v2113
      %v2115 = vmul.f32 %v2048, 1.442695
      %v2116 = vpow.pop %v2115
      %v2117 = vmul.f32 %v2049, 1.442695
      %v2118 = vpow.pop %v2117
      %v2119 = vmul.f32 %v2050, 1.442695
      %v2120 = vpow.pop %v2119
      %v2121 = vmul.f32 %v2051, 1.442695
      %v2122 = vpow.pop %v2121
      %v2123 = vmul.f32 %v2052, 1.442695
      %v2124 = vpow.pop %v2123
      %v2125 = vadd.f32 %v2054, 1.0
      %v2126 = vadd.f32 %v2056, 1.0
      %v2127 = vadd.f32 %v2058, 1.0
      %v2128 = vadd.f32 %v2060, 1.0
      %v2129 = vadd.f32 %v2062, 1.0
      %v2130 = vadd.f32 %v2064, 1.0
      %v2131 = vadd.f32 %v2066, 1.0
      %v2132 = vadd.f32 %v2068, 1.0
      %v2133 = vadd.f32 %v2070, 1.0
      %v2134 = vadd.f32 %v2072, 1.0
      %v2135 = vadd.f32 %v2074, 1.0
      %v2136 = vadd.f32 %v2076, 1.0
      %v2137 = vadd.f32 %v2078, 1.0
      %v2138 = vadd.f32 %v2080, 1.0
      %v2139 = vadd.f32 %v2082, 1.0
      %v2140 = vadd.f32 %v2084, 1.0
      %v2141 = vadd.f32 %v2086, 1.0
      %v2142 = vadd.f32 %v2088, 1.0
      %v2143 = vadd.f32 %v2090, 1.0
      %v2144 = vadd.f32 %v2092, 1.0
      %v2145 = vadd.f32 %v2094, 1.0
      %v2146 = vadd.f32 %v2096, 1.0
      %v2147 = vadd.f32 %v2098, 1.0
      %v2148 = vadd.f32 %v2100, 1.0
      %v2149 = vadd.f32 %v2102, 1.0
      %v2150 = vadd.f32 %v2104, 1.0
      %v2151 = vadd.f32 %v2106, 1.0
      %v2152 = vadd.f32 %v2108, 1.0
      %v2153 = vadd.f32 %v2110, 1.0
      %v2154 = vadd.f32 %v2112, 1.0
      %v2155 = vadd.f32 %v2114, 1.0
      %v2156 = vadd.f32 %v2116, 1.0
      %v2157 = vadd.f32 %v2118, 1.0
      %v2158 = vadd.f32 %v2120, 1.0
      %v2159 = vadd.f32 %v2122, 1.0
      %v2160 = vadd.f32 %v2124, 1.0
      %v2161 = vrcp.pop %v2125
      %v2162 = vmul.f32 1.0, %v2161
      %v2163 = vrcp.pop %v2126
      %v2164 = vmul.f32 1.0, %v2163
      %v2165 = vrcp.pop %v2127
      %v2166 = vmul.f32 1.0, %v2165
      %v2167 = vrcp.pop %v2128
      %v2168 = vmul.f32 1.0, %v2167
      %v2169 = vrcp.pop %v2129
      %v2170 = vmul.f32 1.0, %v2169
      %v2171 = vrcp.pop %v2130
      %v2172 = vmul.f32 1.0, %v2171
      %v2173 = vrcp.pop %v2131
      %v2174 = vmul.f32 1.0, %v2173
      %v2175 = vrcp.pop %v2132
      %v2176 = vmul.f32 1.0, %v2175
      %v2177 = vrcp.pop %v2133
      %v2178 = vmul.f32 1.0, %v2177
      %v2179 = vrcp.pop %v2134
      %v2180 = vmul.f32 1.0, %v2179
      %v2181 = vrcp.pop %v2135
      %v2182 = vmul.f32 1.0, %v2181
      %v2183 = vrcp.pop %v2136
      %v2184 = vmul.f32 1.0, %v2183
      %v2185 = vrcp.pop %v2137
      %v2186 = vmul.f32 1.0, %v2185
      %v2187 = vrcp.pop %v2138
      %v2188 = vmul.f32 1.0, %v2187
      %v2189 = vrcp.pop %v2139
      %v2190 = vmul.f32 1.0, %v2189
      %v2191 = vrcp.pop %v2140
      %v2192 = vmul.f32 1.0, %v2191
      %v2193 = vrcp.pop %v2141
      %v2194 = vmul.f32 1.0, %v2193
      %v2195 = vrcp.pop %v2142
      %v2196 = vmul.f32 1.0, %v2195
      %v2197 = vrcp.pop %v2143
      %v2198 = vmul.f32 1.0, %v2197
      %v2199 = vrcp.pop %v2144
      %v2200 = vmul.f32 1.0, %v2199
      %v2201 = vrcp.pop %v2145
      %v2202 = vmul.f32 1.0, %v2201
      %v2203 = vrcp.pop %v2146
      %v2204 = vmul.f32 1.0, %v2203
      %v2205 = vrcp.pop %v2147
      %v2206 = vmul.f32 1.0, %v2205
      %v2207 = vrcp.pop %v2148
      %v2208 = vmul.f32 1.0, %v2207
      %v2209 = vrcp.pop %v2149
      %v2210 = vmul.f32 1.0, %v2209
      %v2211 = vrcp.pop %v2150
      %v2212 = vmul.f32 1.0, %v2211
      %v2213 = vrcp.pop %v2151
      %v2214 = vmul.f32 1.0, %v2213
      %v2215 = vrcp.pop %v2152
      %v2216 = vmul.f32 1.0, %v2215
      %v2217 = vrcp.pop %v2153
      %v2218 = vmul.f32 1.0, %v2217
      %v2219 = vrcp.pop %v2154
      %v2220 = vmul.f32 1.0, %v2219
      %v2221 = vrcp.pop %v2155
      %v2222 = vmul.f32 1.0, %v2221
      %v2223 = vrcp.pop %v2156
      %v2224 = vmul.f32 1.0, %v2223
      %v2225 = vrcp.pop %v2157
      %v2226 = vmul.f32 1.0, %v2225
      %v2227 = vrcp.pop %v2158
      %v2228 = vmul.f32 1.0, %v2227
      %v2229 = vrcp.pop %v2159
      %v2230 = vmul.f32 1.0, %v2229
      %v2231 = vrcp.pop %v2160
      %v2232 = vmul.f32 1.0, %v2231
      %v2233 = vmul.f32 %v1981, %v2162
      %v2234 = vmul.f32 %v1982, %v2164
      %v2235 = vmul.f32 %v1983, %v2166
      %v2236 = vmul.f32 %v1984, %v2168
      %v2237 = vmul.f32 %v1985, %v2170
      %v2238 = vmul.f32 %v1986, %v2172
      %v2239 = vmul.f32 %v1987, %v2174
      %v2240 = vmul.f32 %v1988, %v2176
      %v2241 = vmul.f32 %v1989, %v2178
      %v2242 = vmul.f32 %v1990, %v2180
      %v2243 = vmul.f32 %v1991, %v2182
      %v2244 = vmul.f32 %v1992, %v2184
      %v2245 = vmul.f32 %v1993, %v2186
      %v2246 = vmul.f32 %v1994, %v2188
      %v2247 = vmul.f32 %v1995, %v2190
      %v2248 = vmul.f32 %v1996, %v2192
      %v2249 = vmul.f32 %v1997, %v2194
      %v2250 = vmul.f32 %v1998, %v2196
      %v2251 = vmul.f32 %v1999, %v2198
      %v2252 = vmul.f32 %v2000, %v2200
      %v2253 = vmul.f32 %v2001, %v2202
      %v2254 = vmul.f32 %v2002, %v2204
      %v2255 = vmul.f32 %v2003, %v2206
      %v2256 = vmul.f32 %v2004, %v2208
      %v2257 = vmul.f32 %v2005, %v2210
      %v2258 = vmul.f32 %v2006, %v2212
      %v2259 = vmul.f32 %v2007, %v2214
      %v2260 = vmul.f32 %v2008, %v2216
      %v2261 = vmul.f32 %v2009, %v2218
      %v2262 = vmul.f32 %v2010, %v2220
      %v2263 = vmul.f32 %v2011, %v2222
      %v2264 = vmul.f32 %v2012, %v2224
      %v2265 = vmul.f32 %v2013, %v2226
      %v2266 = vmul.f32 %v2014, %v2228
      %v2267 = vmul.f32 %v2015, %v2230
      %v2268 = vmul.f32 %v2016, %v2232
      %v2269 = vld [vmem:[%s5] sm:$0xff]
      %v2270 = vld [vmem:[%s5 + $0x8] sm:$0xff]
      %v2271 = vld [vmem:[%s5 + $0x10] sm:$0xff]
      %v2272 = vld [vmem:[%s5 + $0x18] sm:$0xff]
      %v2273 = vld [vmem:[%s5 + $0x20] sm:$0xff]
      %v2274 = vld [vmem:[%s5 + $0x28] sm:$0xff]
      %v2275 = vld [vmem:[%s5 + $0x30] sm:$0xff]
      %v2276 = vld [vmem:[%s5 + $0x38] sm:$0xff]
      %v2277 = vld [vmem:[%s5 + $0x40] sm:$0xff]
      %v2278 = vld [vmem:[%s5 + $0x48] sm:$0xff]
      %v2279 = vld [vmem:[%s5 + $0x50] sm:$0xff]
      %v2280 = vld [vmem:[%s5 + $0x58] sm:$0xff]
      %v2281 = vld [vmem:[%s5 + $0x60] sm:$0xff]
      %v2282 = vld [vmem:[%s5 + $0x68] sm:$0xff]
      %v2283 = vld [vmem:[%s5 + $0x70] sm:$0xff]
      %v2284 = vld [vmem:[%s5 + $0x78] sm:$0xff]
      %v2285 = vld [vmem:[%s5 + $0x80] sm:$0xff]
      %v2286 = vld [vmem:[%s5 + $0x88] sm:$0xff]
      %v2287 = vld [vmem:[%s5 + $0x90] sm:$0xff]
      %v2288 = vld [vmem:[%s5 + $0x98] sm:$0xff]
      %v2289 = vld [vmem:[%s5 + $0xa0] sm:$0xff]
      %v2290 = vld [vmem:[%s5 + $0xa8] sm:$0xff]
      %v2291 = vld [vmem:[%s5 + $0xb0] sm:$0xff]
      %v2292 = vld [vmem:[%s5 + $0xb8] sm:$0xff]
      %v2293 = vld [vmem:[%s5 + $0xc0] sm:$0xff]
      %v2294 = vld [vmem:[%s5 + $0xc8] sm:$0xff]
      %v2295 = vld [vmem:[%s5 + $0xd0] sm:$0xff]
      %v2296 = vld [vmem:[%s5 + $0xd8] sm:$0xff]
      %v2297 = vld [vmem:[%s5 + $0xe0] sm:$0xff]
      %v2298 = vld [vmem:[%s5 + $0xe8] sm:$0xff]
      %v2299 = vld [vmem:[%s5 + $0xf0] sm:$0xff]
      %v2300 = vld [vmem:[%s5 + $0xf8] sm:$0xff]
      %v2301 = vld [vmem:[%s5 + $0x100] sm:$0xff]
      %v2302 = vld [vmem:[%s5 + $0x108] sm:$0xff]
      %v2303 = vld [vmem:[%s5 + $0x110] sm:$0xff]
      %v2304 = vld [vmem:[%s5 + $0x118] sm:$0xff]
      %2306 = vset.pattern.permute.xlu0 0
      %2307 = vperm.xlu0 %2306, %v2269
      %v2308 = vpop.permute.xlu0 %2307
      %2311 = vset.pattern.permute.xlu0 0
      %2312 = vperm.xlu0 %2311, %v2270
      %v2313 = vpop.permute.xlu0 %2312
      %2316 = vset.pattern.permute.xlu0 0
      %2317 = vperm.xlu0 %2316, %v2271
      %v2318 = vpop.permute.xlu0 %2317
      %2321 = vset.pattern.permute.xlu0 0
      %2322 = vperm.xlu0 %2321, %v2272
      %v2323 = vpop.permute.xlu0 %2322
      %2326 = vset.pattern.permute.xlu0 0
      %2327 = vperm.xlu0 %2326, %v2273
      %v2328 = vpop.permute.xlu0 %2327
      %2331 = vset.pattern.permute.xlu0 0
      %2332 = vperm.xlu0 %2331, %v2274
      %v2333 = vpop.permute.xlu0 %2332
      %2336 = vset.pattern.permute.xlu0 0
      %2337 = vperm.xlu0 %2336, %v2275
      %v2338 = vpop.permute.xlu0 %2337
      %2341 = vset.pattern.permute.xlu0 0
      %2342 = vperm.xlu0 %2341, %v2276
      %v2343 = vpop.permute.xlu0 %2342
      %2346 = vset.pattern.permute.xlu0 0
      %2347 = vperm.xlu0 %2346, %v2277
      %v2348 = vpop.permute.xlu0 %2347
      %2351 = vset.pattern.permute.xlu0 0
      %2352 = vperm.xlu0 %2351, %v2278
      %v2353 = vpop.permute.xlu0 %2352
      %2356 = vset.pattern.permute.xlu0 0
      %2357 = vperm.xlu0 %2356, %v2279
      %v2358 = vpop.permute.xlu0 %2357
      %2361 = vset.pattern.permute.xlu0 0
      %2362 = vperm.xlu0 %2361, %v2280
      %v2363 = vpop.permute.xlu0 %2362
      %2366 = vset.pattern.permute.xlu0 0
      %2367 = vperm.xlu0 %2366, %v2281
      %v2368 = vpop.permute.xlu0 %2367
      %2371 = vset.pattern.permute.xlu0 0
      %2372 = vperm.xlu0 %2371, %v2282
      %v2373 = vpop.permute.xlu0 %2372
      %2376 = vset.pattern.permute.xlu0 0
      %2377 = vperm.xlu0 %2376, %v2283
      %v2378 = vpop.permute.xlu0 %2377
      %2381 = vset.pattern.permute.xlu0 0
      %2382 = vperm.xlu0 %2381, %v2284
      %v2383 = vpop.permute.xlu0 %2382
      %2386 = vset.pattern.permute.xlu0 0
      %2387 = vperm.xlu0 %2386, %v2285
      %v2388 = vpop.permute.xlu0 %2387
      %2391 = vset.pattern.permute.xlu0 0
      %2392 = vperm.xlu0 %2391, %v2286
      %v2393 = vpop.permute.xlu0 %2392
      %2396 = vset.pattern.permute.xlu0 0
      %2397 = vperm.xlu0 %2396, %v2287
      %v2398 = vpop.permute.xlu0 %2397
      %2401 = vset.pattern.permute.xlu0 0
      %2402 = vperm.xlu0 %2401, %v2288
      %v2403 = vpop.permute.xlu0 %2402
      %2406 = vset.pattern.permute.xlu0 0
      %2407 = vperm.xlu0 %2406, %v2289
      %v2408 = vpop.permute.xlu0 %2407
      %2411 = vset.pattern.permute.xlu0 0
      %2412 = vperm.xlu0 %2411, %v2290
      %v2413 = vpop.permute.xlu0 %2412
      %2416 = vset.pattern.permute.xlu0 0
      %2417 = vperm.xlu0 %2416, %v2291
      %v2418 = vpop.permute.xlu0 %2417
      %2421 = vset.pattern.permute.xlu0 0
      %2422 = vperm.xlu0 %2421, %v2292
      %v2423 = vpop.permute.xlu0 %2422
      %2426 = vset.pattern.permute.xlu0 0
      %2427 = vperm.xlu0 %2426, %v2293
      %v2428 = vpop.permute.xlu0 %2427
      %2431 = vset.pattern.permute.xlu0 0
      %2432 = vperm.xlu0 %2431, %v2294
      %v2433 = vpop.permute.xlu0 %2432
      %2436 = vset.pattern.permute.xlu0 0
      %2437 = vperm.xlu0 %2436, %v2295
      %v2438 = vpop.permute.xlu0 %2437
      %2441 = vset.pattern.permute.xlu0 0
      %2442 = vperm.xlu0 %2441, %v2296
      %v2443 = vpop.permute.xlu0 %2442
      %2446 = vset.pattern.permute.xlu0 0
      %2447 = vperm.xlu0 %2446, %v2297
      %v2448 = vpop.permute.xlu0 %2447
      %2451 = vset.pattern.permute.xlu0 0
      %2452 = vperm.xlu0 %2451, %v2298
      %v2453 = vpop.permute.xlu0 %2452
      %2456 = vset.pattern.permute.xlu0 0
      %2457 = vperm.xlu0 %2456, %v2299
      %v2458 = vpop.permute.xlu0 %2457
      %2461 = vset.pattern.permute.xlu0 0
      %2462 = vperm.xlu0 %2461, %v2300
      %v2463 = vpop.permute.xlu0 %2462
      %2466 = vset.pattern.permute.xlu0 0
      %2467 = vperm.xlu0 %2466, %v2301
      %v2468 = vpop.permute.xlu0 %2467
      %2471 = vset.pattern.permute.xlu0 0
      %2472 = vperm.xlu0 %2471, %v2302
      %v2473 = vpop.permute.xlu0 %2472
      %2476 = vset.pattern.permute.xlu0 0
      %2477 = vperm.xlu0 %2476, %v2303
      %v2478 = vpop.permute.xlu0 %2477
      %2481 = vset.pattern.permute.xlu0 0
      %2482 = vperm.xlu0 %2481, %v2304
      %v2483 = vpop.permute.xlu0 %2482
      %v2485 = vmul.f32 %v2233, %v2308
      %v2486 = vmul.f32 %v2234, %v2313
      %v2487 = vmul.f32 %v2235, %v2318
      %v2488 = vmul.f32 %v2236, %v2323
      %v2489 = vmul.f32 %v2237, %v2328
      %v2490 = vmul.f32 %v2238, %v2333
      %v2491 = vmul.f32 %v2239, %v2338
      %v2492 = vmul.f32 %v2240, %v2343
      %v2493 = vmul.f32 %v2241, %v2348
      %v2494 = vmul.f32 %v2242, %v2353
      %v2495 = vmul.f32 %v2243, %v2358
      %v2496 = vmul.f32 %v2244, %v2363
      %v2497 = vmul.f32 %v2245, %v2368
      %v2498 = vmul.f32 %v2246, %v2373
      %v2499 = vmul.f32 %v2247, %v2378
      %v2500 = vmul.f32 %v2248, %v2383
      %v2501 = vmul.f32 %v2249, %v2388
      %v2502 = vmul.f32 %v2250, %v2393
      %v2503 = vmul.f32 %v2251, %v2398
      %v2504 = vmul.f32 %v2252, %v2403
      %v2505 = vmul.f32 %v2253, %v2408
      %v2506 = vmul.f32 %v2254, %v2413
      %v2507 = vmul.f32 %v2255, %v2418
      %v2508 = vmul.f32 %v2256, %v2423
      %v2509 = vmul.f32 %v2257, %v2428
      %v2510 = vmul.f32 %v2258, %v2433
      %v2511 = vmul.f32 %v2259, %v2438
      %v2512 = vmul.f32 %v2260, %v2443
      %v2513 = vmul.f32 %v2261, %v2448
      %v2514 = vmul.f32 %v2262, %v2453
      %v2515 = vmul.f32 %v2263, %v2458
      %v2516 = vmul.f32 %v2264, %v2463
      %v2517 = vmul.f32 %v2265, %v2468
      %v2518 = vmul.f32 %v2266, %v2473
      %v2519 = vmul.f32 %v2267, %v2478
      %v2520 = vmul.f32 %v2268, %v2483
      %v2521 = vsel %vm946, %v2485, 0.0
      %v2522 = vsel %vm946, %v2486, 0.0
      %v2523 = vadd.f32 %v2521, %v2522
      %v2524 = vsel %vm946, %v2487, 0.0
      %v2525 = vadd.f32 %v2523, %v2524
      %v2526 = vsel %vm946, %v2488, 0.0
      %v2527 = vadd.f32 %v2525, %v2526
      %v2528 = vsel %vm946, %v2489, 0.0
      %v2529 = vadd.f32 %v2527, %v2528
      %v2530 = vsel %vm946, %v2490, 0.0
      %v2531 = vadd.f32 %v2529, %v2530
      %v2532 = vsel %vm946, %v2491, 0.0
      %v2533 = vadd.f32 %v2531, %v2532
      %v2534 = vsel %vm946, %v2492, 0.0
      %v2535 = vadd.f32 %v2533, %v2534
      %v2536 = vsel %vm946, %v2493, 0.0
      %v2537 = vadd.f32 %v2535, %v2536
      %v2538 = vsel %vm946, %v2494, 0.0
      %v2539 = vadd.f32 %v2537, %v2538
      %v2540 = vsel %vm946, %v2495, 0.0
      %v2541 = vadd.f32 %v2539, %v2540
      %v2542 = vsel %vm946, %v2496, 0.0
      %v2543 = vadd.f32 %v2541, %v2542
      %v2544 = vsel %vm946, %v2497, 0.0
      %v2545 = vadd.f32 %v2543, %v2544
      %v2546 = vsel %vm946, %v2498, 0.0
      %v2547 = vadd.f32 %v2545, %v2546
      %v2548 = vsel %vm946, %v2499, 0.0
      %v2549 = vadd.f32 %v2547, %v2548
      %v2550 = vsel %vm946, %v2500, 0.0
      %v2551 = vadd.f32 %v2549, %v2550
      %v2552 = vsel %vm946, %v2501, 0.0
      %v2553 = vadd.f32 %v2551, %v2552
      %v2554 = vsel %vm946, %v2502, 0.0
      %v2555 = vadd.f32 %v2553, %v2554
      %v2556 = vsel %vm946, %v2503, 0.0
      %v2557 = vadd.f32 %v2555, %v2556
      %v2558 = vsel %vm946, %v2504, 0.0
      %v2559 = vadd.f32 %v2557, %v2558
      %v2560 = vsel %vm946, %v2505, 0.0
      %v2561 = vadd.f32 %v2559, %v2560
      %v2562 = vsel %vm946, %v2506, 0.0
      %v2563 = vadd.f32 %v2561, %v2562
      %v2564 = vsel %vm946, %v2507, 0.0
      %v2565 = vadd.f32 %v2563, %v2564
      %v2566 = vsel %vm946, %v2508, 0.0
      %v2567 = vadd.f32 %v2565, %v2566
      %v2568 = vsel %vm946, %v2509, 0.0
      %v2569 = vadd.f32 %v2567, %v2568
      %v2570 = vsel %vm946, %v2510, 0.0
      %v2571 = vadd.f32 %v2569, %v2570
      %v2572 = vsel %vm946, %v2511, 0.0
      %v2573 = vadd.f32 %v2571, %v2572
      %v2574 = vsel %vm946, %v2512, 0.0
      %v2575 = vadd.f32 %v2573, %v2574
      %v2576 = vsel %vm946, %v2513, 0.0
      %v2577 = vadd.f32 %v2575, %v2576
      %v2578 = vsel %vm946, %v2514, 0.0
      %v2579 = vadd.f32 %v2577, %v2578
      %v2580 = vsel %vm946, %v2515, 0.0
      %v2581 = vadd.f32 %v2579, %v2580
      %v2582 = vsel %vm946, %v2516, 0.0
      %v2583 = vadd.f32 %v2581, %v2582
      %v2584 = vsel %vm946, %v2517, 0.0
      %v2585 = vadd.f32 %v2583, %v2584
      %v2586 = vsel %vm946, %v2518, 0.0
      %v2587 = vadd.f32 %v2585, %v2586
      %v2588 = vsel %vm946, %v2519, 0.0
      %v2589 = vadd.f32 %v2587, %v2588
      %v2590 = vsel %vm946, %v2520, 0.0
      %v2591 = vadd.f32 %v2589, %v2590
      %v2592 = vrot.slane %v2591, 4
      %v2593 = vadd.f32 %v2591, %v2592
      %v2594 = vrot.slane %v2593, 2
      %v2595 = vadd.f32 %v2593, %v2594
      %v2596 = vrot.slane %v2595, 1
      %v2597 = vadd.f32 %v2595, %v2596
      %v2598 = vld [vmem:[%s6] sm:$0xff]
      %v2599 = vld [vmem:[%s6 + $0x8] sm:$0xff]
      %v2600 = vld [vmem:[%s6 + $0x10] sm:$0xff]
      %v2601 = vld [vmem:[%s6 + $0x18] sm:$0xff]
      %v2603 = vsel %vm946, %v2597, 0
      %2605 = vmatprep.subr.mxu0 0.0
      %2606 = vmatpush1.msra.mxu0 %v2598
      %2607 = vmatprep.subr.mxu0 0.0
      %2608 = vmatpush1.msra.mxu0 %v2599
      %2609 = vmatprep.subr.mxu0 0.0
      %2610 = vmatpush1.msra.mxu0 %v2600
      %2611 = vmatprep.subr.mxu0 0.0
      %2612 = vmatpush1.msra.mxu0 %v2601
      %2613 = vmatprep.subr.mxu0 0.0
      %2614 = vmatpush1.msra.mxu0 0.0
      %2615 = vmatprep.subr.mxu0 0.0
      %2616 = vmatpush1.msra.mxu0 0.0
      %2617 = vmatprep.subr.mxu0 0.0
      %2618 = vmatpush1.msra.mxu0 0.0
      %2619 = vmatprep.subr.mxu0 0.0
      %2620 = vmatpush1.msra.mxu0 0.0
      %2621 = vmatprep.subr.mxu0 0.0
      %2622 = vmatpush1.msra.mxu0 0.0
      %2623 = vmatprep.subr.mxu0 0.0
      %2624 = vmatpush1.msra.mxu0 0.0
      %2625 = vmatprep.subr.mxu0 0.0
      %2626 = vmatpush1.msra.mxu0 0.0
      %2627 = vmatprep.subr.mxu0 0.0
      %2628 = vmatpush1.msra.mxu0 0.0
      %2629 = vmatprep.subr.mxu0 0.0
      %2630 = vmatpush1.msra.mxu0 0.0
      %2631 = vmatprep.subr.mxu0 0.0
      %2632 = vmatpush1.msra.mxu0 0.0
      %2633 = vmatprep.subr.mxu0 0.0
      %2634 = vmatpush1.msra.mxu0 0.0
      %2635 = vmatprep.subr.mxu0 0.0
      %2636 = vmatpush1.msra.mxu0 0.0
      %2637 = vmatprep.subr.mxu0 0.0
      %2638 = vmatpush1.msra.mxu0 0.0
      %2639 = vmatprep.subr.mxu0 0.0
      %2640 = vmatpush1.msra.mxu0 0.0
      %2641 = vmatprep.subr.mxu0 0.0
      %2642 = vmatpush1.msra.mxu0 0.0
      %2643 = vmatprep.subr.mxu0 0.0
      %2644 = vmatpush1.msra.mxu0 0.0
      %2645 = vmatprep.subr.mxu0 0.0
      %2646 = vmatpush1.msra.mxu0 0.0
      %2647 = vmatprep.subr.mxu0 0.0
      %2648 = vmatpush1.msra.mxu0 0.0
      %2649 = vmatprep.subr.mxu0 0.0
      %2650 = vmatpush1.msra.mxu0 0.0
      %2651 = vmatprep.subr.mxu0 0.0
      %2652 = vmatpush1.msra.mxu0 0.0
      %2653 = vmatprep.subr.mxu0 0.0
      %2654 = vmatpush1.msra.mxu0 0.0
      %2655 = vmatprep.subr.mxu0 0.0
      %2656 = vmatpush1.msra.mxu0 0.0
      %2657 = vmatprep.subr.mxu0 0.0
      %2658 = vmatpush1.msra.mxu0 0.0
      %2659 = vmatprep.subr.mxu0 0.0
      %2660 = vmatpush1.msra.mxu0 0.0
      %2661 = vmatprep.subr.mxu0 0.0
      %2662 = vmatpush1.msra.mxu0 0.0
      %2663 = vmatprep.subr.mxu0 0.0
      %2664 = vmatpush1.msra.mxu0 0.0
      %2665 = vmatprep.subr.mxu0 0.0
      %2666 = vmatpush1.msra.mxu0 0.0
      %2667 = vmatprep.subr.mxu0 0.0
      %2668 = vmatpush1.msra.mxu0 0.0
      %2669 = vmatprep.mubr.f32.mxu0 0.0
      %2670 = vmatmul.mubr.f32.gmra.mrb[0].mxu0 %v2603
      %v2671 = vpop.f32.mrb[0].mxu0
      %v2672 = vadd.f32 0.0, %v2671
      %v2673 = vpop.f32.mrb[0].mxu0
      %2674 = vdwg.mxu0
      %v2675 = vxor.u32 %v2672, 2147483648
      %v2676 = vmul.f32 %v2675, 1.442695
      %v2677 = vpow.pop %v2676
      %v2678 = vadd.f32 %v2677, 1.0
      %v2679 = vrcp.pop %v2678
      %v2680 = vmul.f32 1.0, %v2679
      %v2681 = vmul.f32 %v2672, %v2680
      %v2682 = vld [vmem:[%s7] sm:$0x3]
      %vm2683 = vcmask 15360
      %v2685 = vsel %vm2683, %v2681, 0
      %vm2687 = vcmask 1041408
      %v2689 = vsel %vm2687, %v2682, 0
      %2691 = vmatprep.subr.mxu0 0.0
      %2692 = vmatpush1.msra.mxu0 %v2689
      %2693 = vmatprep.subr.mxu0 0.0
      %2694 = vmatpush1.msra.mxu0 0.0
      %2695 = vmatprep.subr.mxu0 0.0
      %2696 = vmatpush1.msra.mxu0 0.0
      %2697 = vmatprep.subr.mxu0 0.0
      %2698 = vmatpush1.msra.mxu0 0.0
      %2699 = vmatprep.subr.mxu0 0.0
      %2700 = vmatpush1.msra.mxu0 0.0
      %2701 = vmatprep.subr.mxu0 0.0
      %2702 = vmatpush1.msra.mxu0 0.0
      %2703 = vmatprep.subr.mxu0 0.0
      %2704 = vmatpush1.msra.mxu0 0.0
      %2705 = vmatprep.subr.mxu0 0.0
      %2706 = vmatpush1.msra.mxu0 0.0
      %2707 = vmatprep.subr.mxu0 0.0
      %2708 = vmatpush1.msra.mxu0 0.0
      %2709 = vmatprep.subr.mxu0 0.0
      %2710 = vmatpush1.msra.mxu0 0.0
      %2711 = vmatprep.subr.mxu0 0.0
      %2712 = vmatpush1.msra.mxu0 0.0
      %2713 = vmatprep.subr.mxu0 0.0
      %2714 = vmatpush1.msra.mxu0 0.0
      %2715 = vmatprep.subr.mxu0 0.0
      %2716 = vmatpush1.msra.mxu0 0.0
      %2717 = vmatprep.subr.mxu0 0.0
      %2718 = vmatpush1.msra.mxu0 0.0
      %2719 = vmatprep.subr.mxu0 0.0
      %2720 = vmatpush1.msra.mxu0 0.0
      %2721 = vmatprep.subr.mxu0 0.0
      %2722 = vmatpush1.msra.mxu0 0.0
      %2723 = vmatprep.subr.mxu0 0.0
      %2724 = vmatpush1.msra.mxu0 0.0
      %2725 = vmatprep.subr.mxu0 0.0
      %2726 = vmatpush1.msra.mxu0 0.0
      %2727 = vmatprep.subr.mxu0 0.0
      %2728 = vmatpush1.msra.mxu0 0.0
      %2729 = vmatprep.subr.mxu0 0.0
      %2730 = vmatpush1.msra.mxu0 0.0
      %2731 = vmatprep.subr.mxu0 0.0
      %2732 = vmatpush1.msra.mxu0 0.0
      %2733 = vmatprep.subr.mxu0 0.0
      %2734 = vmatpush1.msra.mxu0 0.0
      %2735 = vmatprep.subr.mxu0 0.0
      %2736 = vmatpush1.msra.mxu0 0.0
      %2737 = vmatprep.subr.mxu0 0.0
      %2738 = vmatpush1.msra.mxu0 0.0
      %2739 = vmatprep.subr.mxu0 0.0
      %2740 = vmatpush1.msra.mxu0 0.0
      %2741 = vmatprep.subr.mxu0 0.0
      %2742 = vmatpush1.msra.mxu0 0.0
      %2743 = vmatprep.subr.mxu0 0.0
      %2744 = vmatpush1.msra.mxu0 0.0
      %2745 = vmatprep.subr.mxu0 0.0
      %2746 = vmatpush1.msra.mxu0 0.0
      %2747 = vmatprep.subr.mxu0 0.0
      %2748 = vmatpush1.msra.mxu0 0.0
      %2749 = vmatprep.subr.mxu0 0.0
      %2750 = vmatpush1.msra.mxu0 0.0
      %2751 = vmatprep.subr.mxu0 0.0
      %2752 = vmatpush1.msra.mxu0 0.0
      %2753 = vmatprep.subr.mxu0 0.0
      %2754 = vmatpush1.msra.mxu0 0.0
      %2755 = vmatprep.mubr.f32.mxu0 0.0
      %2756 = vmatmul.mubr.f32.gmra.mrb[0].mxu0 %v2685
      %v2757 = vpop.f32.mrb[0].mxu0
      %v2758 = vadd.f32 0.0, %v2757
      %v2759 = vpop.f32.mrb[0].mxu0
      %2760 = vdwg.mxu0
      %v2761 = vxor.u32 %v2758, 2147483648
      %v2762 = vmul.f32 %v2761, 1.442695
      %v2763 = vpow.pop %v2762
      %v2764 = vadd.f32 %v2763, 1.0
      %v2765 = vrcp.pop %v2764
      %v2766 = vmul.f32 1.0, %v2765
      %v2767 = vlaneseq
      %v2768 = vshrl.u32 %v2767, 7
      %v2769 = vsub.s32 0, %v2768
      %v2770 = vrot.slane %v2766, %v2769
      %v2771 = vmul.f32 %v2233, %v2770
      %v2772 = vmul.f32 %v2234, %v2770
      %v2773 = vmul.f32 %v2235, %v2770
      %v2774 = vmul.f32 %v2236, %v2770
      %v2775 = vmul.f32 %v2237, %v2770
      %v2776 = vmul.f32 %v2238, %v2770
      %v2777 = vmul.f32 %v2239, %v2770
      %v2778 = vmul.f32 %v2240, %v2770
      %v2779 = vmul.f32 %v2241, %v2770
      %v2780 = vmul.f32 %v2242, %v2770
      %v2781 = vmul.f32 %v2243, %v2770
      %v2782 = vmul.f32 %v2244, %v2770
      %v2783 = vmul.f32 %v2245, %v2770
      %v2784 = vmul.f32 %v2246, %v2770
      %v2785 = vmul.f32 %v2247, %v2770
      %v2786 = vmul.f32 %v2248, %v2770
      %v2787 = vmul.f32 %v2249, %v2770
      %v2788 = vmul.f32 %v2250, %v2770
      %v2789 = vmul.f32 %v2251, %v2770
      %v2790 = vmul.f32 %v2252, %v2770
      %v2791 = vmul.f32 %v2253, %v2770
      %v2792 = vmul.f32 %v2254, %v2770
      %v2793 = vmul.f32 %v2255, %v2770
      %v2794 = vmul.f32 %v2256, %v2770
      %v2795 = vmul.f32 %v2257, %v2770
      %v2796 = vmul.f32 %v2258, %v2770
      %v2797 = vmul.f32 %v2259, %v2770
      %v2798 = vmul.f32 %v2260, %v2770
      %v2799 = vmul.f32 %v2261, %v2770
      %v2800 = vmul.f32 %v2262, %v2770
      %v2801 = vmul.f32 %v2263, %v2770
      %v2802 = vmul.f32 %v2264, %v2770
      %v2803 = vmul.f32 %v2265, %v2770
      %v2804 = vmul.f32 %v2266, %v2770
      %v2805 = vmul.f32 %v2267, %v2770
      %v2806 = vmul.f32 %v2268, %v2770
      %v2807 = vld [vmem:[%s8] sm:$0xff]
      %v2808 = vld [vmem:[%s8 + $0x8] sm:$0xff]
      %v2809 = vld [vmem:[%s8 + $0x10] sm:$0xff]
      %v2810 = vld [vmem:[%s8 + $0x18] sm:$0xff]
      %v2811 = vld [vmem:[%s9] sm:$0x1]
      %v2813 = vlaneseq
      %v2814 = vshrl.u32 %v2813, 7
      %v2815 = vsub.s32 0, %v2814
      %v2816 = vrot.slane %v2811, %v2815
      %v2819 = vsel %vm946, %v2771, 0
      %v2822 = vsel %vm946, %v2772, 0
      %v2825 = vsel %vm946, %v2773, 0
      %v2828 = vsel %vm946, %v2774, 0
      %v2831 = vsel %vm946, %v2775, 0
      %v2834 = vsel %vm946, %v2776, 0
      %v2837 = vsel %vm946, %v2777, 0
      %v2840 = vsel %vm946, %v2778, 0
      %v2843 = vsel %vm946, %v2779, 0
      %v2846 = vsel %vm946, %v2780, 0
      %v2849 = vsel %vm946, %v2781, 0
      %v2852 = vsel %vm946, %v2782, 0
      %v2855 = vsel %vm946, %v2783, 0
      %v2858 = vsel %vm946, %v2784, 0
      %v2861 = vsel %vm946, %v2785, 0
      %v2864 = vsel %vm946, %v2786, 0
      %v2867 = vsel %vm946, %v2787, 0
      %v2870 = vsel %vm946, %v2788, 0
      %v2873 = vsel %vm946, %v2789, 0
      %v2876 = vsel %vm946, %v2790, 0
      %v2879 = vsel %vm946, %v2791, 0
      %v2882 = vsel %vm946, %v2792, 0
      %v2885 = vsel %vm946, %v2793, 0
      %v2888 = vsel %vm946, %v2794, 0
      %v2891 = vsel %vm946, %v2795, 0
      %v2894 = vsel %vm946, %v2796, 0
      %v2897 = vsel %vm946, %v2797, 0
      %v2900 = vsel %vm946, %v2798, 0
      %v2903 = vsel %vm946, %v2799, 0
      %v2906 = vsel %vm946, %v2800, 0
      %v2909 = vsel %vm946, %v2801, 0
      %v2912 = vsel %vm946, %v2802, 0
      %v2915 = vsel %vm946, %v2803, 0
      %v2918 = vsel %vm946, %v2804, 0
      %v2921 = vsel %vm946, %v2805, 0
      %v2924 = vsel %vm946, %v2806, 0
      %2926 = vmatprep.subr.mxu0 0.0
      %2927 = vmatpush1.msra.mxu0 %v2807
      %2928 = vmatprep.subr.mxu0 0.0
      %2929 = vmatpush1.msra.mxu0 %v2808
      %2930 = vmatprep.subr.mxu0 0.0
      %2931 = vmatpush1.msra.mxu0 %v2809
      %2932 = vmatprep.subr.mxu0 0.0
      %2933 = vmatpush1.msra.mxu0 %v2810
      %2934 = vmatprep.subr.mxu0 0.0
      %2935 = vmatpush1.msra.mxu0 0.0
      %2936 = vmatprep.subr.mxu0 0.0
      %2937 = vmatpush1.msra.mxu0 0.0
      %2938 = vmatprep.subr.mxu0 0.0
      %2939 = vmatpush1.msra.mxu0 0.0
      %2940 = vmatprep.subr.mxu0 0.0
      %2941 = vmatpush1.msra.mxu0 0.0
      %2942 = vmatprep.subr.mxu0 0.0
      %2943 = vmatpush1.msra.mxu0 0.0
      %2944 = vmatprep.subr.mxu0 0.0
      %2945 = vmatpush1.msra.mxu0 0.0
      %2946 = vmatprep.subr.mxu0 0.0
      %2947 = vmatpush1.msra.mxu0 0.0
      %2948 = vmatprep.subr.mxu0 0.0
      %2949 = vmatpush1.msra.mxu0 0.0
      %2950 = vmatprep.subr.mxu0 0.0
      %2951 = vmatpush1.msra.mxu0 0.0
      %2952 = vmatprep.subr.mxu0 0.0
      %2953 = vmatpush1.msra.mxu0 0.0
      %2954 = vmatprep.subr.mxu0 0.0
      %2955 = vmatpush1.msra.mxu0 0.0
      %2956 = vmatprep.subr.mxu0 0.0
      %2957 = vmatpush1.msra.mxu0 0.0
      %2958 = vmatprep.subr.mxu0 0.0
      %2959 = vmatpush1.msra.mxu0 0.0
      %2960 = vmatprep.subr.mxu0 0.0
      %2961 = vmatpush1.msra.mxu0 0.0
      %2962 = vmatprep.subr.mxu0 0.0
      %2963 = vmatpush1.msra.mxu0 0.0
      %2964 = vmatprep.subr.mxu0 0.0
      %2965 = vmatpush1.msra.mxu0 0.0
      %2966 = vmatprep.subr.mxu0 0.0
      %2967 = vmatpush1.msra.mxu0 0.0
      %2968 = vmatprep.subr.mxu0 0.0
      %2969 = vmatpush1.msra.mxu0 0.0
      %2970 = vmatprep.subr.mxu0 0.0
      %2971 = vmatpush1.msra.mxu0 0.0
      %2972 = vmatprep.subr.mxu0 0.0
      %2973 = vmatpush1.msra.mxu0 0.0
      %2974 = vmatprep.subr.mxu0 0.0
      %2975 = vmatpush1.msra.mxu0 0.0
      %2976 = vmatprep.subr.mxu0 0.0
      %2977 = vmatpush1.msra.mxu0 0.0
      %2978 = vmatprep.subr.mxu0 0.0
      %2979 = vmatpush1.msra.mxu0 0.0
      %2980 = vmatprep.subr.mxu0 0.0
      %2981 = vmatpush1.msra.mxu0 0.0
      %2982 = vmatprep.subr.mxu0 0.0
      %2983 = vmatpush1.msra.mxu0 0.0
      %2984 = vmatprep.subr.mxu0 0.0
      %2985 = vmatpush1.msra.mxu0 0.0
      %2986 = vmatprep.subr.mxu0 0.0
      %2987 = vmatpush1.msra.mxu0 0.0
      %2988 = vmatprep.subr.mxu0 0.0
      %2989 = vmatpush1.msra.mxu0 0.0
      %2990 = vmatprep.mubr.f32.mxu0 0.0
      %2991 = vmatmul.mubr.f32.gmra.mrb[0].mxu0 %v2819
      %v2992 = vpop.f32.mrb[0].mxu0
      %v2993 = vadd.f32 %v2816, %v2992
      %v2994 = vpop.f32.mrb[0].mxu0
      %2995 = vmatprep.mubr.f32.mxu0 0.0
      %2996 = vmatmul.mubr.f32.gmra.mrb[0].mxu0 %v2822
      %v2997 = vpop.f32.mrb[0].mxu0
      %v2998 = vadd.f32 %v2816, %v2997
      %v2999 = vpop.f32.mrb[0].mxu0
      %3000 = vmatprep.mubr.f32.mxu0 0.0
      %3001 = vmatmul.mubr.f32.gmra.mrb[0].mxu0 %v2825
      %v3002 = vpop.f32.mrb[0].mxu0
      %v3003 = vadd.f32 %v2816, %v3002
      %v3004 = vpop.f32.mrb[0].mxu0
      %3005 = vmatprep.mubr.f32.mxu0 0.0
      %3006 = vmatmul.mubr.f32.gmra.mrb[0].mxu0 %v2828
      %v3007 = vpop.f32.mrb[0].mxu0
      %v3008 = vadd.f32 %v2816, %v3007
      %v3009 = vpop.f32.mrb[0].mxu0
      %3010 = vmatprep.mubr.f32.mxu0 0.0
      %3011 = vmatmul.mubr.f32.gmra.mrb[0].mxu0 %v2831
      %v3012 = vpop.f32.mrb[0].mxu0
      %v3013 = vadd.f32 %v2816, %v3012
      %v3014 = vpop.f32.mrb[0].mxu0
      %3015 = vmatprep.mubr.f32.mxu0 0.0
      %3016 = vmatmul.mubr.f32.gmra.mrb[0].mxu0 %v2834
      %v3017 = vpop.f32.mrb[0].mxu0
      %v3018 = vadd.f32 %v2816, %v3017
      %v3019 = vpop.f32.mrb[0].mxu0
      %3020 = vmatprep.mubr.f32.mxu0 0.0
      %3021 = vmatmul.mubr.f32.gmra.mrb[0].mxu0 %v2837
      %v3022 = vpop.f32.mrb[0].mxu0
      %v3023 = vadd.f32 %v2816, %v3022
      %v3024 = vpop.f32.mrb[0].mxu0
      %3025 = vmatprep.mubr.f32.mxu0 0.0
      %3026 = vmatmul.mubr.f32.gmra.mrb[0].mxu0 %v2840
      %v3027 = vpop.f32.mrb[0].mxu0
      %v3028 = vadd.f32 %v2816, %v3027
      %v3029 = vpop.f32.mrb[0].mxu0
      %3030 = vmatprep.mubr.f32.mxu0 0.0
      %3031 = vmatmul.mubr.f32.gmra.mrb[0].mxu0 %v2843
      %v3032 = vpop.f32.mrb[0].mxu0
      %v3033 = vadd.f32 %v2816, %v3032
      %v3034 = vpop.f32.mrb[0].mxu0
      %3035 = vmatprep.mubr.f32.mxu0 0.0
      %3036 = vmatmul.mubr.f32.gmra.mrb[0].mxu0 %v2846
      %v3037 = vpop.f32.mrb[0].mxu0
      %v3038 = vadd.f32 %v2816, %v3037
      %v3039 = vpop.f32.mrb[0].mxu0
      %3040 = vmatprep.mubr.f32.mxu0 0.0
      %3041 = vmatmul.mubr.f32.gmra.mrb[0].mxu0 %v2849
      %v3042 = vpop.f32.mrb[0].mxu0
      %v3043 = vadd.f32 %v2816, %v3042
      %v3044 = vpop.f32.mrb[0].mxu0
      %3045 = vmatprep.mubr.f32.mxu0 0.0
      %3046 = vmatmul.mubr.f32.gmra.mrb[0].mxu0 %v2852
      %v3047 = vpop.f32.mrb[0].mxu0
      %v3048 = vadd.f32 %v2816, %v3047
      %v3049 = vpop.f32.mrb[0].mxu0
      %3050 = vmatprep.mubr.f32.mxu0 0.0
      %3051 = vmatmul.mubr.f32.gmra.mrb[0].mxu0 %v2855
      %v3052 = vpop.f32.mrb[0].mxu0
      %v3053 = vadd.f32 %v2816, %v3052
      %v3054 = vpop.f32.mrb[0].mxu0
      %3055 = vmatprep.mubr.f32.mxu0 0.0
      %3056 = vmatmul.mubr.f32.gmra.mrb[0].mxu0 %v2858
      %v3057 = vpop.f32.mrb[0].mxu0
      %v3058 = vadd.f32 %v2816, %v3057
      %v3059 = vpop.f32.mrb[0].mxu0
      %3060 = vmatprep.mubr.f32.mxu0 0.0
      %3061 = vmatmul.mubr.f32.gmra.mrb[0].mxu0 %v2861
      %v3062 = vpop.f32.mrb[0].mxu0
      %v3063 = vadd.f32 %v2816, %v3062
      %v3064 = vpop.f32.mrb[0].mxu0
      %3065 = vmatprep.mubr.f32.mxu0 0.0
      %3066 = vmatmul.mubr.f32.gmra.mrb[0].mxu0 %v2864
      %v3067 = vpop.f32.mrb[0].mxu0
      %v3068 = vadd.f32 %v2816, %v3067
      %v3069 = vpop.f32.mrb[0].mxu0
      %3070 = vmatprep.mubr.f32.mxu0 0.0
      %3071 = vmatmul.mubr.f32.gmra.mrb[0].mxu0 %v2867
      %v3072 = vpop.f32.mrb[0].mxu0
      %v3073 = vadd.f32 %v2816, %v3072
      %v3074 = vpop.f32.mrb[0].mxu0
      %3075 = vmatprep.mubr.f32.mxu0 0.0
      %3076 = vmatmul.mubr.f32.gmra.mrb[0].mxu0 %v2870
      %v3077 = vpop.f32.mrb[0].mxu0
      %v3078 = vadd.f32 %v2816, %v3077
      %v3079 = vpop.f32.mrb[0].mxu0
      %3080 = vmatprep.mubr.f32.mxu0 0.0
      %3081 = vmatmul.mubr.f32.gmra.mrb[0].mxu0 %v2873
      %v3082 = vpop.f32.mrb[0].mxu0
      %v3083 = vadd.f32 %v2816, %v3082
      %v3084 = vpop.f32.mrb[0].mxu0
      %3085 = vmatprep.mubr.f32.mxu0 0.0
      %3086 = vmatmul.mubr.f32.gmra.mrb[0].mxu0 %v2876
      %v3087 = vpop.f32.mrb[0].mxu0
      %v3088 = vadd.f32 %v2816, %v3087
      %v3089 = vpop.f32.mrb[0].mxu0
      %3090 = vmatprep.mubr.f32.mxu0 0.0
      %3091 = vmatmul.mubr.f32.gmra.mrb[0].mxu0 %v2879
      %v3092 = vpop.f32.mrb[0].mxu0
      %v3093 = vadd.f32 %v2816, %v3092
      %v3094 = vpop.f32.mrb[0].mxu0
      %3095 = vmatprep.mubr.f32.mxu0 0.0
      %3096 = vmatmul.mubr.f32.gmra.mrb[0].mxu0 %v2882
      %v3097 = vpop.f32.mrb[0].mxu0
      %v3098 = vadd.f32 %v2816, %v3097
      %v3099 = vpop.f32.mrb[0].mxu0
      %3100 = vmatprep.mubr.f32.mxu0 0.0
      %3101 = vmatmul.mubr.f32.gmra.mrb[0].mxu0 %v2885
      %v3102 = vpop.f32.mrb[0].mxu0
      %v3103 = vadd.f32 %v2816, %v3102
      %v3104 = vpop.f32.mrb[0].mxu0
      %3105 = vmatprep.mubr.f32.mxu0 0.0
      %3106 = vmatmul.mubr.f32.gmra.mrb[0].mxu0 %v2888
      %v3107 = vpop.f32.mrb[0].mxu0
      %v3108 = vadd.f32 %v2816, %v3107
      %v3109 = vpop.f32.mrb[0].mxu0
      %3110 = vmatprep.mubr.f32.mxu0 0.0
      %3111 = vmatmul.mubr.f32.gmra.mrb[0].mxu0 %v2891
      %v3112 = vpop.f32.mrb[0].mxu0
      %v3113 = vadd.f32 %v2816, %v3112
      %v3114 = vpop.f32.mrb[0].mxu0
      %3115 = vmatprep.mubr.f32.mxu0 0.0
      %3116 = vmatmul.mubr.f32.gmra.mrb[0].mxu0 %v2894
      %v3117 = vpop.f32.mrb[0].mxu0
      %v3118 = vadd.f32 %v2816, %v3117
      %v3119 = vpop.f32.mrb[0].mxu0
      %3120 = vmatprep.mubr.f32.mxu0 0.0
      %3121 = vmatmul.mubr.f32.gmra.mrb[0].mxu0 %v2897
      %v3122 = vpop.f32.mrb[0].mxu0
      %v3123 = vadd.f32 %v2816, %v3122
      %v3124 = vpop.f32.mrb[0].mxu0
      %3125 = vmatprep.mubr.f32.mxu0 0.0
      %3126 = vmatmul.mubr.f32.gmra.mrb[0].mxu0 %v2900
      %v3127 = vpop.f32.mrb[0].mxu0
      %v3128 = vadd.f32 %v2816, %v3127
      %v3129 = vpop.f32.mrb[0].mxu0
      %3130 = vmatprep.mubr.f32.mxu0 0.0
      %3131 = vmatmul.mubr.f32.gmra.mrb[0].mxu0 %v2903
      %v3132 = vpop.f32.mrb[0].mxu0
      %v3133 = vadd.f32 %v2816, %v3132
      %v3134 = vpop.f32.mrb[0].mxu0
      %3135 = vmatprep.mubr.f32.mxu0 0.0
      %3136 = vmatmul.mubr.f32.gmra.mrb[0].mxu0 %v2906
      %v3137 = vpop.f32.mrb[0].mxu0
      %v3138 = vadd.f32 %v2816, %v3137
      %v3139 = vpop.f32.mrb[0].mxu0
      %3140 = vmatprep.mubr.f32.mxu0 0.0
      %3141 = vmatmul.mubr.f32.gmra.mrb[0].mxu0 %v2909
      %v3142 = vpop.f32.mrb[0].mxu0
      %v3143 = vadd.f32 %v2816, %v3142
      %v3144 = vpop.f32.mrb[0].mxu0
      %3145 = vmatprep.mubr.f32.mxu0 0.0
      %3146 = vmatmul.mubr.f32.gmra.mrb[0].mxu0 %v2912
      %v3147 = vpop.f32.mrb[0].mxu0
      %v3148 = vadd.f32 %v2816, %v3147
      %v3149 = vpop.f32.mrb[0].mxu0
      %3150 = vmatprep.mubr.f32.mxu0 0.0
      %3151 = vmatmul.mubr.f32.gmra.mrb[0].mxu0 %v2915
      %v3152 = vpop.f32.mrb[0].mxu0
      %v3153 = vadd.f32 %v2816, %v3152
      %v3154 = vpop.f32.mrb[0].mxu0
      %3155 = vmatprep.mubr.f32.mxu0 0.0
      %3156 = vmatmul.mubr.f32.gmra.mrb[0].mxu0 %v2918
      %v3157 = vpop.f32.mrb[0].mxu0
      %v3158 = vadd.f32 %v2816, %v3157
      %v3159 = vpop.f32.mrb[0].mxu0
      %3160 = vmatprep.mubr.f32.mxu0 0.0
      %3161 = vmatmul.mubr.f32.gmra.mrb[0].mxu0 %v2921
      %v3162 = vpop.f32.mrb[0].mxu0
      %v3163 = vadd.f32 %v2816, %v3162
      %v3164 = vpop.f32.mrb[0].mxu0
      %3165 = vmatprep.mubr.f32.mxu0 0.0
      %3166 = vmatmul.mubr.f32.gmra.mrb[0].mxu0 %v2924
      %v3167 = vpop.f32.mrb[0].mxu0
      %v3168 = vadd.f32 %v2816, %v3167
      %v3169 = vpop.f32.mrb[0].mxu0
      %3170 = vdwg.mxu0
      %vm3171 = vcmask 130048
      %3172 = vst.msk [vmem:[%s359] sm:$0xff] %vm3171, %v2993
      %3173 = vst.msk [vmem:[%s359 + $0x8] sm:$0xff] %vm3171, %v2998
      %3174 = vst.msk [vmem:[%s359 + $0x10] sm:$0xff] %vm3171, %v3003
      %3175 = vst.msk [vmem:[%s359 + $0x18] sm:$0xff] %vm3171, %v3008
      %3176 = vst.msk [vmem:[%s359 + $0x20] sm:$0xff] %vm3171, %v3013
      %3177 = vst.msk [vmem:[%s359 + $0x28] sm:$0xff] %vm3171, %v3018
      %3178 = vst.msk [vmem:[%s359 + $0x30] sm:$0xff] %vm3171, %v3023
      %3179 = vst.msk [vmem:[%s359 + $0x38] sm:$0xff] %vm3171, %v3028
      %3180 = vst.msk [vmem:[%s359 + $0x40] sm:$0xff] %vm3171, %v3033
      %3181 = vst.msk [vmem:[%s359 + $0x48] sm:$0xff] %vm3171, %v3038
      %3182 = vst.msk [vmem:[%s359 + $0x50] sm:$0xff] %vm3171, %v3043
      %3183 = vst.msk [vmem:[%s359 + $0x58] sm:$0xff] %vm3171, %v3048
      %3184 = vst.msk [vmem:[%s359 + $0x60] sm:$0xff] %vm3171, %v3053
      %3185 = vst.msk [vmem:[%s359 + $0x68] sm:$0xff] %vm3171, %v3058
      %3186 = vst.msk [vmem:[%s359 + $0x70] sm:$0xff] %vm3171, %v3063
      %3187 = vst.msk [vmem:[%s359 + $0x78] sm:$0xff] %vm3171, %v3068
      %3188 = vst.msk [vmem:[%s359 + $0x80] sm:$0xff] %vm3171, %v3073
      %3189 = vst.msk [vmem:[%s359 + $0x88] sm:$0xff] %vm3171, %v3078
      %3190 = vst.msk [vmem:[%s359 + $0x90] sm:$0xff] %vm3171, %v3083
      %3191 = vst.msk [vmem:[%s359 + $0x98] sm:$0xff] %vm3171, %v3088
      %3192 = vst.msk [vmem:[%s359 + $0xa0] sm:$0xff] %vm3171, %v3093
      %3193 = vst.msk [vmem:[%s359 + $0xa8] sm:$0xff] %vm3171, %v3098
      %3194 = vst.msk [vmem:[%s359 + $0xb0] sm:$0xff] %vm3171, %v3103
      %3195 = vst.msk [vmem:[%s359 + $0xb8] sm:$0xff] %vm3171, %v3108
      %3196 = vst.msk [vmem:[%s359 + $0xc0] sm:$0xff] %vm3171, %v3113
      %3197 = vst.msk [vmem:[%s359 + $0xc8] sm:$0xff] %vm3171, %v3118
      %3198 = vst.msk [vmem:[%s359 + $0xd0] sm:$0xff] %vm3171, %v3123
      %3199 = vst.msk [vmem:[%s359 + $0xd8] sm:$0xff] %vm3171, %v3128
      %3200 = vst.msk [vmem:[%s359 + $0xe0] sm:$0xff] %vm3171, %v3133
      %3201 = vst.msk [vmem:[%s359 + $0xe8] sm:$0xff] %vm3171, %v3138
      %3202 = vst.msk [vmem:[%s359 + $0xf0] sm:$0xff] %vm3171, %v3143
      %3203 = vst.msk [vmem:[%s359 + $0xf8] sm:$0xff] %vm3171, %v3148
      %3204 = vst.msk [vmem:[%s359 + $0x100] sm:$0xff] %vm3171, %v3153
      %3205 = vst.msk [vmem:[%s359 + $0x108] sm:$0xff] %vm3171, %v3158
      %3206 = vst.msk [vmem:[%s359 + $0x110] sm:$0xff] %vm3171, %v3163
      %3207 = vst.msk [vmem:[%s359 + $0x118] sm:$0xff] %vm3171, %v3168
      %p3208 = scmp.lt.s32.totalorder %s21, 1
      %s3209 = scalar_select %p3208, %s21, 1
      %s3210 = smul.addr %s3209, 36
      %s3211 = smul.addr %s3210, 8
      %s3212 = scalar_lea.vmem %s10, %s3211
      // Predicated region
      $region61: #{tpu_custom_call.1} parent=59 // pred_check
        %p3213 = pneg %p254
      $region62: #{tpu_custom_call.1} parent=59 // pred_check_branch
        %3215 = sbr.rel (%p3213) target = $region64
      $region63: #{tpu_custom_call.1} parent=59 // pred_region
        _
      $region64: #{tpu_custom_call.1} parent=59 // pred_fallthru
        _
    $region60: #{tpu_custom_call.1} parent=5 // pred_fallthru
      _
    %p3216 = scmp.le.s32.totalorder 2, %s16
    // Predicated region
    $region65: #{tpu_custom_call.1} parent=5 // pred_check
      %p3217 = pneg %p3216
    $region66: #{tpu_custom_call.1} parent=5 // pred_check_branch
      %3219 = sbr.rel (%p3217) target = $region68
    $region67: #{tpu_custom_call.1} parent=5 // pred_region
      %s3220 = ssub.s32 %s16, 2
      // Predicated region
      $region69: #{tpu_custom_call.1} parent=67 // pred_check
        %p3221 = pneg %p260
      $region70: #{tpu_custom_call.1} parent=67 // pred_check_branch
        %3223 = sbr.rel (%p3221) target = $region72
      $region71: #{tpu_custom_call.1} parent=67 // pred_region
        %p3224 = scmp.lt.s32.totalorder %s22, 1
        %s3225 = scalar_select %p3224, %s22, 1
        %s3226 = smul.addr %s3225, 36
        %s3227 = smul.addr %s3226, 8
        %s3228 = scalar_lea.vmem %s10, %s3227
      $region72: #{tpu_custom_call.1} parent=67 // pred_fallthru
        _
    $region68: #{tpu_custom_call.1} parent=5 // pred_fallthru
      _
  $region6: #{tpu_custom_call.1} parent=0 // loop_footer
    %s20 = sadd.s32 1, %s16
  $region7: #{tpu_custom_call.1} parent=0 // loop_footer_branch
    %15 = sbr.rel target = $region3
  $region8: #{tpu_custom_call.1} parent=0 // loop_exit
    _

</llo_original>
